<compile_context>
chip_gen: v7x
topology: tpu7x:2x2x1
jax: 0.10.0
libtpu: 0.0.40
codegen_flags: <defaults>
</compile_context>

<pallas_src>
import jax
import jax.numpy as jnp
from jax.experimental import pallas as pl
from jax.experimental.pallas import tpu as pltpu

# ---- Module hyper-parameters (Attention.__init__) -------------------------
DIM = 4              # input / output channels ("dim")
HEADS = 4
DIM_HEAD = 32
SCALE = 10
HIDDEN = HEADS * DIM_HEAD      # 128
EPS = 1e-12                    # torch.nn.functional.normalize eps

_HIGH = jax.lax.Precision.HIGHEST   # only used by the pure-JAX reference


def _choose_q_tile(n: int) -> int:
    """Lane-aligned query tile. Keeps the (HEADS, TQ, N) f32 logits block
    modest (v7x has only 64 MiB VMEM per TC) while leaving >=2 tiles so the
    second grid axis actually contributes parallelism."""
    candidates = (128,) if n > 2048 else (256, 128)
    for tq in candidates:
        if n % tq == 0 and n // tq >= 2:
            return tq
    return n  # small / odd spatial sizes: single query tile per batch


# ---------------------------------------------------------------------------
# Pallas kernel: one grid step == (batch element, query tile).
# ---------------------------------------------------------------------------
def _attention_kernel(x_ref, xq_ref, wqkv_ref, wout_ref, bout_ref, o_ref):
    # x_ref:    (C, N)          full batch element, channels-first (N on lanes)
    # xq_ref:   (C, TQ)         this step's query-tile columns of the same x
    # wqkv_ref: (3*HIDDEN, C)   to_qkv 1x1-conv weight
    # wout_ref: (C, HIDDEN)     to_out 1x1-conv weight
    # bout_ref: (C, 1)          to_out bias
    # o_ref:    (C, TQ)         output tile (lane-dense)
    x = x_ref[...].astype(jnp.float32)                          # (C, N)
    n = x.shape[-1]
    tq = o_ref.shape[-1]
    w_qkv = wqkv_ref[...].astype(jnp.float32)                   # (3H, C)

    # to_qkv 1x1 conv == per-pixel matmul over channels (K = C).
    qkv = jnp.dot(w_qkv, x, preferred_element_type=jnp.float32)  # (3H, N)
    q = qkv[0 * HIDDEN:1 * HIDDEN].reshape(HEADS, DIM_HEAD, n)
    k = qkv[1 * HIDDEN:2 * HIDDEN].reshape(HEADS, DIM_HEAD, n)
    v = qkv[2 * HIDDEN:3 * HIDDEN].reshape(HEADS, DIM_HEAD, n)

    # l2norm == F.normalize(t, dim=-1) on (b, h, d, n): normalize over the
    # spatial axis. max(||.||, eps) == sqrt(max(||.||^2, eps^2)); rsqrt -> EUP.
    q_sq = jnp.sum(q * q, axis=-1, keepdims=True)                # (H, D, 1)
    k_sq = jnp.sum(k * k, axis=-1, keepdims=True)                # (H, D, 1)
    k_n = k * jax.lax.rsqrt(jnp.maximum(k_sq, EPS * EPS))

    # q for this query tile only; fold SCALE and the inverse norm into a
    # single (H, D, TQ) multiply instead of scaling the (H, TQ, N) logits.
    xq = xq_ref[...].astype(jnp.float32)                         # (C, TQ)
    q_t = jnp.dot(w_qkv[:HIDDEN], xq,
                  preferred_element_type=jnp.float32).reshape(HEADS, DIM_HEAD, tq)
    q_t = q_t * (jax.lax.rsqrt(jnp.maximum(q_sq, EPS * EPS)) * SCALE)

    # sim[h, i, j] = sum_d q[h, d, i] * k[h, d, j]
    # one batched matmul over all heads; bf16 operands, f32 accumulation.
    sim = jax.lax.dot_general(
        q_t.astype(jnp.bfloat16), k_n.astype(jnp.bfloat16),
        (((1,), (1,)), ((0,), (0,))),
        preferred_element_type=jnp.float32)                      # (H, TQ, N)

    # softmax over j; keep exp / normalization in f32 (no bf16 VPU on v5e).
    sim_max = jnp.max(sim, axis=-1, keepdims=True)
    p = jnp.exp(sim - sim_max)
    inv_den = pl.reciprocal(jnp.sum(p, axis=-1, keepdims=True), approx=True)
    attn = (p * inv_den).astype(jnp.bfloat16)                    # (H, TQ, N)

    # out[h, d, i] = sum_j attn[h, i, j] * v[h, d, j]
    out = jax.lax.dot_general(
        v.astype(jnp.bfloat16), attn,
        (((2,), (2,)), ((0,), (0,))),
        preferred_element_type=jnp.float32)                      # (H, D, TQ)
    out = out.reshape(HIDDEN, tq)                                # (h d) on channels

    # to_out: 1x1 conv with bias.
    y = jnp.dot(wout_ref[...].astype(jnp.float32), out,
                preferred_element_type=jnp.float32) + bout_ref[...].astype(jnp.float32)
    o_ref[...] = y.astype(o_ref.dtype)


# ---------------------------------------------------------------------------
# Wrapper: NCHW <-> (B, C, N) (pure reshapes) + pallas_call
# ---------------------------------------------------------------------------
def attention_pallas(x_nchw, w_qkv, w_out, b_out):
    B, C, H, W = x_nchw.shape
    assert C == DIM
    N = H * W
    TQ = _choose_q_tile(N)
    n_q = N // TQ

    x_bcn = x_nchw.reshape(B, C, N)                      # no transpose needed
    wqkv_mat = w_qkv.reshape(3 * HIDDEN, C)              # (3H, C)
    wout_mat = w_out.reshape(C, HIDDEN)                  # (C, H)
    bout_mat = b_out.reshape(C, 1)

    out_bcn = pl.pallas_call(
        _attention_kernel,
        out_shape=jax.ShapeDtypeStruct((B, C, N), x_nchw.dtype),
        grid_spec=pltpu.PrefetchScalarGridSpec(
            num_scalar_prefetch=0,
            grid=(B, n_q),
            in_specs=[
                # full x for this batch element (K/V and the spatial q-norms)
                pl.BlockSpec((None, C, N), lambda b, qi: (b, 0, 0)),
                # query-tile columns of the same x
                pl.BlockSpec((None, C, TQ), lambda b, qi: (b, 0, qi)),
                pl.BlockSpec((3 * HIDDEN, C), lambda b, qi: (0, 0)),
                pl.BlockSpec((C, HIDDEN), lambda b, qi: (0, 0)),
                pl.BlockSpec((C, 1), lambda b, qi: (0, 0)),
            ],
            out_specs=pl.BlockSpec((None, C, TQ), lambda b, qi: (b, 0, qi)),
        ),
        compiler_params=pltpu.CompilerParams(
            dimension_semantics=("parallel", "parallel"),
            vmem_limit_bytes=48 * 1024 * 1024),
    )(x_bcn, x_bcn, wqkv_mat, wout_mat, bout_mat)

    return out_bcn.reshape(B, C, H, W)                   # pure reshape back


# ---------------------------------------------------------------------------
# Pure-JAX reference mirroring the torch forward exactly (for validation)
# ---------------------------------------------------------------------------
def attention_reference(x, w_qkv, w_out, b_out):
    B, C, H, W = x.shape
    N = H * W
    qkv = jnp.einsum('bchw,oc->bohw', x, w_qkv.reshape(3 * HIDDEN, C), precision=_HIGH)
    q, k, v = jnp.split(qkv, 3, axis=1)
    q, k, v = (t.reshape(B, HEADS, DIM_HEAD, N) for t in (q, k, v))

    def l2norm(t):  # F.normalize(t, dim=-1)
        n = jnp.sqrt(jnp.sum(t * t, axis=-1, keepdims=True))
        return t / jnp.maximum(n, EPS)

    q, k = l2norm(q), l2norm(k)
    sim = jnp.einsum('bhdi,bhdj->bhij', q, k, precision=_HIGH) * SCALE
    attn = jax.nn.softmax(sim, axis=-1)
    out = jnp.einsum('bhij,bhdj->bhid', attn, v, precision=_HIGH)          # (B, h, N, d)
    out = jnp.transpose(out, (0, 1, 3, 2)).reshape(B, HIDDEN, H, W)        # b (h d) x y
    y = jnp.einsum('bchw,oc->bohw', out, w_out.reshape(C, HIDDEN), precision=_HIGH)
    return y + b_out.reshape(1, C, 1, 1)


if __name__ == "__main__":
    key = jax.random.PRNGKey(0)
    kx, k1, k2, k3 = jax.random.split(key, 4)

    B, H, W = 2, 16, 16
    x = jax.random.normal(kx, (B, DIM, H, W), dtype=jnp.float32)

    # Deterministic synthetic parameters (shapes from Attention.__init__):
    #   to_qkv: Conv2d(dim, hidden_dim*3, 1, bias=False) -> (3*HIDDEN, DIM, 1, 1)
    #   to_out: Conv2d(hidden_dim, dim, 1)               -> (DIM, HIDDEN, 1, 1) + (DIM,)
    w_qkv = 0.1 * jax.random.normal(k1, (3 * HIDDEN, DIM, 1, 1), dtype=jnp.float32)
    w_out = 0.1 * jax.random.normal(k2, (DIM, HIDDEN, 1, 1), dtype=jnp.float32)
    b_out = 0.1 * jax.random.normal(k3, (DIM,), dtype=jnp.float32)

    out = attention_pallas(x, w_qkv, w_out, b_out)
    out = jax.block_until_ready(out)

    ref = attention_reference(x, w_qkv, w_out, b_out)
    assert out.shape == (B, DIM, H, W), out.shape
    # bf16 MXU operands (f32 accumulation) vs. f32-HIGHEST reference.
    err = float(jnp.max(jnp.abs(out - ref)))
    assert jnp.allclose(out, ref, atol=1e-2, rtol=1e-2), err

    print("KERNEL_OK")
</pallas_src>

<mosaic_0001>
module attributes {stable_mosaic.version = 11 : i64} {
  func.func @_attention_kernel(%arg0: i32, %arg1: i32, %arg2: memref<1x4x256xf32, #tpu.memory_space<vmem>>, %arg3: memref<1x4x128xf32, #tpu.memory_space<vmem>>, %arg4: memref<384x4xf32, #tpu.memory_space<vmem>>, %arg5: memref<4x128xf32, #tpu.memory_space<vmem>>, %arg6: memref<4x1xf32, #tpu.memory_space<vmem>>, %arg7: memref<1x4x128xf32, #tpu.memory_space<vmem>>) attributes {dimension_semantics = [#tpu.dimension_semantics<parallel>, #tpu.dimension_semantics<parallel>], iteration_bounds = array<i64: 2, 2>, scalar_prefetch = 0 : i64, scratch_operands = 0 : i64, tpu.core_type = #tpu.core_type<tc>, window_params = [{transform_indices = @transform_0, window_bounds = array<i64: 1, 4, 256>}, {transform_indices = @transform_1, window_bounds = array<i64: 1, 4, 128>}, {pipeline_mode = #tpu.pipeline_mode<synchronous>, transform_indices = @transform_2, window_bounds = array<i64: 384, 4>}, {pipeline_mode = #tpu.pipeline_mode<synchronous>, transform_indices = @transform_3, window_bounds = array<i64: 4, 128>}, {pipeline_mode = #tpu.pipeline_mode<synchronous>, transform_indices = @transform_4, window_bounds = array<i64: 4, 1>}, {transform_indices = @transform_5, window_bounds = array<i64: 1, 4, 128>}]} {
    %c0 = arith.constant 0 : index
    %c0_0 = arith.constant 0 : index
    %c0_1 = arith.constant 0 : index
    %0 = vector.load %arg2[%c0, %c0_0, %c0_1] : memref<1x4x256xf32, #tpu.memory_space<vmem>>, vector<1x4x256xf32>
    %1 = vector.shape_cast %0 : vector<1x4x256xf32> to vector<4x256xf32>
    %c0_2 = arith.constant 0 : index
    %c0_3 = arith.constant 0 : index
    %2 = vector.load %arg4[%c0_2, %c0_3] : memref<384x4xf32, #tpu.memory_space<vmem>>, vector<384x4xf32>
    %cst = arith.constant dense<0.000000e+00> : vector<384x256xf32>
    %3 = tpu.matmul %2, %1, %cst {dimension_numbers = #tpu.dot_dimension_numbers<[1], [0], [0], [1], [0, 0, 1, 1], [], []>} : vector<384x4xf32>, vector<4x256xf32>, vector<384x256xf32> -> vector<384x256xf32>
    %4 = vector.extract_strided_slice %3 {offsets = [0, 0], sizes = [128, 256], strides = [1, 1]} : vector<384x256xf32> to vector<128x256xf32>
    %5 = vector.shape_cast %4 : vector<128x256xf32> to vector<4x32x256xf32>
    %6 = vector.extract_strided_slice %3 {offsets = [128, 0], sizes = [128, 256], strides = [1, 1]} : vector<384x256xf32> to vector<128x256xf32>
    %7 = vector.shape_cast %6 : vector<128x256xf32> to vector<4x32x256xf32>
    %8 = vector.extract_strided_slice %3 {offsets = [256, 0], sizes = [128, 256], strides = [1, 1]} : vector<384x256xf32> to vector<128x256xf32>
    %9 = vector.shape_cast %8 : vector<128x256xf32> to vector<4x32x256xf32>
    %10 = arith.mulf %5, %5 : vector<4x32x256xf32>
    %cst_4 = arith.constant dense<0.000000e+00> : vector<4x32xf32>
    %11 = vector.multi_reduction <add>, %10, %cst_4 [2] : vector<4x32x256xf32> to vector<4x32xf32>
    %12 = vector.shape_cast %11 : vector<4x32xf32> to vector<4x32x1xf32>
    %13 = arith.mulf %7, %7 : vector<4x32x256xf32>
    %cst_5 = arith.constant dense<0.000000e+00> : vector<4x32xf32>
    %14 = vector.multi_reduction <add>, %13, %cst_5 [2] : vector<4x32x256xf32> to vector<4x32xf32>
    %15 = vector.shape_cast %14 : vector<4x32xf32> to vector<4x32x1xf32>
    %cst_6 = arith.constant 1.000000e-24 : f32
    %16 = vector.broadcast %cst_6 : f32 to vector<4x32x1xf32>
    %17 = arith.maximumf %15, %16 : vector<4x32x1xf32>
    %18 = math.rsqrt %17 : vector<4x32x1xf32>
    %19 = vector.broadcast %18 : vector<4x32x1xf32> to vector<4x32x256xf32>
    %20 = arith.mulf %7, %19 : vector<4x32x256xf32>
    %c0_7 = arith.constant 0 : index
    %c0_8 = arith.constant 0 : index
    %c0_9 = arith.constant 0 : index
    %21 = vector.load %arg3[%c0_7, %c0_8, %c0_9] : memref<1x4x128xf32, #tpu.memory_space<vmem>>, vector<1x4x128xf32>
    %22 = vector.shape_cast %21 : vector<1x4x128xf32> to vector<4x128xf32>
    %23 = vector.extract_strided_slice %2 {offsets = [0, 0], sizes = [128, 4], strides = [1, 1]} : vector<384x4xf32> to vector<128x4xf32>
    %cst_10 = arith.constant dense<0.000000e+00> : vector<128x128xf32>
    %24 = tpu.matmul %23, %22, %cst_10 {dimension_numbers = #tpu.dot_dimension_numbers<[1], [0], [0], [1], [0, 0, 1, 1], [], []>} : vector<128x4xf32>, vector<4x128xf32>, vector<128x128xf32> -> vector<128x128xf32>
    %25 = vector.shape_cast %24 : vector<128x128xf32> to vector<4x32x128xf32>
    %cst_11 = arith.constant 1.000000e-24 : f32
    %26 = vector.broadcast %cst_11 : f32 to vector<4x32x1xf32>
    %27 = arith.maximumf %12, %26 : vector<4x32x1xf32>
    %28 = math.rsqrt %27 : vector<4x32x1xf32>
    %cst_12 = arith.constant 1.000000e+01 : f32
    %29 = vector.broadcast %cst_12 : f32 to vector<4x32x1xf32>
    %30 = arith.mulf %28, %29 : vector<4x32x1xf32>
    %31 = vector.broadcast %30 : vector<4x32x1xf32> to vector<4x32x128xf32>
    %32 = arith.mulf %25, %31 : vector<4x32x128xf32>
    %33 = arith.truncf %32 : vector<4x32x128xf32> to vector<4x32x128xbf16>
    %34 = arith.truncf %20 : vector<4x32x256xf32> to vector<4x32x256xbf16>
    %cst_13 = arith.constant dense<0.000000e+00> : vector<4x128x256xf32>
    %35 = tpu.matmul %33, %34, %cst_13 {dimension_numbers = #tpu.dot_dimension_numbers<[1], [1], [2], [2], [0, 0, 0, 2, 1, 2], [0], [0]>} : vector<4x32x128xbf16>, vector<4x32x256xbf16>, vector<4x128x256xf32> -> vector<4x128x256xf32>
    %cst_14 = arith.constant dense<0xFF800000> : vector<4x128xf32>
    %36 = vector.multi_reduction <maximumf>, %35, %cst_14 [2] : vector<4x128x256xf32> to vector<4x128xf32>
    %37 = vector.shape_cast %36 : vector<4x128xf32> to vector<4x128x1xf32>
    %38 = vector.broadcast %37 : vector<4x128x1xf32> to vector<4x128x256xf32>
    %39 = arith.subf %35, %38 : vector<4x128x256xf32>
    %40 = math.exp %39 : vector<4x128x256xf32>
    %cst_15 = arith.constant dense<0.000000e+00> : vector<4x128xf32>
    %41 = vector.multi_reduction <add>, %40, %cst_15 [2] : vector<4x128x256xf32> to vector<4x128xf32>
    %42 = vector.shape_cast %41 : vector<4x128xf32> to vector<4x128x1xf32>
    %43 = tpu.reciprocal %42 {approx = true} : vector<4x128x1xf32> -> vector<4x128x1xf32>
    %44 = vector.broadcast %43 : vector<4x128x1xf32> to vector<4x128x256xf32>
    %45 = arith.mulf %40, %44 : vector<4x128x256xf32>
    %46 = arith.truncf %45 : vector<4x128x256xf32> to vector<4x128x256xbf16>
    %47 = arith.truncf %9 : vector<4x32x256xf32> to vector<4x32x256xbf16>
    %cst_16 = arith.constant dense<0.000000e+00> : vector<4x32x128xf32>
    %48 = tpu.matmul %47, %46, %cst_16 {dimension_numbers = #tpu.dot_dimension_numbers<[2], [2], [1], [1], [0, 0, 0, 1, 1, 1], [0], [0]>} : vector<4x32x256xbf16>, vector<4x128x256xbf16>, vector<4x32x128xf32> -> vector<4x32x128xf32>
    %49 = vector.shape_cast %48 : vector<4x32x128xf32> to vector<128x128xf32>
    %c0_17 = arith.constant 0 : index
    %c0_18 = arith.constant 0 : index
    %50 = vector.load %arg5[%c0_17, %c0_18] : memref<4x128xf32, #tpu.memory_space<vmem>>, vector<4x128xf32>
    %cst_19 = arith.constant dense<0.000000e+00> : vector<4x128xf32>
    %51 = tpu.matmul %50, %49, %cst_19 {dimension_numbers = #tpu.dot_dimension_numbers<[1], [0], [0], [1], [0, 0, 1, 1], [], []>} : vector<4x128xf32>, vector<128x128xf32>, vector<4x128xf32> -> vector<4x128xf32>
    %c0_20 = arith.constant 0 : index
    %c0_21 = arith.constant 0 : index
    %52 = vector.load %arg6[%c0_20, %c0_21] : memref<4x1xf32, #tpu.memory_space<vmem>>, vector<4x1xf32>
    %53 = vector.broadcast %52 : vector<4x1xf32> to vector<4x128xf32>
    %54 = arith.addf %51, %53 : vector<4x128xf32>
    %c0_22 = arith.constant 0 : index
    %c0_23 = arith.constant 0 : index
    %c0_24 = arith.constant 0 : index
    %55 = vector.load %arg7[%c0_22, %c0_23, %c0_24] : memref<1x4x128xf32, #tpu.memory_space<vmem>>, vector<1x4x128xf32>
    %56 = vector.shape_cast %55 : vector<1x4x128xf32> to vector<4x128xf32>
    %57 = vector.shape_cast %54 : vector<4x128xf32> to vector<1x4x128xf32>
    tpu.vector_store %arg7[%c0_22, %c0_23, %c0_24], %57 {strides = array<i32>} : memref<1x4x128xf32, #tpu.memory_space<vmem>>, vector<1x4x128xf32>,
    return
  }
  func.func @transform_0(%arg0: i32, %arg1: i32) -> (i32, i32, i32) {
    %c0_i32 = arith.constant 0 : i32
    %c0_i32_0 = arith.constant 0 : i32
    %c0_i32_1 = arith.constant 0 : i32
    return %arg0, %c0_i32, %c0_i32_0 : i32, i32, i32
  }
  func.func @transform_1(%arg0: i32, %arg1: i32) -> (i32, i32, i32) {
    %c0_i32 = arith.constant 0 : i32
    %c0_i32_0 = arith.constant 0 : i32
    return %arg0, %c0_i32, %arg1 : i32, i32, i32
  }
  func.func @transform_2(%arg0: i32, %arg1: i32) -> (i32, i32) {
    %c0_i32 = arith.constant 0 : i32
    %c0_i32_0 = arith.constant 0 : i32
    %c0_i32_1 = arith.constant 0 : i32
    return %c0_i32, %c0_i32_0 : i32, i32
  }
  func.func @transform_3(%arg0: i32, %arg1: i32) -> (i32, i32) {
    %c0_i32 = arith.constant 0 : i32
    %c0_i32_0 = arith.constant 0 : i32
    %c0_i32_1 = arith.constant 0 : i32
    return %c0_i32, %c0_i32_0 : i32, i32
  }
  func.func @transform_4(%arg0: i32, %arg1: i32) -> (i32, i32) {
    %c0_i32 = arith.constant 0 : i32
    %c0_i32_0 = arith.constant 0 : i32
    %c0_i32_1 = arith.constant 0 : i32
    return %c0_i32, %c0_i32_0 : i32, i32
  }
  func.func @transform_5(%arg0: i32, %arg1: i32) -> (i32, i32, i32) {
    %c0_i32 = arith.constant 0 : i32
    %c0_i32_0 = arith.constant 0 : i32
    return %arg0, %c0_i32, %arg1 : i32, i32, i32
  }
}

</mosaic_0001>

<llo_original>
// kernel: tpu_custom_call.1
$region0: #{tpu_custom_call.1}
  #allocation0 [shape = 'u32[]', space=smem, size = 0x4, offset = 0x4, fixed_abs, tag = 'smem constant byte address 0x4 - core index']
  #allocation1 [shape = 'u32[144,128]{1,0:T(1,128)}', space=vmem, size = 0x12000, scoped, tag = 'internal scratch']
  %s0 = inlined_call_operand.vmem [shape: f32[2,4,256], index: 0, kind: input, shape index: {}]
  %s1 = inlined_call_operand.vmem [shape: f32[2,4,256], index: 1, kind: input, shape index: {}]
  %s2 = inlined_call_operand.vmem [shape: f32[384,4], index: 2, kind: input, shape index: {}]
  %s3 = inlined_call_operand.vmem [shape: f32[4,128], index: 3, kind: input, shape index: {}]
  %s4 = inlined_call_operand.vmem [shape: f32[4,1], index: 4, kind: input, shape index: {}]
  %s5 = inlined_call_operand.hbm [shape: f32[2,4,256], index: 5, kind: output, shape index: {}]
  %s6 = sld [smem:[#allocation0]]
  $region53: #{tpu_custom_call.1} parent=0
    _
  %s8 = ssub.s32 1, %s6
  %s9 = scalar_select 0, %s8, %s6
  $region1: #{tpu_custom_call.1} parent=0
    #allocation2 [shape = 'u8[4096]{0}', space=vmem, size = 0x1000, scoped, tag = 'output window, operand 0']
    #allocation3 [shape = 's32[2]{0}', space=sflag, size = 0x8, scoped, tag = 'scoped memory for tpu_custom_call.1']
    %10 = vsyncpa [#allocation3], 0
    %s11 = scalar_lea.sflag [#allocation3], 1
    %12 = vsyncpa %s11, 0
    loop: start=0, step=1, limit=6
    $region2: #{tpu_custom_call.1} parent=1 // loop_pre_header
      _
    $region3: #{tpu_custom_call.1} parent=1 // loop_header
      %s14 = sphi 0, %s18
      %p15 = scmp.ge.s32.totalorder %s14, 6
      %s21 = sphi 0, %s33
      %s22 = sphi 0, %s29
      %s23 = sphi 0, %s21
      %s24 = sphi 0, %s22
      %s25 = sphi 0, %s23
      %s26 = sphi 0, %s24
      %s36 = sphi 0, %s38
      %s39 = sphi 0, %s36
      %s40 = sphi 0, %s39
      %s56 = sphi 0, %s40
      %s64 = sphi 0, %s66
      %s67 = sphi 0, %s64
      %s68 = sphi 0, %s67
      %s84 = sphi 0, %s68
      %s88 = sphi 0, %s88
      %s90 = sphi 0, %s88
      %s91 = sphi 0, %s90
      %s105 = sphi 0, %s91
      %s109 = sphi 0, %s109
      %s111 = sphi 0, %s109
      %s112 = sphi 0, %s111
      %s126 = sphi 0, %s112
      %s130 = sphi 0, %s130
      %s132 = sphi 0, %s130
      %s133 = sphi 0, %s132
      %s147 = sphi 0, %s133
      %s155 = sphi 0, %s157
      %s158 = sphi 0, %s155
      %s159 = sphi 0, %s158
      %s175 = sphi 0, %s159
    $region4: #{tpu_custom_call.1} parent=1 // loop_header_branch
      %17 = sbr.rel (%p15) target = $region8
    $region5: #{tpu_custom_call.1} parent=1 // loop_body
      %s19 = ssub.s32 %s14, 1
      %s20 = ssub.s32 %s14, 2
      %s27 = sadd.s32 1, %s22
      %p28 = scmp.ge.s32.totalorder %s27, 2
      %s29 = scalar_select %p28, 0, %s27
      %s30 = sadd.s32 1, %s21
      %s31 = scalar_select %p28, %s30, %s21
      %p32 = scmp.ge.s32.totalorder %s31, 2
      %s33 = scalar_select %p32, 0, %s31
      %s34 = ssub.s32 %s21, %s33
      %p35 = scmp.eq.s32.totalorder %s34, 0
      %s37 = sadd.s32 %s36, 1
      %s38 = scalar_select %p35, %s36, %s37
      %p41 = pneg %p35
      %p42 = scmp.eq.s32.totalorder %s14, 3
      %p43 = por %p41, %p42
      %p44 = scmp.ne.s32.totalorder %s36, %s39
      %p45 = scmp.eq.s32.totalorder %s14, 0
      %p46 = por %p44, %p45
      %p47 = scmp.ne.s32.totalorder %s36, %s39
      %p48 = scmp.eq.s32.totalorder %s19, 3
      %p49 = por %p47, %p48
      %p50 = scmp.ne.s32.totalorder %s39, %s40
      %p51 = scmp.eq.s32.totalorder %s19, 0
      %p52 = por %p50, %p51
      %p53 = scmp.ne.s32.totalorder %s39, %s40
      %p54 = scmp.eq.s32.totalorder %s20, 3
      %p55 = por %p53, %p54
      %p57 = scmp.ne.s32.totalorder %s40, %s56
      %p58 = scmp.eq.s32.totalorder %s20, 0
      %p59 = por %p57, %p58
      %s60 = ssub.s32 %s21, %s33
      %s61 = ssub.s32 %s22, %s29
      %s62 = sor.u32 %s60, %s61
      %p63 = scmp.eq.s32.totalorder %s62, 0
      %s65 = sadd.s32 %s64, 1
      %s66 = scalar_select %p63, %s64, %s65
      %p69 = pneg %p63
      %p70 = scmp.eq.s32.totalorder %s14, 3
      %p71 = por %p69, %p70
      %p72 = scmp.ne.s32.totalorder %s64, %s67
      %p73 = scmp.eq.s32.totalorder %s14, 0
      %p74 = por %p72, %p73
      %p75 = scmp.ne.s32.totalorder %s64, %s67
      %p76 = scmp.eq.s32.totalorder %s19, 3
      %p77 = por %p75, %p76
      %p78 = scmp.ne.s32.totalorder %s67, %s68
      %p79 = scmp.eq.s32.totalorder %s19, 0
      %p80 = por %p78, %p79
      %p81 = scmp.ne.s32.totalorder %s67, %s68
      %p82 = scmp.eq.s32.totalorder %s20, 3
      %p83 = por %p81, %p82
      %p85 = scmp.ne.s32.totalorder %s68, %s84
      %p86 = scmp.eq.s32.totalorder %s20, 0
      %p87 = por %p85, %p86
      %s89 = sadd.s32 %s88, 1
      %p92 = scmp.eq.s32.totalorder %s14, 3
      %p93 = scmp.ne.s32.totalorder %s88, %s90
      %p94 = scmp.eq.s32.totalorder %s14, 0
      %p95 = por %p93, %p94
      %p96 = scmp.ne.s32.totalorder %s88, %s90
      %p97 = scmp.eq.s32.totalorder %s19, 3
      %p98 = por %p96, %p97
      %p99 = scmp.ne.s32.totalorder %s90, %s91
      %p100 = scmp.eq.s32.totalorder %s19, 0
      %p101 = por %p99, %p100
      %p102 = scmp.ne.s32.totalorder %s90, %s91
      %p103 = scmp.eq.s32.totalorder %s20, 3
      %p104 = por %p102, %p103
      %p106 = scmp.ne.s32.totalorder %s91, %s105
      %p107 = scmp.eq.s32.totalorder %s20, 0
      %p108 = por %p106, %p107
      %s110 = sadd.s32 %s109, 1
      %p113 = scmp.eq.s32.totalorder %s14, 3
      %p114 = scmp.ne.s32.totalorder %s109, %s111
      %p115 = scmp.eq.s32.totalorder %s14, 0
      %p116 = por %p114, %p115
      %p117 = scmp.ne.s32.totalorder %s109, %s111
      %p118 = scmp.eq.s32.totalorder %s19, 3
      %p119 = por %p117, %p118
      %p120 = scmp.ne.s32.totalorder %s111, %s112
      %p121 = scmp.eq.s32.totalorder %s19, 0
      %p122 = por %p120, %p121
      %p123 = scmp.ne.s32.totalorder %s111, %s112
      %p124 = scmp.eq.s32.totalorder %s20, 3
      %p125 = por %p123, %p124
      %p127 = scmp.ne.s32.totalorder %s112, %s126
      %p128 = scmp.eq.s32.totalorder %s20, 0
      %p129 = por %p127, %p128
      %s131 = sadd.s32 %s130, 1
      %p134 = scmp.eq.s32.totalorder %s14, 3
      %p135 = scmp.ne.s32.totalorder %s130, %s132
      %p136 = scmp.eq.s32.totalorder %s14, 0
      %p137 = por %p135, %p136
      %p138 = scmp.ne.s32.totalorder %s130, %s132
      %p139 = scmp.eq.s32.totalorder %s19, 3
      %p140 = por %p138, %p139
      %p141 = scmp.ne.s32.totalorder %s132, %s133
      %p142 = scmp.eq.s32.totalorder %s19, 0
      %p143 = por %p141, %p142
      %p144 = scmp.ne.s32.totalorder %s132, %s133
      %p145 = scmp.eq.s32.totalorder %s20, 3
      %p146 = por %p144, %p145
      %p148 = scmp.ne.s32.totalorder %s133, %s147
      %p149 = scmp.eq.s32.totalorder %s20, 0
      %p150 = por %p148, %p149
      %s151 = ssub.s32 %s21, %s33
      %s152 = ssub.s32 %s22, %s29
      %s153 = sor.u32 %s151, %s152
      %p154 = scmp.eq.s32.totalorder %s153, 0
      %s156 = sadd.s32 %s155, 1
      %s157 = scalar_select %p154, %s155, %s156
      %p160 = pneg %p154
      %p161 = scmp.eq.s32.totalorder %s14, 3
      %p162 = por %p160, %p161
      %p163 = scmp.ne.s32.totalorder %s155, %s158
      %p164 = scmp.eq.s32.totalorder %s14, 0
      %p165 = por %p163, %p164
      %p166 = scmp.ne.s32.totalorder %s155, %s158
      %p167 = scmp.eq.s32.totalorder %s19, 3
      %p168 = por %p166, %p167
      %p169 = scmp.ne.s32.totalorder %s158, %s159
      %p170 = scmp.eq.s32.totalorder %s19, 0
      %p171 = por %p169, %p170
      %p172 = scmp.ne.s32.totalorder %s158, %s159
      %p173 = scmp.eq.s32.totalorder %s20, 3
      %p174 = por %p172, %p173
      %p176 = scmp.ne.s32.totalorder %s159, %s175
      %p177 = scmp.eq.s32.totalorder %s20, 0
      %p178 = por %p176, %p177
      %p179 = scmp.le.s32.totalorder 1, %s14
      %p180 = scmp.lt.s32.totalorder %s14, 5
      %p181 = pnand %p179, %p180
      %p182 = pneg %p181
      // Predicated region
      $region9: #{tpu_custom_call.1} parent=5 // pred_check
        _
      $region10: #{tpu_custom_call.1} parent=5 // pred_check_branch
        %184 = sbr.rel (%p181) target = $region12
      $region11: #{tpu_custom_call.1} parent=5 // pred_region
        %s185 = ssub.s32 %s14, 1
        // Predicated region
        $region13: #{tpu_custom_call.1} parent=11 // pred_check
          %p186 = pneg %p101
        $region14: #{tpu_custom_call.1} parent=11 // pred_check_branch
          %188 = sbr.rel (%p186) target = $region16
        $region15: #{tpu_custom_call.1} parent=11 // pred_region
          _
        $region16: #{tpu_custom_call.1} parent=11 // pred_fallthru
          _
        // Predicated region
        $region17: #{tpu_custom_call.1} parent=11 // pred_check
          %p189 = pneg %p122
        $region18: #{tpu_custom_call.1} parent=11 // pred_check_branch
          %191 = sbr.rel (%p189) target = $region20
        $region19: #{tpu_custom_call.1} parent=11 // pred_region
          _
        $region20: #{tpu_custom_call.1} parent=11 // pred_fallthru
          _
        // Predicated region
        $region21: #{tpu_custom_call.1} parent=11 // pred_check
          %p192 = pneg %p143
        $region22: #{tpu_custom_call.1} parent=11 // pred_check_branch
          %194 = sbr.rel (%p192) target = $region24
        $region23: #{tpu_custom_call.1} parent=11 // pred_region
          _
        $region24: #{tpu_custom_call.1} parent=11 // pred_fallthru
          _
      $region12: #{tpu_custom_call.1} parent=5 // pred_fallthru
        _
      %p195 = scmp.lt.s32.totalorder %s14, 4
      // Predicated region
      $region25: #{tpu_custom_call.1} parent=5 // pred_check
        %p196 = pneg %p195
      $region26: #{tpu_custom_call.1} parent=5 // pred_check_branch
        %198 = sbr.rel (%p196) target = $region28
      $region27: #{tpu_custom_call.1} parent=5 // pred_region
        // Predicated region
        $region29: #{tpu_custom_call.1} parent=27 // pred_check
          %p199 = pneg %p46
        $region30: #{tpu_custom_call.1} parent=27 // pred_check_branch
          %201 = sbr.rel (%p199) target = $region32
        $region31: #{tpu_custom_call.1} parent=27 // pred_region
          %p202 = scmp.lt.s32.totalorder %s21, 1
          %s203 = scalar_select %p202, %s21, 1
          %s204 = smul.addr %s203, 2
          %s205 = smul.addr %s204, 4
          %s206 = scalar_lea.vmem %s0, %s205
        $region32: #{tpu_custom_call.1} parent=27 // pred_fallthru
          _
        // Predicated region
        $region33: #{tpu_custom_call.1} parent=27 // pred_check
          %p207 = pneg %p74
        $region34: #{tpu_custom_call.1} parent=27 // pred_check_branch
          %209 = sbr.rel (%p207) target = $region36
        $region35: #{tpu_custom_call.1} parent=27 // pred_region
          %p210 = scmp.lt.s32.totalorder %s21, 1
          %s211 = scalar_select %p210, %s21, 1
          %p212 = scmp.lt.s32.totalorder %s22, 1
          %s213 = scalar_select %p212, %s22, 1
          %s214 = smul.addr %s211, 2
          %s215 = sadd.s32 %s213, %s214
          %s216 = smul.addr %s215, 4
          %s217 = scalar_lea.vmem %s1, %s216
        $region36: #{tpu_custom_call.1} parent=27 // pred_fallthru
          _
      $region28: #{tpu_custom_call.1} parent=5 // pred_fallthru
        _
      %p218 = scmp.le.s32.totalorder 1, %s14
      %p219 = scmp.lt.s32.totalorder %s14, 5
      %p220 = pnand %p218, %p219
      %p221 = pneg %p220
      // Predicated region
      $region37: #{tpu_custom_call.1} parent=5 // pred_check
        _
      $region38: #{tpu_custom_call.1} parent=5 // pred_check_branch
        %223 = sbr.rel (%p220) target = $region40
      $region39: #{tpu_custom_call.1} parent=5 // pred_region
        %s224 = ssub.s32 %s14, 1
        %p225 = scmp.lt.s32.totalorder %s23, 1
        %s226 = scalar_select %p225, %s23, 1
        %s227 = smul.addr %s226, 2
        %s228 = smul.addr %s227, 4
        %s229 = scalar_lea.vmem %s0, %s228
        %p230 = pneg %p52
        %p231 = pneg %p49
        %p232 = scmp.lt.s32.totalorder %s23, 1
        %s233 = scalar_select %p232, %s23, 1
        %p234 = scmp.lt.s32.totalorder %s24, 1
        %s235 = scalar_select %p234, %s24, 1
        %s236 = smul.addr %s233, 2
        %s237 = sadd.s32 %s235, %s236
        %s238 = smul.addr %s237, 4
        %s239 = scalar_lea.vmem %s1, %s238
        %p240 = pneg %p80
        %p241 = pneg %p77
        %p242 = pneg %p101
        %p243 = pneg %p98
        %p244 = pneg %p122
        %p245 = pneg %p119
        %p246 = pneg %p143
        %p247 = pneg %p140
        %p248 = pneg %p171
        %p249 = pneg %p168
        %s250 = sand.u32 %s158, 1
        %s251 = scalar_lea.sflag [#allocation3], %s250
        %s252 = sand.u32 %s158, 1
        %s253 = smul.addr %s252, 4
        %s254 = scalar_lea.vmem [#allocation2], %s253
        %p255 = scmp.lt.s32.totalorder %s23, 1
        %s256 = scalar_select %p255, %s23, 1
        %s257 = smul.addr %s256, 2
        %s258 = smul.addr %s257, 4
        %s259 = scalar_lea.vmem %s0, %s258
        %p260 = scmp.lt.s32.totalorder %s23, 1
        %s261 = scalar_select %p260, %s23, 1
        %p262 = scmp.lt.s32.totalorder %s24, 1
        %s263 = scalar_select %p262, %s24, 1
        %s264 = smul.addr %s261, 2
        %s265 = sadd.s32 %s263, %s264
        %s266 = smul.addr %s265, 4
        %s267 = scalar_lea.vmem %s1, %s266
        %v269 = vld [vmem:[%s259] sm:$0xff]
        %v270 = vld [vmem:[%s2] sm:$0xff]
        %v271 = vld [vmem:[%s2 + $0x8] sm:$0xff]
        %v272 = vld [vmem:[%s2 + $0x10] sm:$0xff]
        %v273 = vld [vmem:[%s2 + $0x18] sm:$0xff]
        %v274 = vld [vmem:[%s2 + $0x20] sm:$0xff]
        %v275 = vld [vmem:[%s2 + $0x28] sm:$0xff]
        %v276 = vld [vmem:[%s2 + $0x30] sm:$0xff]
        %v277 = vld [vmem:[%s2 + $0x38] sm:$0xff]
        %v278 = vld [vmem:[%s2 + $0x40] sm:$0xff]
        %v279 = vld [vmem:[%s2 + $0x48] sm:$0xff]
        %v280 = vld [vmem:[%s2 + $0x50] sm:$0xff]
        %v281 = vld [vmem:[%s2 + $0x58] sm:$0xff]
        %v282 = vld [vmem:[%s2 + $0x60] sm:$0xff]
        %v283 = vld [vmem:[%s2 + $0x68] sm:$0xff]
        %v284 = vld [vmem:[%s2 + $0x70] sm:$0xff]
        %v285 = vld [vmem:[%s2 + $0x78] sm:$0xff]
        %v286 = vld [vmem:[%s2 + $0x80] sm:$0xff]
        %v287 = vld [vmem:[%s2 + $0x88] sm:$0xff]
        %v288 = vld [vmem:[%s2 + $0x90] sm:$0xff]
        %v289 = vld [vmem:[%s2 + $0x98] sm:$0xff]
        %v290 = vld [vmem:[%s2 + $0xa0] sm:$0xff]
        %v291 = vld [vmem:[%s2 + $0xa8] sm:$0xff]
        %v292 = vld [vmem:[%s2 + $0xb0] sm:$0xff]
        %v293 = vld [vmem:[%s2 + $0xb8] sm:$0xff]
        %v294 = vld [vmem:[%s2 + $0xc0] sm:$0xff]
        %v295 = vld [vmem:[%s2 + $0xc8] sm:$0xff]
        %v296 = vld [vmem:[%s2 + $0xd0] sm:$0xff]
        %v297 = vld [vmem:[%s2 + $0xd8] sm:$0xff]
        %v298 = vld [vmem:[%s2 + $0xe0] sm:$0xff]
        %v299 = vld [vmem:[%s2 + $0xe8] sm:$0xff]
        %v300 = vld [vmem:[%s2 + $0xf0] sm:$0xff]
        %v301 = vld [vmem:[%s2 + $0xf8] sm:$0xff]
        %v302 = vld [vmem:[%s2 + $0x100] sm:$0xff]
        %v303 = vld [vmem:[%s2 + $0x108] sm:$0xff]
        %v304 = vld [vmem:[%s2 + $0x110] sm:$0xff]
        %v305 = vld [vmem:[%s2 + $0x118] sm:$0xff]
        %v306 = vld [vmem:[%s2 + $0x120] sm:$0xff]
        %v307 = vld [vmem:[%s2 + $0x128] sm:$0xff]
        %v308 = vld [vmem:[%s2 + $0x130] sm:$0xff]
        %v309 = vld [vmem:[%s2 + $0x138] sm:$0xff]
        %v310 = vld [vmem:[%s2 + $0x140] sm:$0xff]
        %v311 = vld [vmem:[%s2 + $0x148] sm:$0xff]
        %v312 = vld [vmem:[%s2 + $0x150] sm:$0xff]
        %v313 = vld [vmem:[%s2 + $0x158] sm:$0xff]
        %v314 = vld [vmem:[%s2 + $0x160] sm:$0xff]
        %v315 = vld [vmem:[%s2 + $0x168] sm:$0xff]
        %v316 = vld [vmem:[%s2 + $0x170] sm:$0xff]
        %v317 = vld [vmem:[%s2 + $0x178] sm:$0xff]
        %v319 = vcombine.high %v269, %v269
        %vm320 = vcmask 31744
        %v322 = vsel %vm320, %v270, 0
        %v325 = vsel %vm320, %v271, 0
        %v328 = vsel %vm320, %v272, 0
        %v331 = vsel %vm320, %v273, 0
        %v334 = vsel %vm320, %v274, 0
        %v337 = vsel %vm320, %v275, 0
        %v340 = vsel %vm320, %v276, 0
        %v343 = vsel %vm320, %v277, 0
        %v346 = vsel %vm320, %v278, 0
        %v349 = vsel %vm320, %v279, 0
        %v352 = vsel %vm320, %v280, 0
        %v355 = vsel %vm320, %v281, 0
        %v358 = vsel %vm320, %v282, 0
        %v361 = vsel %vm320, %v283, 0
        %v364 = vsel %vm320, %v284, 0
        %v367 = vsel %vm320, %v285, 0
        %v370 = vsel %vm320, %v286, 0
        %v373 = vsel %vm320, %v287, 0
        %v376 = vsel %vm320, %v288, 0
        %v379 = vsel %vm320, %v289, 0
        %v382 = vsel %vm320, %v290, 0
        %v385 = vsel %vm320, %v291, 0
        %v388 = vsel %vm320, %v292, 0
        %v391 = vsel %vm320, %v293, 0
        %v394 = vsel %vm320, %v294, 0
        %v397 = vsel %vm320, %v295, 0
        %v400 = vsel %vm320, %v296, 0
        %v403 = vsel %vm320, %v297, 0
        %v406 = vsel %vm320, %v298, 0
        %v409 = vsel %vm320, %v299, 0
        %v412 = vsel %vm320, %v300, 0
        %v415 = vsel %vm320, %v301, 0
        %v418 = vsel %vm320, %v302, 0
        %v421 = vsel %vm320, %v303, 0
        %v424 = vsel %vm320, %v304, 0
        %v427 = vsel %vm320, %v305, 0
        %v430 = vsel %vm320, %v306, 0
        %v433 = vsel %vm320, %v307, 0
        %v436 = vsel %vm320, %v308, 0
        %v439 = vsel %vm320, %v309, 0
        %v442 = vsel %vm320, %v310, 0
        %v445 = vsel %vm320, %v311, 0
        %v448 = vsel %vm320, %v312, 0
        %v451 = vsel %vm320, %v313, 0
        %v454 = vsel %vm320, %v314, 0
        %v457 = vsel %vm320, %v315, 0
        %v460 = vsel %vm320, %v316, 0
        %v463 = vsel %vm320, %v317, 0
        %vm465 = vcmask 1043456
        %v466 = vsel %vm465, %v269, 0
        %v468 = vsel %vm465, %v319, 0
        %470 = vmatprep.subr.mxu0 %v468
        %471 = vmatpush1.msra.mxu0 %v466
        %472 = vmatprep.subr.mxu0 0.0
        %473 = vmatpush1.msra.mxu0 0.0
        %474 = vmatprep.subr.mxu0 0.0
        %475 = vmatpush1.msra.mxu0 0.0
        %476 = vmatprep.subr.mxu0 0.0
        %477 = vmatpush1.msra.mxu0 0.0
        %478 = vmatprep.subr.mxu0 0.0
        %479 = vmatpush1.msra.mxu0 0.0
        %480 = vmatprep.subr.mxu0 0.0
        %481 = vmatpush1.msra.mxu0 0.0
        %482 = vmatprep.subr.mxu0 0.0
        %483 = vmatpush1.msra.mxu0 0.0
        %484 = vmatprep.subr.mxu0 0.0
        %485 = vmatpush1.msra.mxu0 0.0
        %486 = vmatprep.subr.mxu0 0.0
        %487 = vmatpush1.msra.mxu0 0.0
        %488 = vmatprep.subr.mxu0 0.0
        %489 = vmatpush1.msra.mxu0 0.0
        %490 = vmatprep.subr.mxu0 0.0
        %491 = vmatpush1.msra.mxu0 0.0
        %492 = vmatprep.subr.mxu0 0.0
        %493 = vmatpush1.msra.mxu0 0.0
        %494 = vmatprep.subr.mxu0 0.0
        %495 = vmatpush1.msra.mxu0 0.0
        %496 = vmatprep.subr.mxu0 0.0
        %497 = vmatpush1.msra.mxu0 0.0
        %498 = vmatprep.subr.mxu0 0.0
        %499 = vmatpush1.msra.mxu0 0.0
        %500 = vmatprep.subr.mxu0 0.0
        %501 = vmatpush1.msra.mxu0 0.0
        %502 = vmatprep.subr.mxu0 0.0
        %503 = vmatpush1.msra.mxu0 0.0
        %504 = vmatprep.subr.mxu0 0.0
        %505 = vmatpush1.msra.mxu0 0.0
        %506 = vmatprep.subr.mxu0 0.0
        %507 = vmatpush1.msra.mxu0 0.0
        %508 = vmatprep.subr.mxu0 0.0
        %509 = vmatpush1.msra.mxu0 0.0
        %510 = vmatprep.subr.mxu0 0.0
        %511 = vmatpush1.msra.mxu0 0.0
        %512 = vmatprep.subr.mxu0 0.0
        %513 = vmatpush1.msra.mxu0 0.0
        %514 = vmatprep.subr.mxu0 0.0
        %515 = vmatpush1.msra.mxu0 0.0
        %516 = vmatprep.subr.mxu0 0.0
        %517 = vmatpush1.msra.mxu0 0.0
        %518 = vmatprep.subr.mxu0 0.0
        %519 = vmatpush1.msra.mxu0 0.0
        %520 = vmatprep.subr.mxu0 0.0
        %521 = vmatpush1.msra.mxu0 0.0
        %522 = vmatprep.subr.mxu0 0.0
        %523 = vmatpush1.msra.mxu0 0.0
        %524 = vmatprep.subr.mxu0 0.0
        %525 = vmatpush1.msra.mxu0 0.0
        %526 = vmatprep.subr.mxu0 0.0
        %527 = vmatpush1.msra.mxu0 0.0
        %528 = vmatprep.subr.mxu0 0.0
        %529 = vmatpush1.msra.mxu0 0.0
        %530 = vmatprep.subr.mxu0 0.0
        %531 = vmatpush1.msra.mxu0 0.0
        %532 = vmatprep.subr.mxu0 0.0
        %533 = vmatpush1.msra.mxu0 0.0
        %534 = vmatprep.mubr.f32.mxu0 0.0
        %535 = vmatmul.mubr.f32.gmra.mrb[0].mxu0 %v322
        %v536 = vpop.f32.mrb[0].mxu0
        %v537 = vadd.f32 0.0, %v536
        %v538 = vpop.f32.mrb[0].mxu0
        %v539 = vadd.f32 0.0, %v538
        %540 = vmatprep.mubr.f32.mxu0 0.0
        %541 = vmatmul.mubr.f32.gmra.mrb[0].mxu0 %v325
        %v542 = vpop.f32.mrb[0].mxu0
        %v543 = vadd.f32 0.0, %v542
        %v544 = vpop.f32.mrb[0].mxu0
        %v545 = vadd.f32 0.0, %v544
        %546 = vmatprep.mubr.f32.mxu0 0.0
        %547 = vmatmul.mubr.f32.gmra.mrb[0].mxu0 %v328
        %v548 = vpop.f32.mrb[0].mxu0
        %v549 = vadd.f32 0.0, %v548
        %v550 = vpop.f32.mrb[0].mxu0
        %v551 = vadd.f32 0.0, %v550
        %552 = vmatprep.mubr.f32.mxu0 0.0
        %553 = vmatmul.mubr.f32.gmra.mrb[0].mxu0 %v331
        %v554 = vpop.f32.mrb[0].mxu0
        %v555 = vadd.f32 0.0, %v554
        %v556 = vpop.f32.mrb[0].mxu0
        %v557 = vadd.f32 0.0, %v556
        %558 = vmatprep.mubr.f32.mxu0 0.0
        %559 = vmatmul.mubr.f32.gmra.mrb[0].mxu0 %v334
        %v560 = vpop.f32.mrb[0].mxu0
        %v561 = vadd.f32 0.0, %v560
        %v562 = vpop.f32.mrb[0].mxu0
        %v563 = vadd.f32 0.0, %v562
        %564 = vmatprep.mubr.f32.mxu0 0.0
        %565 = vmatmul.mubr.f32.gmra.mrb[0].mxu0 %v337
        %v566 = vpop.f32.mrb[0].mxu0
        %v567 = vadd.f32 0.0, %v566
        %v568 = vpop.f32.mrb[0].mxu0
        %v569 = vadd.f32 0.0, %v568
        %570 = vmatprep.mubr.f32.mxu0 0.0
        %571 = vmatmul.mubr.f32.gmra.mrb[0].mxu0 %v340
        %v572 = vpop.f32.mrb[0].mxu0
        %v573 = vadd.f32 0.0, %v572
        %v574 = vpop.f32.mrb[0].mxu0
        %v575 = vadd.f32 0.0, %v574
        %576 = vmatprep.mubr.f32.mxu0 0.0
        %577 = vmatmul.mubr.f32.gmra.mrb[0].mxu0 %v343
        %v578 = vpop.f32.mrb[0].mxu0
        %v579 = vadd.f32 0.0, %v578
        %v580 = vpop.f32.mrb[0].mxu0
        %v581 = vadd.f32 0.0, %v580
        %582 = vmatprep.mubr.f32.mxu0 0.0
        %583 = vmatmul.mubr.f32.gmra.mrb[0].mxu0 %v346
        %v584 = vpop.f32.mrb[0].mxu0
        %v585 = vadd.f32 0.0, %v584
        %v586 = vpop.f32.mrb[0].mxu0
        %v587 = vadd.f32 0.0, %v586
        %588 = vmatprep.mubr.f32.mxu0 0.0
        %589 = vmatmul.mubr.f32.gmra.mrb[0].mxu0 %v349
        %v590 = vpop.f32.mrb[0].mxu0
        %v591 = vadd.f32 0.0, %v590
        %v592 = vpop.f32.mrb[0].mxu0
        %v593 = vadd.f32 0.0, %v592
        %594 = vmatprep.mubr.f32.mxu0 0.0
        %595 = vmatmul.mubr.f32.gmra.mrb[0].mxu0 %v352
        %v596 = vpop.f32.mrb[0].mxu0
        %v597 = vadd.f32 0.0, %v596
        %v598 = vpop.f32.mrb[0].mxu0
        %v599 = vadd.f32 0.0, %v598
        %600 = vmatprep.mubr.f32.mxu0 0.0
        %601 = vmatmul.mubr.f32.gmra.mrb[0].mxu0 %v355
        %v602 = vpop.f32.mrb[0].mxu0
        %v603 = vadd.f32 0.0, %v602
        %v604 = vpop.f32.mrb[0].mxu0
        %v605 = vadd.f32 0.0, %v604
        %606 = vmatprep.mubr.f32.mxu0 0.0
        %607 = vmatmul.mubr.f32.gmra.mrb[0].mxu0 %v358
        %v608 = vpop.f32.mrb[0].mxu0
        %v609 = vadd.f32 0.0, %v608
        %v610 = vpop.f32.mrb[0].mxu0
        %v611 = vadd.f32 0.0, %v610
        %612 = vmatprep.mubr.f32.mxu0 0.0
        %613 = vmatmul.mubr.f32.gmra.mrb[0].mxu0 %v361
        %v614 = vpop.f32.mrb[0].mxu0
        %v615 = vadd.f32 0.0, %v614
        %v616 = vpop.f32.mrb[0].mxu0
        %v617 = vadd.f32 0.0, %v616
        %618 = vmatprep.mubr.f32.mxu0 0.0
        %619 = vmatmul.mubr.f32.gmra.mrb[0].mxu0 %v364
        %v620 = vpop.f32.mrb[0].mxu0
        %v621 = vadd.f32 0.0, %v620
        %v622 = vpop.f32.mrb[0].mxu0
        %v623 = vadd.f32 0.0, %v622
        %624 = vmatprep.mubr.f32.mxu0 0.0
        %625 = vmatmul.mubr.f32.gmra.mrb[0].mxu0 %v367
        %v626 = vpop.f32.mrb[0].mxu0
        %v627 = vadd.f32 0.0, %v626
        %v628 = vpop.f32.mrb[0].mxu0
        %v629 = vadd.f32 0.0, %v628
        %630 = vmatprep.mubr.f32.mxu0 0.0
        %631 = vmatmul.mubr.f32.gmra.mrb[0].mxu0 %v370
        %v632 = vpop.f32.mrb[0].mxu0
        %v633 = vadd.f32 0.0, %v632
        %v634 = vpop.f32.mrb[0].mxu0
        %v635 = vadd.f32 0.0, %v634
        %636 = vmatprep.mubr.f32.mxu0 0.0
        %637 = vmatmul.mubr.f32.gmra.mrb[0].mxu0 %v373
        %v638 = vpop.f32.mrb[0].mxu0
        %v639 = vadd.f32 0.0, %v638
        %v640 = vpop.f32.mrb[0].mxu0
        %v641 = vadd.f32 0.0, %v640
        %642 = vmatprep.mubr.f32.mxu0 0.0
        %643 = vmatmul.mubr.f32.gmra.mrb[0].mxu0 %v376
        %v644 = vpop.f32.mrb[0].mxu0
        %v645 = vadd.f32 0.0, %v644
        %v646 = vpop.f32.mrb[0].mxu0
        %v647 = vadd.f32 0.0, %v646
        %648 = vmatprep.mubr.f32.mxu0 0.0
        %649 = vmatmul.mubr.f32.gmra.mrb[0].mxu0 %v379
        %v650 = vpop.f32.mrb[0].mxu0
        %v651 = vadd.f32 0.0, %v650
        %v652 = vpop.f32.mrb[0].mxu0
        %v653 = vadd.f32 0.0, %v652
        %654 = vmatprep.mubr.f32.mxu0 0.0
        %655 = vmatmul.mubr.f32.gmra.mrb[0].mxu0 %v382
        %v656 = vpop.f32.mrb[0].mxu0
        %v657 = vadd.f32 0.0, %v656
        %v658 = vpop.f32.mrb[0].mxu0
        %v659 = vadd.f32 0.0, %v658
        %660 = vmatprep.mubr.f32.mxu0 0.0
        %661 = vmatmul.mubr.f32.gmra.mrb[0].mxu0 %v385
        %v662 = vpop.f32.mrb[0].mxu0
        %v663 = vadd.f32 0.0, %v662
        %v664 = vpop.f32.mrb[0].mxu0
        %v665 = vadd.f32 0.0, %v664
        %666 = vmatprep.mubr.f32.mxu0 0.0
        %667 = vmatmul.mubr.f32.gmra.mrb[0].mxu0 %v388
        %v668 = vpop.f32.mrb[0].mxu0
        %v669 = vadd.f32 0.0, %v668
        %v670 = vpop.f32.mrb[0].mxu0
        %v671 = vadd.f32 0.0, %v670
        %672 = vmatprep.mubr.f32.mxu0 0.0
        %673 = vmatmul.mubr.f32.gmra.mrb[0].mxu0 %v391
        %v674 = vpop.f32.mrb[0].mxu0
        %v675 = vadd.f32 0.0, %v674
        %v676 = vpop.f32.mrb[0].mxu0
        %v677 = vadd.f32 0.0, %v676
        %678 = vmatprep.mubr.f32.mxu0 0.0
        %679 = vmatmul.mubr.f32.gmra.mrb[0].mxu0 %v394
        %v680 = vpop.f32.mrb[0].mxu0
        %v681 = vadd.f32 0.0, %v680
        %v682 = vpop.f32.mrb[0].mxu0
        %v683 = vadd.f32 0.0, %v682
        %684 = vmatprep.mubr.f32.mxu0 0.0
        %685 = vmatmul.mubr.f32.gmra.mrb[0].mxu0 %v397
        %v686 = vpop.f32.mrb[0].mxu0
        %v687 = vadd.f32 0.0, %v686
        %v688 = vpop.f32.mrb[0].mxu0
        %v689 = vadd.f32 0.0, %v688
        %690 = vmatprep.mubr.f32.mxu0 0.0
        %691 = vmatmul.mubr.f32.gmra.mrb[0].mxu0 %v400
        %v692 = vpop.f32.mrb[0].mxu0
        %v693 = vadd.f32 0.0, %v692
        %v694 = vpop.f32.mrb[0].mxu0
        %v695 = vadd.f32 0.0, %v694
        %696 = vmatprep.mubr.f32.mxu0 0.0
        %697 = vmatmul.mubr.f32.gmra.mrb[0].mxu0 %v403
        %v698 = vpop.f32.mrb[0].mxu0
        %v699 = vadd.f32 0.0, %v698
        %v700 = vpop.f32.mrb[0].mxu0
        %v701 = vadd.f32 0.0, %v700
        %702 = vmatprep.mubr.f32.mxu0 0.0
        %703 = vmatmul.mubr.f32.gmra.mrb[0].mxu0 %v406
        %v704 = vpop.f32.mrb[0].mxu0
        %v705 = vadd.f32 0.0, %v704
        %v706 = vpop.f32.mrb[0].mxu0
        %v707 = vadd.f32 0.0, %v706
        %708 = vmatprep.mubr.f32.mxu0 0.0
        %709 = vmatmul.mubr.f32.gmra.mrb[0].mxu0 %v409
        %v710 = vpop.f32.mrb[0].mxu0
        %v711 = vadd.f32 0.0, %v710
        %v712 = vpop.f32.mrb[0].mxu0
        %v713 = vadd.f32 0.0, %v712
        %714 = vmatprep.mubr.f32.mxu0 0.0
        %715 = vmatmul.mubr.f32.gmra.mrb[0].mxu0 %v412
        %v716 = vpop.f32.mrb[0].mxu0
        %v717 = vadd.f32 0.0, %v716
        %v718 = vpop.f32.mrb[0].mxu0
        %v719 = vadd.f32 0.0, %v718
        %720 = vmatprep.mubr.f32.mxu0 0.0
        %721 = vmatmul.mubr.f32.gmra.mrb[0].mxu0 %v415
        %v722 = vpop.f32.mrb[0].mxu0
        %v723 = vadd.f32 0.0, %v722
        %v724 = vpop.f32.mrb[0].mxu0
        %v725 = vadd.f32 0.0, %v724
        %726 = vmatprep.mubr.f32.mxu0 0.0
        %727 = vmatmul.mubr.f32.gmra.mrb[0].mxu0 %v418
        %v728 = vpop.f32.mrb[0].mxu0
        %v729 = vadd.f32 0.0, %v728
        %v730 = vpop.f32.mrb[0].mxu0
        %v731 = vadd.f32 0.0, %v730
        %732 = vmatprep.mubr.f32.mxu0 0.0
        %733 = vmatmul.mubr.f32.gmra.mrb[0].mxu0 %v421
        %v734 = vpop.f32.mrb[0].mxu0
        %v735 = vadd.f32 0.0, %v734
        %v736 = vpop.f32.mrb[0].mxu0
        %v737 = vadd.f32 0.0, %v736
        %738 = vmatprep.mubr.f32.mxu0 0.0
        %739 = vmatmul.mubr.f32.gmra.mrb[0].mxu0 %v424
        %v740 = vpop.f32.mrb[0].mxu0
        %v741 = vadd.f32 0.0, %v740
        %v742 = vpop.f32.mrb[0].mxu0
        %v743 = vadd.f32 0.0, %v742
        %744 = vmatprep.mubr.f32.mxu0 0.0
        %745 = vmatmul.mubr.f32.gmra.mrb[0].mxu0 %v427
        %v746 = vpop.f32.mrb[0].mxu0
        %v747 = vadd.f32 0.0, %v746
        %v748 = vpop.f32.mrb[0].mxu0
        %v749 = vadd.f32 0.0, %v748
        %750 = vmatprep.mubr.f32.mxu0 0.0
        %751 = vmatmul.mubr.f32.gmra.mrb[0].mxu0 %v430
        %v752 = vpop.f32.mrb[0].mxu0
        %v753 = vadd.f32 0.0, %v752
        %v754 = vpop.f32.mrb[0].mxu0
        %v755 = vadd.f32 0.0, %v754
        %756 = vmatprep.mubr.f32.mxu0 0.0
        %757 = vmatmul.mubr.f32.gmra.mrb[0].mxu0 %v433
        %v758 = vpop.f32.mrb[0].mxu0
        %v759 = vadd.f32 0.0, %v758
        %v760 = vpop.f32.mrb[0].mxu0
        %v761 = vadd.f32 0.0, %v760
        %762 = vmatprep.mubr.f32.mxu0 0.0
        %763 = vmatmul.mubr.f32.gmra.mrb[0].mxu0 %v436
        %v764 = vpop.f32.mrb[0].mxu0
        %v765 = vadd.f32 0.0, %v764
        %v766 = vpop.f32.mrb[0].mxu0
        %v767 = vadd.f32 0.0, %v766
        %768 = vmatprep.mubr.f32.mxu0 0.0
        %769 = vmatmul.mubr.f32.gmra.mrb[0].mxu0 %v439
        %v770 = vpop.f32.mrb[0].mxu0
        %v771 = vadd.f32 0.0, %v770
        %v772 = vpop.f32.mrb[0].mxu0
        %v773 = vadd.f32 0.0, %v772
        %774 = vmatprep.mubr.f32.mxu0 0.0
        %775 = vmatmul.mubr.f32.gmra.mrb[0].mxu0 %v442
        %v776 = vpop.f32.mrb[0].mxu0
        %v777 = vadd.f32 0.0, %v776
        %v778 = vpop.f32.mrb[0].mxu0
        %v779 = vadd.f32 0.0, %v778
        %780 = vmatprep.mubr.f32.mxu0 0.0
        %781 = vmatmul.mubr.f32.gmra.mrb[0].mxu0 %v445
        %v782 = vpop.f32.mrb[0].mxu0
        %v783 = vadd.f32 0.0, %v782
        %v784 = vpop.f32.mrb[0].mxu0
        %v785 = vadd.f32 0.0, %v784
        %786 = vmatprep.mubr.f32.mxu0 0.0
        %787 = vmatmul.mubr.f32.gmra.mrb[0].mxu0 %v448
        %v788 = vpop.f32.mrb[0].mxu0
        %v789 = vadd.f32 0.0, %v788
        %v790 = vpop.f32.mrb[0].mxu0
        %v791 = vadd.f32 0.0, %v790
        %792 = vmatprep.mubr.f32.mxu0 0.0
        %793 = vmatmul.mubr.f32.gmra.mrb[0].mxu0 %v451
        %v794 = vpop.f32.mrb[0].mxu0
        %v795 = vadd.f32 0.0, %v794
        %v796 = vpop.f32.mrb[0].mxu0
        %v797 = vadd.f32 0.0, %v796
        %798 = vmatprep.mubr.f32.mxu0 0.0
        %799 = vmatmul.mubr.f32.gmra.mrb[0].mxu0 %v454
        %v800 = vpop.f32.mrb[0].mxu0
        %v801 = vadd.f32 0.0, %v800
        %v802 = vpop.f32.mrb[0].mxu0
        %v803 = vadd.f32 0.0, %v802
        %804 = vmatprep.mubr.f32.mxu0 0.0
        %805 = vmatmul.mubr.f32.gmra.mrb[0].mxu0 %v457
        %v806 = vpop.f32.mrb[0].mxu0
        %v807 = vadd.f32 0.0, %v806
        %v808 = vpop.f32.mrb[0].mxu0
        %v809 = vadd.f32 0.0, %v808
        %810 = vmatprep.mubr.f32.mxu0 0.0
        %811 = vmatmul.mubr.f32.gmra.mrb[0].mxu0 %v460
        %v812 = vpop.f32.mrb[0].mxu0
        %v813 = vadd.f32 0.0, %v812
        %v814 = vpop.f32.mrb[0].mxu0
        %v815 = vadd.f32 0.0, %v814
        %816 = vmatprep.mubr.f32.mxu0 0.0
        %817 = vmatmul.mubr.f32.gmra.mrb[0].mxu0 %v463
        %v818 = vpop.f32.mrb[0].mxu0
        %v819 = vadd.f32 0.0, %v818
        %v820 = vpop.f32.mrb[0].mxu0
        %v821 = vadd.f32 0.0, %v820
        %822 = vdwg.mxu0
        %v823 = vmul.f32 %v537, %v537
        %v824 = vmul.f32 %v539, %v539
        %v825 = vmul.f32 %v543, %v543
        %v826 = vmul.f32 %v545, %v545
        %v827 = vmul.f32 %v549, %v549
        %v828 = vmul.f32 %v551, %v551
        %v829 = vmul.f32 %v555, %v555
        %v830 = vmul.f32 %v557, %v557
        %v831 = vmul.f32 %v561, %v561
        %v832 = vmul.f32 %v563, %v563
        %v833 = vmul.f32 %v567, %v567
        %v834 = vmul.f32 %v569, %v569
        %v835 = vmul.f32 %v573, %v573
        %v836 = vmul.f32 %v575, %v575
        %v837 = vmul.f32 %v579, %v579
        %v838 = vmul.f32 %v581, %v581
        %v839 = vmul.f32 %v585, %v585
        %v840 = vmul.f32 %v587, %v587
        %v841 = vmul.f32 %v591, %v591
        %v842 = vmul.f32 %v593, %v593
        %v843 = vmul.f32 %v597, %v597
        %v844 = vmul.f32 %v599, %v599
        %v845 = vmul.f32 %v603, %v603
        %v846 = vmul.f32 %v605, %v605
        %v847 = vmul.f32 %v609, %v609
        %v848 = vmul.f32 %v611, %v611
        %v849 = vmul.f32 %v615, %v615
        %v850 = vmul.f32 %v617, %v617
        %v851 = vmul.f32 %v621, %v621
        %v852 = vmul.f32 %v623, %v623
        %v853 = vmul.f32 %v627, %v627
        %v854 = vmul.f32 %v629, %v629
        %v855 = vadd.f32 %v823, %v824
        %856 = vadd.xlane.f32.xlu0 %v855
        %v857 = vpop.xlane.xlu0 %856
        %v858 = vadd.f32 %v825, %v826
        %859 = vadd.xlane.f32.xlu0 %v858
        %v860 = vpop.xlane.xlu0 %859
        %v861 = vadd.f32 %v827, %v828
        %862 = vadd.xlane.f32.xlu0 %v861
        %v863 = vpop.xlane.xlu0 %862
        %v864 = vadd.f32 %v829, %v830
        %865 = vadd.xlane.f32.xlu0 %v864
        %v866 = vpop.xlane.xlu0 %865
        %v867 = vadd.f32 %v831, %v832
        %868 = vadd.xlane.f32.xlu0 %v867
        %v869 = vpop.xlane.xlu0 %868
        %v870 = vadd.f32 %v833, %v834
        %871 = vadd.xlane.f32.xlu0 %v870
        %v872 = vpop.xlane.xlu0 %871
        %v873 = vadd.f32 %v835, %v836
        %874 = vadd.xlane.f32.xlu0 %v873
        %v875 = vpop.xlane.xlu0 %874
        %v876 = vadd.f32 %v837, %v838
        %877 = vadd.xlane.f32.xlu0 %v876
        %v878 = vpop.xlane.xlu0 %877
        %v879 = vadd.f32 %v839, %v840
        %880 = vadd.xlane.f32.xlu0 %v879
        %v881 = vpop.xlane.xlu0 %880
        %v882 = vadd.f32 %v841, %v842
        %883 = vadd.xlane.f32.xlu0 %v882
        %v884 = vpop.xlane.xlu0 %883
        %v885 = vadd.f32 %v843, %v844
        %886 = vadd.xlane.f32.xlu0 %v885
        %v887 = vpop.xlane.xlu0 %886
        %v888 = vadd.f32 %v845, %v846
        %889 = vadd.xlane.f32.xlu0 %v888
        %v890 = vpop.xlane.xlu0 %889
        %v891 = vadd.f32 %v847, %v848
        %892 = vadd.xlane.f32.xlu0 %v891
        %v893 = vpop.xlane.xlu0 %892
        %v894 = vadd.f32 %v849, %v850
        %895 = vadd.xlane.f32.xlu0 %v894
        %v896 = vpop.xlane.xlu0 %895
        %v897 = vadd.f32 %v851, %v852
        %898 = vadd.xlane.f32.xlu0 %v897
        %v899 = vpop.xlane.xlu0 %898
        %v900 = vadd.f32 %v853, %v854
        %901 = vadd.xlane.f32.xlu0 %v900
        %v902 = vpop.xlane.xlu0 %901
        %v903 = vmul.f32 %v633, %v633
        %v904 = vmul.f32 %v635, %v635
        %v905 = vmul.f32 %v639, %v639
        %v906 = vmul.f32 %v641, %v641
        %v907 = vmul.f32 %v645, %v645
        %v908 = vmul.f32 %v647, %v647
        %v909 = vmul.f32 %v651, %v651
        %v910 = vmul.f32 %v653, %v653
        %v911 = vmul.f32 %v657, %v657
        %v912 = vmul.f32 %v659, %v659
        %v913 = vmul.f32 %v663, %v663
        %v914 = vmul.f32 %v665, %v665
        %v915 = vmul.f32 %v669, %v669
        %v916 = vmul.f32 %v671, %v671
        %v917 = vmul.f32 %v675, %v675
        %v918 = vmul.f32 %v677, %v677
        %v919 = vmul.f32 %v681, %v681
        %v920 = vmul.f32 %v683, %v683
        %v921 = vmul.f32 %v687, %v687
        %v922 = vmul.f32 %v689, %v689
        %v923 = vmul.f32 %v693, %v693
        %v924 = vmul.f32 %v695, %v695
        %v925 = vmul.f32 %v699, %v699
        %v926 = vmul.f32 %v701, %v701
        %v927 = vmul.f32 %v705, %v705
        %v928 = vmul.f32 %v707, %v707
        %v929 = vmul.f32 %v711, %v711
        %v930 = vmul.f32 %v713, %v713
        %v931 = vmul.f32 %v717, %v717
        %v932 = vmul.f32 %v719, %v719
        %v933 = vmul.f32 %v723, %v723
        %v934 = vmul.f32 %v725, %v725
        %v935 = vadd.f32 %v903, %v904
        %936 = vadd.xlane.f32.xlu0 %v935
        %v937 = vpop.xlane.xlu0 %936
        %v938 = vadd.f32 %v905, %v906
        %939 = vadd.xlane.f32.xlu0 %v938
        %v940 = vpop.xlane.xlu0 %939
        %v941 = vadd.f32 %v907, %v908
        %942 = vadd.xlane.f32.xlu0 %v941
        %v943 = vpop.xlane.xlu0 %942
        %v944 = vadd.f32 %v909, %v910
        %945 = vadd.xlane.f32.xlu0 %v944
        %v946 = vpop.xlane.xlu0 %945
        %v947 = vadd.f32 %v911, %v912
        %948 = vadd.xlane.f32.xlu0 %v947
        %v949 = vpop.xlane.xlu0 %948
        %v950 = vadd.f32 %v913, %v914
        %951 = vadd.xlane.f32.xlu0 %v950
        %v952 = vpop.xlane.xlu0 %951
        %v953 = vadd.f32 %v915, %v916
        %954 = vadd.xlane.f32.xlu0 %v953
        %v955 = vpop.xlane.xlu0 %954
        %v956 = vadd.f32 %v917, %v918
        %957 = vadd.xlane.f32.xlu0 %v956
        %v958 = vpop.xlane.xlu0 %957
        %v959 = vadd.f32 %v919, %v920
        %960 = vadd.xlane.f32.xlu0 %v959
        %v961 = vpop.xlane.xlu0 %960
        %v962 = vadd.f32 %v921, %v922
        %963 = vadd.xlane.f32.xlu0 %v962
        %v964 = vpop.xlane.xlu0 %963
        %v965 = vadd.f32 %v923, %v924
        %966 = vadd.xlane.f32.xlu0 %v965
        %v967 = vpop.xlane.xlu0 %966
        %v968 = vadd.f32 %v925, %v926
        %969 = vadd.xlane.f32.xlu0 %v968
        %v970 = vpop.xlane.xlu0 %969
        %v971 = vadd.f32 %v927, %v928
        %972 = vadd.xlane.f32.xlu0 %v971
        %v973 = vpop.xlane.xlu0 %972
        %v974 = vadd.f32 %v929, %v930
        %975 = vadd.xlane.f32.xlu0 %v974
        %v976 = vpop.xlane.xlu0 %975
        %v977 = vadd.f32 %v931, %v932
        %978 = vadd.xlane.f32.xlu0 %v977
        %v979 = vpop.xlane.xlu0 %978
        %v980 = vadd.f32 %v933, %v934
        %981 = vadd.xlane.f32.xlu0 %v980
        %v982 = vpop.xlane.xlu0 %981
        %v983 = vmax.f32 %v937, 1e-24
        %v984 = vmax.f32 %v940, 1e-24
        %v985 = vmax.f32 %v943, 1e-24
        %v986 = vmax.f32 %v946, 1e-24
        %v987 = vmax.f32 %v949, 1e-24
        %v988 = vmax.f32 %v952, 1e-24
        %v989 = vmax.f32 %v955, 1e-24
        %v990 = vmax.f32 %v958, 1e-24
        %v991 = vmax.f32 %v961, 1e-24
        %v992 = vmax.f32 %v964, 1e-24
        %v993 = vmax.f32 %v967, 1e-24
        %v994 = vmax.f32 %v970, 1e-24
        %v995 = vmax.f32 %v973, 1e-24
        %v996 = vmax.f32 %v976, 1e-24
        %v997 = vmax.f32 %v979, 1e-24
        %v998 = vmax.f32 %v982, 1e-24
        %v999 = vrsqrt.pop %v983
        %v1000 = vrsqrt.pop %v984
        %v1001 = vrsqrt.pop %v985
        %v1002 = vrsqrt.pop %v986
        %v1003 = vrsqrt.pop %v987
        %v1004 = vrsqrt.pop %v988
        %v1005 = vrsqrt.pop %v989
        %v1006 = vrsqrt.pop %v990
        %v1007 = vrsqrt.pop %v991
        %v1008 = vrsqrt.pop %v992
        %v1009 = vrsqrt.pop %v993
        %v1010 = vrsqrt.pop %v994
        %v1011 = vrsqrt.pop %v995
        %v1012 = vrsqrt.pop %v996
        %v1013 = vrsqrt.pop %v997
        %v1014 = vrsqrt.pop %v998
        %v1015 = vmul.f32 %v633, %v999
        %v1016 = vmul.f32 %v635, %v999
        %v1017 = vmul.f32 %v639, %v1000
        %v1018 = vmul.f32 %v641, %v1000
        %v1019 = vmul.f32 %v645, %v1001
        %v1020 = vmul.f32 %v647, %v1001
        %v1021 = vmul.f32 %v651, %v1002
        %v1022 = vmul.f32 %v653, %v1002
        %v1023 = vmul.f32 %v657, %v1003
        %v1024 = vmul.f32 %v659, %v1003
        %v1025 = vmul.f32 %v663, %v1004
        %v1026 = vmul.f32 %v665, %v1004
        %v1027 = vmul.f32 %v669, %v1005
        %v1028 = vmul.f32 %v671, %v1005
        %v1029 = vmul.f32 %v675, %v1006
        %v1030 = vmul.f32 %v677, %v1006
        %v1031 = vmul.f32 %v681, %v1007
        %v1032 = vmul.f32 %v683, %v1007
        %v1033 = vmul.f32 %v687, %v1008
        %v1034 = vmul.f32 %v689, %v1008
        %v1035 = vmul.f32 %v693, %v1009
        %v1036 = vmul.f32 %v695, %v1009
        %v1037 = vmul.f32 %v699, %v1010
        %v1038 = vmul.f32 %v701, %v1010
        %v1039 = vmul.f32 %v705, %v1011
        %v1040 = vmul.f32 %v707, %v1011
        %v1041 = vmul.f32 %v711, %v1012
        %v1042 = vmul.f32 %v713, %v1012
        %v1043 = vmul.f32 %v717, %v1013
        %v1044 = vmul.f32 %v719, %v1013
        %v1045 = vmul.f32 %v723, %v1014
        %v1046 = vmul.f32 %v725, %v1014
        %v1047 = vld [vmem:[%s267] sm:$0xf]
        %v1049 = vsel %vm465, %v1047, 0
        %1051 = vmatprep.subr.mxu0 0.0
        %1052 = vmatpush1.msra.mxu0 %v1049
        %1053 = vmatprep.subr.mxu0 0.0
        %1054 = vmatpush1.msra.mxu0 0.0
        %1055 = vmatprep.subr.mxu0 0.0
        %1056 = vmatpush1.msra.mxu0 0.0
        %1057 = vmatprep.subr.mxu0 0.0
        %1058 = vmatpush1.msra.mxu0 0.0
        %1059 = vmatprep.subr.mxu0 0.0
        %1060 = vmatpush1.msra.mxu0 0.0
        %1061 = vmatprep.subr.mxu0 0.0
        %1062 = vmatpush1.msra.mxu0 0.0
        %1063 = vmatprep.subr.mxu0 0.0
        %1064 = vmatpush1.msra.mxu0 0.0
        %1065 = vmatprep.subr.mxu0 0.0
        %1066 = vmatpush1.msra.mxu0 0.0
        %1067 = vmatprep.subr.mxu0 0.0
        %1068 = vmatpush1.msra.mxu0 0.0
        %1069 = vmatprep.subr.mxu0 0.0
        %1070 = vmatpush1.msra.mxu0 0.0
        %1071 = vmatprep.subr.mxu0 0.0
        %1072 = vmatpush1.msra.mxu0 0.0
        %1073 = vmatprep.subr.mxu0 0.0
        %1074 = vmatpush1.msra.mxu0 0.0
        %1075 = vmatprep.subr.mxu0 0.0
        %1076 = vmatpush1.msra.mxu0 0.0
        %1077 = vmatprep.subr.mxu0 0.0
        %1078 = vmatpush1.msra.mxu0 0.0
        %1079 = vmatprep.subr.mxu0 0.0
        %1080 = vmatpush1.msra.mxu0 0.0
        %1081 = vmatprep.subr.mxu0 0.0
        %1082 = vmatpush1.msra.mxu0 0.0
        %1083 = vmatprep.subr.mxu0 0.0
        %1084 = vmatpush1.msra.mxu0 0.0
        %1085 = vmatprep.subr.mxu0 0.0
        %1086 = vmatpush1.msra.mxu0 0.0
        %1087 = vmatprep.subr.mxu0 0.0
        %1088 = vmatpush1.msra.mxu0 0.0
        %1089 = vmatprep.subr.mxu0 0.0
        %1090 = vmatpush1.msra.mxu0 0.0
        %1091 = vmatprep.subr.mxu0 0.0
        %1092 = vmatpush1.msra.mxu0 0.0
        %1093 = vmatprep.subr.mxu0 0.0
        %1094 = vmatpush1.msra.mxu0 0.0
        %1095 = vmatprep.subr.mxu0 0.0
        %1096 = vmatpush1.msra.mxu0 0.0
        %1097 = vmatprep.subr.mxu0 0.0
        %1098 = vmatpush1.msra.mxu0 0.0
        %1099 = vmatprep.subr.mxu0 0.0
        %1100 = vmatpush1.msra.mxu0 0.0
        %1101 = vmatprep.subr.mxu0 0.0
        %1102 = vmatpush1.msra.mxu0 0.0
        %1103 = vmatprep.subr.mxu0 0.0
        %1104 = vmatpush1.msra.mxu0 0.0
        %1105 = vmatprep.subr.mxu0 0.0
        %1106 = vmatpush1.msra.mxu0 0.0
        %1107 = vmatprep.subr.mxu0 0.0
        %1108 = vmatpush1.msra.mxu0 0.0
        %1109 = vmatprep.subr.mxu0 0.0
        %1110 = vmatpush1.msra.mxu0 0.0
        %1111 = vmatprep.subr.mxu0 0.0
        %1112 = vmatpush1.msra.mxu0 0.0
        %1113 = vmatprep.subr.mxu0 0.0
        %1114 = vmatpush1.msra.mxu0 0.0
        %1115 = vmatprep.mubr.f32.mxu0 0.0
        %1116 = vmatmul.mubr.f32.gmra.mrb[0].mxu0 %v322
        %v1117 = vpop.f32.mrb[0].mxu0
        %v1118 = vadd.f32 0.0, %v1117
        %v1119 = vpop.f32.mrb[0].mxu0
        %1120 = vmatprep.mubr.f32.mxu0 0.0
        %1121 = vmatmul.mubr.f32.gmra.mrb[0].mxu0 %v325
        %v1122 = vpop.f32.mrb[0].mxu0
        %v1123 = vadd.f32 0.0, %v1122
        %v1124 = vpop.f32.mrb[0].mxu0
        %1125 = vmatprep.mubr.f32.mxu0 0.0
        %1126 = vmatmul.mubr.f32.gmra.mrb[0].mxu0 %v328
        %v1127 = vpop.f32.mrb[0].mxu0
        %v1128 = vadd.f32 0.0, %v1127
        %v1129 = vpop.f32.mrb[0].mxu0
        %1130 = vmatprep.mubr.f32.mxu0 0.0
        %1131 = vmatmul.mubr.f32.gmra.mrb[0].mxu0 %v331
        %v1132 = vpop.f32.mrb[0].mxu0
        %v1133 = vadd.f32 0.0, %v1132
        %v1134 = vpop.f32.mrb[0].mxu0
        %1135 = vmatprep.mubr.f32.mxu0 0.0
        %1136 = vmatmul.mubr.f32.gmra.mrb[0].mxu0 %v334
        %v1137 = vpop.f32.mrb[0].mxu0
        %v1138 = vadd.f32 0.0, %v1137
        %v1139 = vpop.f32.mrb[0].mxu0
        %1140 = vmatprep.mubr.f32.mxu0 0.0
        %1141 = vmatmul.mubr.f32.gmra.mrb[0].mxu0 %v337
        %v1142 = vpop.f32.mrb[0].mxu0
        %v1143 = vadd.f32 0.0, %v1142
        %v1144 = vpop.f32.mrb[0].mxu0
        %1145 = vmatprep.mubr.f32.mxu0 0.0
        %1146 = vmatmul.mubr.f32.gmra.mrb[0].mxu0 %v340
        %v1147 = vpop.f32.mrb[0].mxu0
        %v1148 = vadd.f32 0.0, %v1147
        %v1149 = vpop.f32.mrb[0].mxu0
        %1150 = vmatprep.mubr.f32.mxu0 0.0
        %1151 = vmatmul.mubr.f32.gmra.mrb[0].mxu0 %v343
        %v1152 = vpop.f32.mrb[0].mxu0
        %v1153 = vadd.f32 0.0, %v1152
        %v1154 = vpop.f32.mrb[0].mxu0
        %1155 = vmatprep.mubr.f32.mxu0 0.0
        %1156 = vmatmul.mubr.f32.gmra.mrb[0].mxu0 %v346
        %v1157 = vpop.f32.mrb[0].mxu0
        %v1158 = vadd.f32 0.0, %v1157
        %v1159 = vpop.f32.mrb[0].mxu0
        %1160 = vmatprep.mubr.f32.mxu0 0.0
        %1161 = vmatmul.mubr.f32.gmra.mrb[0].mxu0 %v349
        %v1162 = vpop.f32.mrb[0].mxu0
        %v1163 = vadd.f32 0.0, %v1162
        %v1164 = vpop.f32.mrb[0].mxu0
        %1165 = vmatprep.mubr.f32.mxu0 0.0
        %1166 = vmatmul.mubr.f32.gmra.mrb[0].mxu0 %v352
        %v1167 = vpop.f32.mrb[0].mxu0
        %v1168 = vadd.f32 0.0, %v1167
        %v1169 = vpop.f32.mrb[0].mxu0
        %1170 = vmatprep.mubr.f32.mxu0 0.0
        %1171 = vmatmul.mubr.f32.gmra.mrb[0].mxu0 %v355
        %v1172 = vpop.f32.mrb[0].mxu0
        %v1173 = vadd.f32 0.0, %v1172
        %v1174 = vpop.f32.mrb[0].mxu0
        %1175 = vmatprep.mubr.f32.mxu0 0.0
        %1176 = vmatmul.mubr.f32.gmra.mrb[0].mxu0 %v358
        %v1177 = vpop.f32.mrb[0].mxu0
        %v1178 = vadd.f32 0.0, %v1177
        %v1179 = vpop.f32.mrb[0].mxu0
        %1180 = vmatprep.mubr.f32.mxu0 0.0
        %1181 = vmatmul.mubr.f32.gmra.mrb[0].mxu0 %v361
        %v1182 = vpop.f32.mrb[0].mxu0
        %v1183 = vadd.f32 0.0, %v1182
        %v1184 = vpop.f32.mrb[0].mxu0
        %1185 = vmatprep.mubr.f32.mxu0 0.0
        %1186 = vmatmul.mubr.f32.gmra.mrb[0].mxu0 %v364
        %v1187 = vpop.f32.mrb[0].mxu0
        %v1188 = vadd.f32 0.0, %v1187
        %v1189 = vpop.f32.mrb[0].mxu0
        %1190 = vmatprep.mubr.f32.mxu0 0.0
        %1191 = vmatmul.mubr.f32.gmra.mrb[0].mxu0 %v367
        %v1192 = vpop.f32.mrb[0].mxu0
        %v1193 = vadd.f32 0.0, %v1192
        %v1194 = vpop.f32.mrb[0].mxu0
        %1195 = vdwg.mxu0
        %v1196 = vmax.f32 %v857, 1e-24
        %v1197 = vmax.f32 %v860, 1e-24
        %v1198 = vmax.f32 %v863, 1e-24
        %v1199 = vmax.f32 %v866, 1e-24
        %v1200 = vmax.f32 %v869, 1e-24
        %v1201 = vmax.f32 %v872, 1e-24
        %v1202 = vmax.f32 %v875, 1e-24
        %v1203 = vmax.f32 %v878, 1e-24
        %v1204 = vmax.f32 %v881, 1e-24
        %v1205 = vmax.f32 %v884, 1e-24
        %v1206 = vmax.f32 %v887, 1e-24
        %v1207 = vmax.f32 %v890, 1e-24
        %v1208 = vmax.f32 %v893, 1e-24
        %v1209 = vmax.f32 %v896, 1e-24
        %v1210 = vmax.f32 %v899, 1e-24
        %v1211 = vmax.f32 %v902, 1e-24
        %v1212 = vrsqrt.pop %v1196
        %v1213 = vrsqrt.pop %v1197
        %v1214 = vrsqrt.pop %v1198
        %v1215 = vrsqrt.pop %v1199
        %v1216 = vrsqrt.pop %v1200
        %v1217 = vrsqrt.pop %v1201
        %v1218 = vrsqrt.pop %v1202
        %v1219 = vrsqrt.pop %v1203
        %v1220 = vrsqrt.pop %v1204
        %v1221 = vrsqrt.pop %v1205
        %v1222 = vrsqrt.pop %v1206
        %v1223 = vrsqrt.pop %v1207
        %v1224 = vrsqrt.pop %v1208
        %v1225 = vrsqrt.pop %v1209
        %v1226 = vrsqrt.pop %v1210
        %v1227 = vrsqrt.pop %v1211
        %v1228 = vmul.f32 %v1212, 10.0
        %v1229 = vmul.f32 %v1213, 10.0
        %v1230 = vmul.f32 %v1214, 10.0
        %v1231 = vmul.f32 %v1215, 10.0
        %v1232 = vmul.f32 %v1216, 10.0
        %v1233 = vmul.f32 %v1217, 10.0
        %v1234 = vmul.f32 %v1218, 10.0
        %v1235 = vmul.f32 %v1219, 10.0
        %v1236 = vmul.f32 %v1220, 10.0
        %v1237 = vmul.f32 %v1221, 10.0
        %v1238 = vmul.f32 %v1222, 10.0
        %v1239 = vmul.f32 %v1223, 10.0
        %v1240 = vmul.f32 %v1224, 10.0
        %v1241 = vmul.f32 %v1225, 10.0
        %v1242 = vmul.f32 %v1226, 10.0
        %v1243 = vmul.f32 %v1227, 10.0
        %v1244 = vmul.f32 %v1118, %v1228
        %v1245 = vmul.f32 %v1123, %v1229
        %v1246 = vmul.f32 %v1128, %v1230
        %v1247 = vmul.f32 %v1133, %v1231
        %v1248 = vmul.f32 %v1138, %v1232
        %v1249 = vmul.f32 %v1143, %v1233
        %v1250 = vmul.f32 %v1148, %v1234
        %v1251 = vmul.f32 %v1153, %v1235
        %v1252 = vmul.f32 %v1158, %v1236
        %v1253 = vmul.f32 %v1163, %v1237
        %v1254 = vmul.f32 %v1168, %v1238
        %v1255 = vmul.f32 %v1173, %v1239
        %v1256 = vmul.f32 %v1178, %v1240
        %v1257 = vmul.f32 %v1183, %v1241
        %v1258 = vmul.f32 %v1188, %v1242
        %v1259 = vmul.f32 %v1193, %v1243
        %v1260 = vpack.c.bf16 %v1245, %v1244
        %v1261 = vpack.c.bf16 %v1247, %v1246
        %v1262 = vpack.c.bf16 %v1249, %v1248
        %v1263 = vpack.c.bf16 %v1251, %v1250
        %v1264 = vpack.c.bf16 %v1253, %v1252
        %v1265 = vpack.c.bf16 %v1255, %v1254
        %v1266 = vpack.c.bf16 %v1257, %v1256
        %v1267 = vpack.c.bf16 %v1259, %v1258
        %v1268 = vpack.c.bf16 %v1017, %v1015
        %v1269 = vpack.c.bf16 %v1018, %v1016
        %v1270 = vpack.c.bf16 %v1021, %v1019
        %v1271 = vpack.c.bf16 %v1022, %v1020
        %v1272 = vpack.c.bf16 %v1025, %v1023
        %v1273 = vpack.c.bf16 %v1026, %v1024
        %v1274 = vpack.c.bf16 %v1029, %v1027
        %v1275 = vpack.c.bf16 %v1030, %v1028
        %v1276 = vpack.c.bf16 %v1033, %v1031
        %v1277 = vpack.c.bf16 %v1034, %v1032
        %v1278 = vpack.c.bf16 %v1037, %v1035
        %v1279 = vpack.c.bf16 %v1038, %v1036
        %v1280 = vpack.c.bf16 %v1041, %v1039
        %v1281 = vpack.c.bf16 %v1042, %v1040
        %v1282 = vpack.c.bf16 %v1045, %v1043
        %v1283 = vpack.c.bf16 %v1046, %v1044
        %1284 = vxpose.xlu0.c.b16.start [1/8] %v1260, 128
        %1285 = vxpose.xlu0.c.b16.cont [2/8] %v1261, 128
        %1286 = vxpose.xlu0.c.b16.cont [3/8] 0, 128
        %1287 = vxpose.xlu0.c.b16.cont [4/8] 0, 128
        %1288 = vxpose.xlu0.c.b16.cont [5/8] 0, 128
        %1289 = vxpose.xlu0.c.b16.cont [6/8] 0, 128
        %1290 = vxpose.xlu0.c.b16.cont [7/8] 0, 128
        %1291 = vxpose.xlu0.c.b16.end [8/8] 0, 128
        %v1292 = vpop.trf.xlu0
        %v1293 = vpop.trf.xlu0
        %v1294 = vpop.trf.xlu0
        %v1295 = vpop.trf.xlu0
        %v1296 = vpop.trf.xlu0
        %v1297 = vpop.trf.xlu0
        %v1298 = vpop.trf.xlu0
        %v1299 = vpop.trf.xlu0
        %vm1300 = vcmask 261120
        %v1302 = vsel %vm1300, %v1292, 0
        %v1305 = vsel %vm1300, %v1293, 0
        %v1308 = vsel %vm1300, %v1294, 0
        %v1311 = vsel %vm1300, %v1295, 0
        %v1314 = vsel %vm1300, %v1296, 0
        %v1317 = vsel %vm1300, %v1297, 0
        %v1320 = vsel %vm1300, %v1298, 0
        %v1323 = vsel %vm1300, %v1299, 0
        %1325 = vmatprep.subr.bf16.mxu0 %v1269
        %1326 = vmatpush1.bf16.msra.mxu0 %v1268
        %1327 = vmatprep.subr.bf16.mxu0 %v1271
        %1328 = vmatpush1.bf16.msra.mxu0 %v1270
        %1329 = vmatprep.subr.bf16.mxu0 0
        %1330 = vmatpush1.bf16.msra.mxu0 0
        %1331 = vmatprep.subr.bf16.mxu0 0
        %1332 = vmatpush1.bf16.msra.mxu0 0
        %1333 = vmatprep.subr.bf16.mxu0 0
        %1334 = vmatpush1.bf16.msra.mxu0 0
        %1335 = vmatprep.subr.bf16.mxu0 0
        %1336 = vmatpush1.bf16.msra.mxu0 0
        %1337 = vmatprep.subr.bf16.mxu0 0
        %1338 = vmatpush1.bf16.msra.mxu0 0
        %1339 = vmatprep.subr.bf16.mxu0 0
        %1340 = vmatpush1.bf16.msra.mxu0 0
        %1341 = vmatprep.subr.bf16.mxu0 0
        %1342 = vmatpush1.bf16.msra.mxu0 0
        %1343 = vmatprep.subr.bf16.mxu0 0
        %1344 = vmatpush1.bf16.msra.mxu0 0
        %1345 = vmatprep.subr.bf16.mxu0 0
        %1346 = vmatpush1.bf16.msra.mxu0 0
        %1347 = vmatprep.subr.bf16.mxu0 0
        %1348 = vmatpush1.bf16.msra.mxu0 0
        %1349 = vmatprep.subr.bf16.mxu0 0
        %1350 = vmatpush1.bf16.msra.mxu0 0
        %1351 = vmatprep.subr.bf16.mxu0 0
        %1352 = vmatpush1.bf16.msra.mxu0 0
        %1353 = vmatprep.subr.bf16.mxu0 0
        %1354 = vmatpush1.bf16.msra.mxu0 0
        %1355 = vmatprep.subr.bf16.mxu0 0
        %1356 = vmatpush1.bf16.msra.mxu0 0
        %1357 = vmatprep.mubr.bf16.mxu0 0
        %1358 = vmatmul.mubr.bf16.gmra.mrb[0].mxu0 %v1302
        %v1359 = vpop.f32.mrb[0].mxu0
        %v1360 = vadd.f32 0.0, %v1359
        %v1361 = vpop.f32.mrb[0].mxu0
        %v1362 = vadd.f32 0.0, %v1361
        %v1363 = vpop.f32.mrb[0].mxu0
        %v1364 = vadd.f32 0.0, %v1363
        %v1365 = vpop.f32.mrb[0].mxu0
        %v1366 = vadd.f32 0.0, %v1365
        %1367 = vmatprep.mubr.bf16.mxu0 0
        %1368 = vmatmul.mubr.bf16.gmra.mrb[0].mxu0 %v1305
        %v1369 = vpop.f32.mrb[0].mxu0
        %v1370 = vadd.f32 0.0, %v1369
        %v1371 = vpop.f32.mrb[0].mxu0
        %v1372 = vadd.f32 0.0, %v1371
        %v1373 = vpop.f32.mrb[0].mxu0
        %v1374 = vadd.f32 0.0, %v1373
        %v1375 = vpop.f32.mrb[0].mxu0
        %v1376 = vadd.f32 0.0, %v1375
        %1377 = vmatprep.mubr.bf16.mxu0 0
        %1378 = vmatmul.mubr.bf16.gmra.mrb[0].mxu0 %v1308
        %v1379 = vpop.f32.mrb[0].mxu0
        %v1380 = vadd.f32 0.0, %v1379
        %v1381 = vpop.f32.mrb[0].mxu0
        %v1382 = vadd.f32 0.0, %v1381
        %v1383 = vpop.f32.mrb[0].mxu0
        %v1384 = vadd.f32 0.0, %v1383
        %v1385 = vpop.f32.mrb[0].mxu0
        %v1386 = vadd.f32 0.0, %v1385
        %1387 = vmatprep.mubr.bf16.mxu0 0
        %1388 = vmatmul.mubr.bf16.gmra.mrb[0].mxu0 %v1311
        %v1389 = vpop.f32.mrb[0].mxu0
        %v1390 = vadd.f32 0.0, %v1389
        %v1391 = vpop.f32.mrb[0].mxu0
        %v1392 = vadd.f32 0.0, %v1391
        %v1393 = vpop.f32.mrb[0].mxu0
        %v1394 = vadd.f32 0.0, %v1393
        %v1395 = vpop.f32.mrb[0].mxu0
        %v1396 = vadd.f32 0.0, %v1395
        %1397 = vmatprep.mubr.bf16.mxu0 0
        %1398 = vmatmul.mubr.bf16.gmra.mrb[0].mxu0 %v1314
        %v1399 = vpop.f32.mrb[0].mxu0
        %v1400 = vadd.f32 0.0, %v1399
        %v1401 = vpop.f32.mrb[0].mxu0
        %v1402 = vadd.f32 0.0, %v1401
        %v1403 = vpop.f32.mrb[0].mxu0
        %v1404 = vadd.f32 0.0, %v1403
        %v1405 = vpop.f32.mrb[0].mxu0
        %v1406 = vadd.f32 0.0, %v1405
        %1407 = vmatprep.mubr.bf16.mxu0 0
        %1408 = vmatmul.mubr.bf16.gmra.mrb[0].mxu0 %v1317
        %v1409 = vpop.f32.mrb[0].mxu0
        %v1410 = vadd.f32 0.0, %v1409
        %v1411 = vpop.f32.mrb[0].mxu0
        %v1412 = vadd.f32 0.0, %v1411
        %v1413 = vpop.f32.mrb[0].mxu0
        %v1414 = vadd.f32 0.0, %v1413
        %v1415 = vpop.f32.mrb[0].mxu0
        %v1416 = vadd.f32 0.0, %v1415
        %1417 = vmatprep.mubr.bf16.mxu0 0
        %1418 = vmatmul.mubr.bf16.gmra.mrb[0].mxu0 %v1320
        %v1419 = vpop.f32.mrb[0].mxu0
        %v1420 = vadd.f32 0.0, %v1419
        %v1421 = vpop.f32.mrb[0].mxu0
        %v1422 = vadd.f32 0.0, %v1421
        %v1423 = vpop.f32.mrb[0].mxu0
        %v1424 = vadd.f32 0.0, %v1423
        %v1425 = vpop.f32.mrb[0].mxu0
        %v1426 = vadd.f32 0.0, %v1425
        %1427 = vmatprep.mubr.bf16.mxu0 0
        %1428 = vmatmul.mubr.bf16.gmra.mrb[0].mxu0 %v1323
        %v1429 = vpop.f32.mrb[0].mxu0
        %v1430 = vadd.f32 0.0, %v1429
        %v1431 = vpop.f32.mrb[0].mxu0
        %v1432 = vadd.f32 0.0, %v1431
        %v1433 = vpop.f32.mrb[0].mxu0
        %v1434 = vadd.f32 0.0, %v1433
        %v1435 = vpop.f32.mrb[0].mxu0
        %v1436 = vadd.f32 0.0, %v1435
        %1437 = vdwg.mxu0
        %1438 = vxpose.xlu0.c.b16.start [1/8] %v1262, 128
        %1439 = vxpose.xlu0.c.b16.cont [2/8] %v1263, 128
        %1440 = vxpose.xlu0.c.b16.cont [3/8] 0, 128
        %1441 = vxpose.xlu0.c.b16.cont [4/8] 0, 128
        %1442 = vxpose.xlu0.c.b16.cont [5/8] 0, 128
        %1443 = vxpose.xlu0.c.b16.cont [6/8] 0, 128
        %1444 = vxpose.xlu0.c.b16.cont [7/8] 0, 128
        %1445 = vxpose.xlu0.c.b16.end [8/8] 0, 128
        %v1446 = vpop.trf.xlu0
        %v1447 = vpop.trf.xlu0
        %v1448 = vpop.trf.xlu0
        %v1449 = vpop.trf.xlu0
        %v1450 = vpop.trf.xlu0
        %v1451 = vpop.trf.xlu0
        %v1452 = vpop.trf.xlu0
        %v1453 = vpop.trf.xlu0
        %v1455 = vsel %vm1300, %v1446, 0
        %v1458 = vsel %vm1300, %v1447, 0
        %v1461 = vsel %vm1300, %v1448, 0
        %v1464 = vsel %vm1300, %v1449, 0
        %v1467 = vsel %vm1300, %v1450, 0
        %v1470 = vsel %vm1300, %v1451, 0
        %v1473 = vsel %vm1300, %v1452, 0
        %v1476 = vsel %vm1300, %v1453, 0
        %1478 = vmatprep.subr.bf16.mxu0 %v1273
        %1479 = vmatpush1.bf16.msra.mxu0 %v1272
        %1480 = vmatprep.subr.bf16.mxu0 %v1275
        %1481 = vmatpush1.bf16.msra.mxu0 %v1274
        %1482 = vmatprep.subr.bf16.mxu0 0
        %1483 = vmatpush1.bf16.msra.mxu0 0
        %1484 = vmatprep.subr.bf16.mxu0 0
        %1485 = vmatpush1.bf16.msra.mxu0 0
        %1486 = vmatprep.subr.bf16.mxu0 0
        %1487 = vmatpush1.bf16.msra.mxu0 0
        %1488 = vmatprep.subr.bf16.mxu0 0
        %1489 = vmatpush1.bf16.msra.mxu0 0
        %1490 = vmatprep.subr.bf16.mxu0 0
        %1491 = vmatpush1.bf16.msra.mxu0 0
        %1492 = vmatprep.subr.bf16.mxu0 0
        %1493 = vmatpush1.bf16.msra.mxu0 0
        %1494 = vmatprep.subr.bf16.mxu0 0
        %1495 = vmatpush1.bf16.msra.mxu0 0
        %1496 = vmatprep.subr.bf16.mxu0 0
        %1497 = vmatpush1.bf16.msra.mxu0 0
        %1498 = vmatprep.subr.bf16.mxu0 0
        %1499 = vmatpush1.bf16.msra.mxu0 0
        %1500 = vmatprep.subr.bf16.mxu0 0
        %1501 = vmatpush1.bf16.msra.mxu0 0
        %1502 = vmatprep.subr.bf16.mxu0 0
        %1503 = vmatpush1.bf16.msra.mxu0 0
        %1504 = vmatprep.subr.bf16.mxu0 0
        %1505 = vmatpush1.bf16.msra.mxu0 0
        %1506 = vmatprep.subr.bf16.mxu0 0
        %1507 = vmatpush1.bf16.msra.mxu0 0
        %1508 = vmatprep.subr.bf16.mxu0 0
        %1509 = vmatpush1.bf16.msra.mxu0 0
        %1510 = vmatprep.mubr.bf16.mxu0 0
        %1511 = vmatmul.mubr.bf16.gmra.mrb[0].mxu0 %v1455
        %v1512 = vpop.f32.mrb[0].mxu0
        %v1513 = vadd.f32 0.0, %v1512
        %v1514 = vpop.f32.mrb[0].mxu0
        %v1515 = vadd.f32 0.0, %v1514
        %v1516 = vpop.f32.mrb[0].mxu0
        %v1517 = vadd.f32 0.0, %v1516
        %v1518 = vpop.f32.mrb[0].mxu0
        %v1519 = vadd.f32 0.0, %v1518
        %1520 = vmatprep.mubr.bf16.mxu0 0
        %1521 = vmatmul.mubr.bf16.gmra.mrb[0].mxu0 %v1458
        %v1522 = vpop.f32.mrb[0].mxu0
        %v1523 = vadd.f32 0.0, %v1522
        %v1524 = vpop.f32.mrb[0].mxu0
        %v1525 = vadd.f32 0.0, %v1524
        %v1526 = vpop.f32.mrb[0].mxu0
        %v1527 = vadd.f32 0.0, %v1526
        %v1528 = vpop.f32.mrb[0].mxu0
        %v1529 = vadd.f32 0.0, %v1528
        %1530 = vmatprep.mubr.bf16.mxu0 0
        %1531 = vmatmul.mubr.bf16.gmra.mrb[0].mxu0 %v1461
        %v1532 = vpop.f32.mrb[0].mxu0
        %v1533 = vadd.f32 0.0, %v1532
        %v1534 = vpop.f32.mrb[0].mxu0
        %v1535 = vadd.f32 0.0, %v1534
        %v1536 = vpop.f32.mrb[0].mxu0
        %v1537 = vadd.f32 0.0, %v1536
        %v1538 = vpop.f32.mrb[0].mxu0
        %v1539 = vadd.f32 0.0, %v1538
        %1540 = vmatprep.mubr.bf16.mxu0 0
        %1541 = vmatmul.mubr.bf16.gmra.mrb[0].mxu0 %v1464
        %v1542 = vpop.f32.mrb[0].mxu0
        %v1543 = vadd.f32 0.0, %v1542
        %v1544 = vpop.f32.mrb[0].mxu0
        %v1545 = vadd.f32 0.0, %v1544
        %v1546 = vpop.f32.mrb[0].mxu0
        %v1547 = vadd.f32 0.0, %v1546
        %v1548 = vpop.f32.mrb[0].mxu0
        %v1549 = vadd.f32 0.0, %v1548
        %1550 = vmatprep.mubr.bf16.mxu0 0
        %1551 = vmatmul.mubr.bf16.gmra.mrb[0].mxu0 %v1467
        %v1552 = vpop.f32.mrb[0].mxu0
        %v1553 = vadd.f32 0.0, %v1552
        %v1554 = vpop.f32.mrb[0].mxu0
        %v1555 = vadd.f32 0.0, %v1554
        %v1556 = vpop.f32.mrb[0].mxu0
        %v1557 = vadd.f32 0.0, %v1556
        %v1558 = vpop.f32.mrb[0].mxu0
        %v1559 = vadd.f32 0.0, %v1558
        %1560 = vmatprep.mubr.bf16.mxu0 0
        %1561 = vmatmul.mubr.bf16.gmra.mrb[0].mxu0 %v1470
        %v1562 = vpop.f32.mrb[0].mxu0
        %v1563 = vadd.f32 0.0, %v1562
        %v1564 = vpop.f32.mrb[0].mxu0
        %v1565 = vadd.f32 0.0, %v1564
        %v1566 = vpop.f32.mrb[0].mxu0
        %v1567 = vadd.f32 0.0, %v1566
        %v1568 = vpop.f32.mrb[0].mxu0
        %v1569 = vadd.f32 0.0, %v1568
        %1570 = vmatprep.mubr.bf16.mxu0 0
        %1571 = vmatmul.mubr.bf16.gmra.mrb[0].mxu0 %v1473
        %v1572 = vpop.f32.mrb[0].mxu0
        %v1573 = vadd.f32 0.0, %v1572
        %v1574 = vpop.f32.mrb[0].mxu0
        %v1575 = vadd.f32 0.0, %v1574
        %v1576 = vpop.f32.mrb[0].mxu0
        %v1577 = vadd.f32 0.0, %v1576
        %v1578 = vpop.f32.mrb[0].mxu0
        %v1579 = vadd.f32 0.0, %v1578
        %1580 = vmatprep.mubr.bf16.mxu0 0
        %1581 = vmatmul.mubr.bf16.gmra.mrb[0].mxu0 %v1476
        %v1582 = vpop.f32.mrb[0].mxu0
        %v1583 = vadd.f32 0.0, %v1582
        %v1584 = vpop.f32.mrb[0].mxu0
        %v1585 = vadd.f32 0.0, %v1584
        %v1586 = vpop.f32.mrb[0].mxu0
        %v1587 = vadd.f32 0.0, %v1586
        %v1588 = vpop.f32.mrb[0].mxu0
        %v1589 = vadd.f32 0.0, %v1588
        %1590 = vdwg.mxu0
        %1591 = vxpose.xlu0.c.b16.start [1/8] %v1264, 128
        %1592 = vxpose.xlu0.c.b16.cont [2/8] %v1265, 128
        %1593 = vxpose.xlu0.c.b16.cont [3/8] 0, 128
        %1594 = vxpose.xlu0.c.b16.cont [4/8] 0, 128
        %1595 = vxpose.xlu0.c.b16.cont [5/8] 0, 128
        %1596 = vxpose.xlu0.c.b16.cont [6/8] 0, 128
        %1597 = vxpose.xlu0.c.b16.cont [7/8] 0, 128
        %1598 = vxpose.xlu0.c.b16.end [8/8] 0, 128
        %v1599 = vpop.trf.xlu0
        %v1600 = vpop.trf.xlu0
        %v1601 = vpop.trf.xlu0
        %v1602 = vpop.trf.xlu0
        %v1603 = vpop.trf.xlu0
        %v1604 = vpop.trf.xlu0
        %v1605 = vpop.trf.xlu0
        %v1606 = vpop.trf.xlu0
        %v1608 = vsel %vm1300, %v1599, 0
        %v1611 = vsel %vm1300, %v1600, 0
        %v1614 = vsel %vm1300, %v1601, 0
        %v1617 = vsel %vm1300, %v1602, 0
        %v1620 = vsel %vm1300, %v1603, 0
        %v1623 = vsel %vm1300, %v1604, 0
        %v1626 = vsel %vm1300, %v1605, 0
        %v1629 = vsel %vm1300, %v1606, 0
        %1631 = vmatprep.subr.bf16.mxu0 %v1277
        %1632 = vmatpush1.bf16.msra.mxu0 %v1276
        %1633 = vmatprep.subr.bf16.mxu0 %v1279
        %1634 = vmatpush1.bf16.msra.mxu0 %v1278
        %1635 = vmatprep.subr.bf16.mxu0 0
        %1636 = vmatpush1.bf16.msra.mxu0 0
        %1637 = vmatprep.subr.bf16.mxu0 0
        %1638 = vmatpush1.bf16.msra.mxu0 0
        %1639 = vmatprep.subr.bf16.mxu0 0
        %1640 = vmatpush1.bf16.msra.mxu0 0
        %1641 = vmatprep.subr.bf16.mxu0 0
        %1642 = vmatpush1.bf16.msra.mxu0 0
        %1643 = vmatprep.subr.bf16.mxu0 0
        %1644 = vmatpush1.bf16.msra.mxu0 0
        %1645 = vmatprep.subr.bf16.mxu0 0
        %1646 = vmatpush1.bf16.msra.mxu0 0
        %1647 = vmatprep.subr.bf16.mxu0 0
        %1648 = vmatpush1.bf16.msra.mxu0 0
        %1649 = vmatprep.subr.bf16.mxu0 0
        %1650 = vmatpush1.bf16.msra.mxu0 0
        %1651 = vmatprep.subr.bf16.mxu0 0
        %1652 = vmatpush1.bf16.msra.mxu0 0
        %1653 = vmatprep.subr.bf16.mxu0 0
        %1654 = vmatpush1.bf16.msra.mxu0 0
        %1655 = vmatprep.subr.bf16.mxu0 0
        %1656 = vmatpush1.bf16.msra.mxu0 0
        %1657 = vmatprep.subr.bf16.mxu0 0
        %1658 = vmatpush1.bf16.msra.mxu0 0
        %1659 = vmatprep.subr.bf16.mxu0 0
        %1660 = vmatpush1.bf16.msra.mxu0 0
        %1661 = vmatprep.subr.bf16.mxu0 0
        %1662 = vmatpush1.bf16.msra.mxu0 0
        %1663 = vmatprep.mubr.bf16.mxu0 0
        %1664 = vmatmul.mubr.bf16.gmra.mrb[0].mxu0 %v1608
        %v1665 = vpop.f32.mrb[0].mxu0
        %v1666 = vadd.f32 0.0, %v1665
        %v1667 = vpop.f32.mrb[0].mxu0
        %v1668 = vadd.f32 0.0, %v1667
        %v1669 = vpop.f32.mrb[0].mxu0
        %v1670 = vadd.f32 0.0, %v1669
        %v1671 = vpop.f32.mrb[0].mxu0
        %v1672 = vadd.f32 0.0, %v1671
        %1673 = vmatprep.mubr.bf16.mxu0 0
        %1674 = vmatmul.mubr.bf16.gmra.mrb[0].mxu0 %v1611
        %v1675 = vpop.f32.mrb[0].mxu0
        %v1676 = vadd.f32 0.0, %v1675
        %v1677 = vpop.f32.mrb[0].mxu0
        %v1678 = vadd.f32 0.0, %v1677
        %v1679 = vpop.f32.mrb[0].mxu0
        %v1680 = vadd.f32 0.0, %v1679
        %v1681 = vpop.f32.mrb[0].mxu0
        %v1682 = vadd.f32 0.0, %v1681
        %1683 = vmatprep.mubr.bf16.mxu0 0
        %1684 = vmatmul.mubr.bf16.gmra.mrb[0].mxu0 %v1614
        %v1685 = vpop.f32.mrb[0].mxu0
        %v1686 = vadd.f32 0.0, %v1685
        %v1687 = vpop.f32.mrb[0].mxu0
        %v1688 = vadd.f32 0.0, %v1687
        %v1689 = vpop.f32.mrb[0].mxu0
        %v1690 = vadd.f32 0.0, %v1689
        %v1691 = vpop.f32.mrb[0].mxu0
        %v1692 = vadd.f32 0.0, %v1691
        %1693 = vmatprep.mubr.bf16.mxu0 0
        %1694 = vmatmul.mubr.bf16.gmra.mrb[0].mxu0 %v1617
        %v1695 = vpop.f32.mrb[0].mxu0
        %v1696 = vadd.f32 0.0, %v1695
        %v1697 = vpop.f32.mrb[0].mxu0
        %v1698 = vadd.f32 0.0, %v1697
        %v1699 = vpop.f32.mrb[0].mxu0
        %v1700 = vadd.f32 0.0, %v1699
        %v1701 = vpop.f32.mrb[0].mxu0
        %v1702 = vadd.f32 0.0, %v1701
        %1703 = vmatprep.mubr.bf16.mxu0 0
        %1704 = vmatmul.mubr.bf16.gmra.mrb[0].mxu0 %v1620
        %v1705 = vpop.f32.mrb[0].mxu0
        %v1706 = vadd.f32 0.0, %v1705
        %v1707 = vpop.f32.mrb[0].mxu0
        %v1708 = vadd.f32 0.0, %v1707
        %v1709 = vpop.f32.mrb[0].mxu0
        %v1710 = vadd.f32 0.0, %v1709
        %v1711 = vpop.f32.mrb[0].mxu0
        %v1712 = vadd.f32 0.0, %v1711
        %1713 = vmatprep.mubr.bf16.mxu0 0
        %1714 = vmatmul.mubr.bf16.gmra.mrb[0].mxu0 %v1623
        %v1715 = vpop.f32.mrb[0].mxu0
        %v1716 = vadd.f32 0.0, %v1715
        %v1717 = vpop.f32.mrb[0].mxu0
        %v1718 = vadd.f32 0.0, %v1717
        %v1719 = vpop.f32.mrb[0].mxu0
        %v1720 = vadd.f32 0.0, %v1719
        %v1721 = vpop.f32.mrb[0].mxu0
        %v1722 = vadd.f32 0.0, %v1721
        %1723 = vmatprep.mubr.bf16.mxu0 0
        %1724 = vmatmul.mubr.bf16.gmra.mrb[0].mxu0 %v1626
        %v1725 = vpop.f32.mrb[0].mxu0
        %v1726 = vadd.f32 0.0, %v1725
        %v1727 = vpop.f32.mrb[0].mxu0
        %v1728 = vadd.f32 0.0, %v1727
        %v1729 = vpop.f32.mrb[0].mxu0
        %v1730 = vadd.f32 0.0, %v1729
        %v1731 = vpop.f32.mrb[0].mxu0
        %v1732 = vadd.f32 0.0, %v1731
        %1733 = vmatprep.mubr.bf16.mxu0 0
        %1734 = vmatmul.mubr.bf16.gmra.mrb[0].mxu0 %v1629
        %v1735 = vpop.f32.mrb[0].mxu0
        %v1736 = vadd.f32 0.0, %v1735
        %v1737 = vpop.f32.mrb[0].mxu0
        %v1738 = vadd.f32 0.0, %v1737
        %v1739 = vpop.f32.mrb[0].mxu0
        %v1740 = vadd.f32 0.0, %v1739
        %v1741 = vpop.f32.mrb[0].mxu0
        %v1742 = vadd.f32 0.0, %v1741
        %1743 = vdwg.mxu0
        %1744 = vxpose.xlu0.c.b16.start [1/8] %v1266, 128
        %1745 = vxpose.xlu0.c.b16.cont [2/8] %v1267, 128
        %1746 = vxpose.xlu0.c.b16.cont [3/8] 0, 128
        %1747 = vxpose.xlu0.c.b16.cont [4/8] 0, 128
        %1748 = vxpose.xlu0.c.b16.cont [5/8] 0, 128
        %1749 = vxpose.xlu0.c.b16.cont [6/8] 0, 128
        %1750 = vxpose.xlu0.c.b16.cont [7/8] 0, 128
        %1751 = vxpose.xlu0.c.b16.end [8/8] 0, 128
        %v1752 = vpop.trf.xlu0
        %v1753 = vpop.trf.xlu0
        %v1754 = vpop.trf.xlu0
        %v1755 = vpop.trf.xlu0
        %v1756 = vpop.trf.xlu0
        %v1757 = vpop.trf.xlu0
        %v1758 = vpop.trf.xlu0
        %v1759 = vpop.trf.xlu0
        %v1761 = vsel %vm1300, %v1752, 0
        %v1764 = vsel %vm1300, %v1753, 0
        %v1767 = vsel %vm1300, %v1754, 0
        %v1770 = vsel %vm1300, %v1755, 0
        %v1773 = vsel %vm1300, %v1756, 0
        %v1776 = vsel %vm1300, %v1757, 0
        %v1779 = vsel %vm1300, %v1758, 0
        %v1782 = vsel %vm1300, %v1759, 0
        %1784 = vmatprep.subr.bf16.mxu0 %v1281
        %1785 = vmatpush1.bf16.msra.mxu0 %v1280
        %1786 = vmatprep.subr.bf16.mxu0 %v1283
        %1787 = vmatpush1.bf16.msra.mxu0 %v1282
        %1788 = vmatprep.subr.bf16.mxu0 0
        %1789 = vmatpush1.bf16.msra.mxu0 0
        %1790 = vmatprep.subr.bf16.mxu0 0
        %1791 = vmatpush1.bf16.msra.mxu0 0
        %1792 = vmatprep.subr.bf16.mxu0 0
        %1793 = vmatpush1.bf16.msra.mxu0 0
        %1794 = vmatprep.subr.bf16.mxu0 0
        %1795 = vmatpush1.bf16.msra.mxu0 0
        %1796 = vmatprep.subr.bf16.mxu0 0
        %1797 = vmatpush1.bf16.msra.mxu0 0
        %1798 = vmatprep.subr.bf16.mxu0 0
        %1799 = vmatpush1.bf16.msra.mxu0 0
        %1800 = vmatprep.subr.bf16.mxu0 0
        %1801 = vmatpush1.bf16.msra.mxu0 0
        %1802 = vmatprep.subr.bf16.mxu0 0
        %1803 = vmatpush1.bf16.msra.mxu0 0
        %1804 = vmatprep.subr.bf16.mxu0 0
        %1805 = vmatpush1.bf16.msra.mxu0 0
        %1806 = vmatprep.subr.bf16.mxu0 0
        %1807 = vmatpush1.bf16.msra.mxu0 0
        %1808 = vmatprep.subr.bf16.mxu0 0
        %1809 = vmatpush1.bf16.msra.mxu0 0
        %1810 = vmatprep.subr.bf16.mxu0 0
        %1811 = vmatpush1.bf16.msra.mxu0 0
        %1812 = vmatprep.subr.bf16.mxu0 0
        %1813 = vmatpush1.bf16.msra.mxu0 0
        %1814 = vmatprep.subr.bf16.mxu0 0
        %1815 = vmatpush1.bf16.msra.mxu0 0
        %1816 = vmatprep.mubr.bf16.mxu0 0
        %1817 = vmatmul.mubr.bf16.gmra.mrb[0].mxu0 %v1761
        %v1818 = vpop.f32.mrb[0].mxu0
        %v1819 = vadd.f32 0.0, %v1818
        %v1820 = vpop.f32.mrb[0].mxu0
        %v1821 = vadd.f32 0.0, %v1820
        %v1822 = vpop.f32.mrb[0].mxu0
        %v1823 = vadd.f32 0.0, %v1822
        %v1824 = vpop.f32.mrb[0].mxu0
        %v1825 = vadd.f32 0.0, %v1824
        %1826 = vmatprep.mubr.bf16.mxu0 0
        %1827 = vmatmul.mubr.bf16.gmra.mrb[0].mxu0 %v1764
        %v1828 = vpop.f32.mrb[0].mxu0
        %v1829 = vadd.f32 0.0, %v1828
        %v1830 = vpop.f32.mrb[0].mxu0
        %v1831 = vadd.f32 0.0, %v1830
        %v1832 = vpop.f32.mrb[0].mxu0
        %v1833 = vadd.f32 0.0, %v1832
        %v1834 = vpop.f32.mrb[0].mxu0
        %v1835 = vadd.f32 0.0, %v1834
        %1836 = vmatprep.mubr.bf16.mxu0 0
        %1837 = vmatmul.mubr.bf16.gmra.mrb[0].mxu0 %v1767
        %v1838 = vpop.f32.mrb[0].mxu0
        %v1839 = vadd.f32 0.0, %v1838
        %v1840 = vpop.f32.mrb[0].mxu0
        %v1841 = vadd.f32 0.0, %v1840
        %v1842 = vpop.f32.mrb[0].mxu0
        %v1843 = vadd.f32 0.0, %v1842
        %v1844 = vpop.f32.mrb[0].mxu0
        %v1845 = vadd.f32 0.0, %v1844
        %1846 = vmatprep.mubr.bf16.mxu0 0
        %1847 = vmatmul.mubr.bf16.gmra.mrb[0].mxu0 %v1770
        %v1848 = vpop.f32.mrb[0].mxu0
        %v1849 = vadd.f32 0.0, %v1848
        %v1850 = vpop.f32.mrb[0].mxu0
        %v1851 = vadd.f32 0.0, %v1850
        %v1852 = vpop.f32.mrb[0].mxu0
        %v1853 = vadd.f32 0.0, %v1852
        %v1854 = vpop.f32.mrb[0].mxu0
        %v1855 = vadd.f32 0.0, %v1854
        %1856 = vmatprep.mubr.bf16.mxu0 0
        %1857 = vmatmul.mubr.bf16.gmra.mrb[0].mxu0 %v1773
        %v1858 = vpop.f32.mrb[0].mxu0
        %v1859 = vadd.f32 0.0, %v1858
        %v1860 = vpop.f32.mrb[0].mxu0
        %v1861 = vadd.f32 0.0, %v1860
        %v1862 = vpop.f32.mrb[0].mxu0
        %v1863 = vadd.f32 0.0, %v1862
        %v1864 = vpop.f32.mrb[0].mxu0
        %v1865 = vadd.f32 0.0, %v1864
        %1866 = vmatprep.mubr.bf16.mxu0 0
        %1867 = vmatmul.mubr.bf16.gmra.mrb[0].mxu0 %v1776
        %v1868 = vpop.f32.mrb[0].mxu0
        %v1869 = vadd.f32 0.0, %v1868
        %v1870 = vpop.f32.mrb[0].mxu0
        %v1871 = vadd.f32 0.0, %v1870
        %v1872 = vpop.f32.mrb[0].mxu0
        %v1873 = vadd.f32 0.0, %v1872
        %v1874 = vpop.f32.mrb[0].mxu0
        %v1875 = vadd.f32 0.0, %v1874
        %1876 = vmatprep.mubr.bf16.mxu0 0
        %1877 = vmatmul.mubr.bf16.gmra.mrb[0].mxu0 %v1779
        %v1878 = vpop.f32.mrb[0].mxu0
        %v1879 = vadd.f32 0.0, %v1878
        %v1880 = vpop.f32.mrb[0].mxu0
        %v1881 = vadd.f32 0.0, %v1880
        %v1882 = vpop.f32.mrb[0].mxu0
        %v1883 = vadd.f32 0.0, %v1882
        %v1884 = vpop.f32.mrb[0].mxu0
        %v1885 = vadd.f32 0.0, %v1884
        %1886 = vmatprep.mubr.bf16.mxu0 0
        %1887 = vmatmul.mubr.bf16.gmra.mrb[0].mxu0 %v1782
        %v1888 = vpop.f32.mrb[0].mxu0
        %v1889 = vadd.f32 0.0, %v1888
        %v1890 = vpop.f32.mrb[0].mxu0
        %v1891 = vadd.f32 0.0, %v1890
        %v1892 = vpop.f32.mrb[0].mxu0
        %v1893 = vadd.f32 0.0, %v1892
        %v1894 = vpop.f32.mrb[0].mxu0
        %v1895 = vadd.f32 0.0, %v1894
        %1896 = vdwg.mxu0
        %v1897 = vmax.f32 %v1360, %v1362
        %1898 = vmax.xlane.f32.xlu0 %v1897
        %v1899 = vpop.xlane.xlu0 %1898
        %v1900 = vmax.f32 %v1364, %v1366
        %1901 = vmax.xlane.f32.xlu0 %v1900
        %v1902 = vpop.xlane.xlu0 %1901
        %v1903 = vmax.f32 %v1370, %v1372
        %1904 = vmax.xlane.f32.xlu0 %v1903
        %v1905 = vpop.xlane.xlu0 %1904
        %v1906 = vmax.f32 %v1374, %v1376
        %1907 = vmax.xlane.f32.xlu0 %v1906
        %v1908 = vpop.xlane.xlu0 %1907
        %v1909 = vmax.f32 %v1380, %v1382
        %1910 = vmax.xlane.f32.xlu0 %v1909
        %v1911 = vpop.xlane.xlu0 %1910
        %v1912 = vmax.f32 %v1384, %v1386
        %1913 = vmax.xlane.f32.xlu0 %v1912
        %v1914 = vpop.xlane.xlu0 %1913
        %v1915 = vmax.f32 %v1390, %v1392
        %1916 = vmax.xlane.f32.xlu0 %v1915
        %v1917 = vpop.xlane.xlu0 %1916
        %v1918 = vmax.f32 %v1394, %v1396
        %1919 = vmax.xlane.f32.xlu0 %v1918
        %v1920 = vpop.xlane.xlu0 %1919
        %v1921 = vmax.f32 %v1400, %v1402
        %1922 = vmax.xlane.f32.xlu0 %v1921
        %v1923 = vpop.xlane.xlu0 %1922
        %v1924 = vmax.f32 %v1404, %v1406
        %1925 = vmax.xlane.f32.xlu0 %v1924
        %v1926 = vpop.xlane.xlu0 %1925
        %v1927 = vmax.f32 %v1410, %v1412
        %1928 = vmax.xlane.f32.xlu0 %v1927
        %v1929 = vpop.xlane.xlu0 %1928
        %v1930 = vmax.f32 %v1414, %v1416
        %1931 = vmax.xlane.f32.xlu0 %v1930
        %v1932 = vpop.xlane.xlu0 %1931
        %v1933 = vmax.f32 %v1420, %v1422
        %1934 = vmax.xlane.f32.xlu0 %v1933
        %v1935 = vpop.xlane.xlu0 %1934
        %v1936 = vmax.f32 %v1424, %v1426
        %1937 = vmax.xlane.f32.xlu0 %v1936
        %v1938 = vpop.xlane.xlu0 %1937
        %v1939 = vmax.f32 %v1430, %v1432
        %1940 = vmax.xlane.f32.xlu0 %v1939
        %v1941 = vpop.xlane.xlu0 %1940
        %v1942 = vmax.f32 %v1434, %v1436
        %1943 = vmax.xlane.f32.xlu0 %v1942
        %v1944 = vpop.xlane.xlu0 %1943
        %v1945 = vmax.f32 %v1513, %v1515
        %1946 = vmax.xlane.f32.xlu0 %v1945
        %v1947 = vpop.xlane.xlu0 %1946
        %v1948 = vmax.f32 %v1517, %v1519
        %1949 = vmax.xlane.f32.xlu0 %v1948
        %v1950 = vpop.xlane.xlu0 %1949
        %v1951 = vmax.f32 %v1523, %v1525
        %1952 = vmax.xlane.f32.xlu0 %v1951
        %v1953 = vpop.xlane.xlu0 %1952
        %v1954 = vmax.f32 %v1527, %v1529
        %1955 = vmax.xlane.f32.xlu0 %v1954
        %v1956 = vpop.xlane.xlu0 %1955
        %v1957 = vmax.f32 %v1533, %v1535
        %1958 = vmax.xlane.f32.xlu0 %v1957
        %v1959 = vpop.xlane.xlu0 %1958
        %v1960 = vmax.f32 %v1537, %v1539
        %1961 = vmax.xlane.f32.xlu0 %v1960
        %v1962 = vpop.xlane.xlu0 %1961
        %v1963 = vmax.f32 %v1543, %v1545
        %1964 = vmax.xlane.f32.xlu0 %v1963
        %v1965 = vpop.xlane.xlu0 %1964
        %v1966 = vmax.f32 %v1547, %v1549
        %1967 = vmax.xlane.f32.xlu0 %v1966
        %v1968 = vpop.xlane.xlu0 %1967
        %v1969 = vmax.f32 %v1553, %v1555
        %1970 = vmax.xlane.f32.xlu0 %v1969
        %v1971 = vpop.xlane.xlu0 %1970
        %v1972 = vmax.f32 %v1557, %v1559
        %1973 = vmax.xlane.f32.xlu0 %v1972
        %v1974 = vpop.xlane.xlu0 %1973
        %v1975 = vmax.f32 %v1563, %v1565
        %1976 = vmax.xlane.f32.xlu0 %v1975
        %v1977 = vpop.xlane.xlu0 %1976
        %v1978 = vmax.f32 %v1567, %v1569
        %1979 = vmax.xlane.f32.xlu0 %v1978
        %v1980 = vpop.xlane.xlu0 %1979
        %v1981 = vmax.f32 %v1573, %v1575
        %1982 = vmax.xlane.f32.xlu0 %v1981
        %v1983 = vpop.xlane.xlu0 %1982
        %v1984 = vmax.f32 %v1577, %v1579
        %1985 = vmax.xlane.f32.xlu0 %v1984
        %v1986 = vpop.xlane.xlu0 %1985
        %v1987 = vmax.f32 %v1583, %v1585
        %1988 = vmax.xlane.f32.xlu0 %v1987
        %v1989 = vpop.xlane.xlu0 %1988
        %v1990 = vmax.f32 %v1587, %v1589
        %1991 = vmax.xlane.f32.xlu0 %v1990
        %v1992 = vpop.xlane.xlu0 %1991
        %v1993 = vmax.f32 %v1666, %v1668
        %1994 = vmax.xlane.f32.xlu0 %v1993
        %v1995 = vpop.xlane.xlu0 %1994
        %v1996 = vmax.f32 %v1670, %v1672
        %1997 = vmax.xlane.f32.xlu0 %v1996
        %v1998 = vpop.xlane.xlu0 %1997
        %v1999 = vmax.f32 %v1676, %v1678
        %2000 = vmax.xlane.f32.xlu0 %v1999
        %v2001 = vpop.xlane.xlu0 %2000
        %v2002 = vmax.f32 %v1680, %v1682
        %2003 = vmax.xlane.f32.xlu0 %v2002
        %v2004 = vpop.xlane.xlu0 %2003
        %v2005 = vmax.f32 %v1686, %v1688
        %2006 = vmax.xlane.f32.xlu0 %v2005
        %v2007 = vpop.xlane.xlu0 %2006
        %v2008 = vmax.f32 %v1690, %v1692
        %2009 = vmax.xlane.f32.xlu0 %v2008
        %v2010 = vpop.xlane.xlu0 %2009
        %v2011 = vmax.f32 %v1696, %v1698
        %2012 = vmax.xlane.f32.xlu0 %v2011
        %v2013 = vpop.xlane.xlu0 %2012
        %v2014 = vmax.f32 %v1700, %v1702
        %2015 = vmax.xlane.f32.xlu0 %v2014
        %v2016 = vpop.xlane.xlu0 %2015
        %v2017 = vmax.f32 %v1706, %v1708
        %2018 = vmax.xlane.f32.xlu0 %v2017
        %v2019 = vpop.xlane.xlu0 %2018
        %v2020 = vmax.f32 %v1710, %v1712
        %2021 = vmax.xlane.f32.xlu0 %v2020
        %v2022 = vpop.xlane.xlu0 %2021
        %v2023 = vmax.f32 %v1716, %v1718
        %2024 = vmax.xlane.f32.xlu0 %v2023
        %v2025 = vpop.xlane.xlu0 %2024
        %v2026 = vmax.f32 %v1720, %v1722
        %2027 = vmax.xlane.f32.xlu0 %v2026
        %v2028 = vpop.xlane.xlu0 %2027
        %v2029 = vmax.f32 %v1726, %v1728
        %2030 = vmax.xlane.f32.xlu0 %v2029
        %v2031 = vpop.xlane.xlu0 %2030
        %v2032 = vmax.f32 %v1730, %v1732
        %2033 = vmax.xlane.f32.xlu0 %v2032
        %v2034 = vpop.xlane.xlu0 %2033
        %v2035 = vmax.f32 %v1736, %v1738
        %2036 = vmax.xlane.f32.xlu0 %v2035
        %v2037 = vpop.xlane.xlu0 %2036
        %v2038 = vmax.f32 %v1740, %v1742
        %2039 = vmax.xlane.f32.xlu0 %v2038
        %v2040 = vpop.xlane.xlu0 %2039
        %v2041 = vmax.f32 %v1819, %v1821
        %2042 = vmax.xlane.f32.xlu0 %v2041
        %v2043 = vpop.xlane.xlu0 %2042
        %v2044 = vmax.f32 %v1823, %v1825
        %2045 = vmax.xlane.f32.xlu0 %v2044
        %v2046 = vpop.xlane.xlu0 %2045
        %v2047 = vmax.f32 %v1829, %v1831
        %2048 = vmax.xlane.f32.xlu0 %v2047
        %v2049 = vpop.xlane.xlu0 %2048
        %v2050 = vmax.f32 %v1833, %v1835
        %2051 = vmax.xlane.f32.xlu0 %v2050
        %v2052 = vpop.xlane.xlu0 %2051
        %v2053 = vmax.f32 %v1839, %v1841
        %2054 = vmax.xlane.f32.xlu0 %v2053
        %v2055 = vpop.xlane.xlu0 %2054
        %v2056 = vmax.f32 %v1843, %v1845
        %2057 = vmax.xlane.f32.xlu0 %v2056
        %v2058 = vpop.xlane.xlu0 %2057
        %v2059 = vmax.f32 %v1849, %v1851
        %2060 = vmax.xlane.f32.xlu0 %v2059
        %v2061 = vpop.xlane.xlu0 %2060
        %v2062 = vmax.f32 %v1853, %v1855
        %2063 = vmax.xlane.f32.xlu0 %v2062
        %v2064 = vpop.xlane.xlu0 %2063
        %v2065 = vmax.f32 %v1859, %v1861
        %2066 = vmax.xlane.f32.xlu0 %v2065
        %v2067 = vpop.xlane.xlu0 %2066
        %v2068 = vmax.f32 %v1863, %v1865
        %2069 = vmax.xlane.f32.xlu0 %v2068
        %v2070 = vpop.xlane.xlu0 %2069
        %v2071 = vmax.f32 %v1869, %v1871
        %2072 = vmax.xlane.f32.xlu0 %v2071
        %v2073 = vpop.xlane.xlu0 %2072
        %v2074 = vmax.f32 %v1873, %v1875
        %2075 = vmax.xlane.f32.xlu0 %v2074
        %v2076 = vpop.xlane.xlu0 %2075
        %v2077 = vmax.f32 %v1879, %v1881
        %2078 = vmax.xlane.f32.xlu0 %v2077
        %v2079 = vpop.xlane.xlu0 %2078
        %v2080 = vmax.f32 %v1883, %v1885
        %2081 = vmax.xlane.f32.xlu0 %v2080
        %v2082 = vpop.xlane.xlu0 %2081
        %v2083 = vmax.f32 %v1889, %v1891
        %2084 = vmax.xlane.f32.xlu0 %v2083
        %v2085 = vpop.xlane.xlu0 %2084
        %v2086 = vmax.f32 %v1893, %v1895
        %2087 = vmax.xlane.f32.xlu0 %v2086
        %v2088 = vpop.xlane.xlu0 %2087
        %v2089 = vsub.f32 %v1360, %v1899
        %v2090 = vsub.f32 %v1362, %v1899
        %v2091 = vsub.f32 %v1364, %v1902
        %v2092 = vsub.f32 %v1366, %v1902
        %v2093 = vsub.f32 %v1370, %v1905
        %v2094 = vsub.f32 %v1372, %v1905
        %v2095 = vsub.f32 %v1374, %v1908
        %v2096 = vsub.f32 %v1376, %v1908
        %v2097 = vsub.f32 %v1380, %v1911
        %v2098 = vsub.f32 %v1382, %v1911
        %v2099 = vsub.f32 %v1384, %v1914
        %v2100 = vsub.f32 %v1386, %v1914
        %v2101 = vsub.f32 %v1390, %v1917
        %v2102 = vsub.f32 %v1392, %v1917
        %v2103 = vsub.f32 %v1394, %v1920
        %v2104 = vsub.f32 %v1396, %v1920
        %v2105 = vsub.f32 %v1400, %v1923
        %v2106 = vsub.f32 %v1402, %v1923
        %v2107 = vsub.f32 %v1404, %v1926
        %v2108 = vsub.f32 %v1406, %v1926
        %v2109 = vsub.f32 %v1410, %v1929
        %v2110 = vsub.f32 %v1412, %v1929
        %v2111 = vsub.f32 %v1414, %v1932
        %v2112 = vsub.f32 %v1416, %v1932
        %v2113 = vsub.f32 %v1420, %v1935
        %v2114 = vsub.f32 %v1422, %v1935
        %v2115 = vsub.f32 %v1424, %v1938
        %v2116 = vsub.f32 %v1426, %v1938
        %v2117 = vsub.f32 %v1430, %v1941
        %v2118 = vsub.f32 %v1432, %v1941
        %v2119 = vsub.f32 %v1434, %v1944
        %v2120 = vsub.f32 %v1436, %v1944
        %v2121 = vsub.f32 %v1513, %v1947
        %v2122 = vsub.f32 %v1515, %v1947
        %v2123 = vsub.f32 %v1517, %v1950
        %v2124 = vsub.f32 %v1519, %v1950
        %v2125 = vsub.f32 %v1523, %v1953
        %v2126 = vsub.f32 %v1525, %v1953
        %v2127 = vsub.f32 %v1527, %v1956
        %v2128 = vsub.f32 %v1529, %v1956
        %v2129 = vsub.f32 %v1533, %v1959
        %v2130 = vsub.f32 %v1535, %v1959
        %v2131 = vsub.f32 %v1537, %v1962
        %v2132 = vsub.f32 %v1539, %v1962
        %v2133 = vsub.f32 %v1543, %v1965
        %v2134 = vsub.f32 %v1545, %v1965
        %v2135 = vsub.f32 %v1547, %v1968
        %v2136 = vsub.f32 %v1549, %v1968
        %v2137 = vsub.f32 %v1553, %v1971
        %v2138 = vsub.f32 %v1555, %v1971
        %v2139 = vsub.f32 %v1557, %v1974
        %v2140 = vsub.f32 %v1559, %v1974
        %v2141 = vsub.f32 %v1563, %v1977
        %v2142 = vsub.f32 %v1565, %v1977
        %v2143 = vsub.f32 %v1567, %v1980
        %v2144 = vsub.f32 %v1569, %v1980
        %v2145 = vsub.f32 %v1573, %v1983
        %v2146 = vsub.f32 %v1575, %v1983
        %v2147 = vsub.f32 %v1577, %v1986
        %v2148 = vsub.f32 %v1579, %v1986
        %v2149 = vsub.f32 %v1583, %v1989
        %v2150 = vsub.f32 %v1585, %v1989
        %v2151 = vsub.f32 %v1587, %v1992
        %v2152 = vsub.f32 %v1589, %v1992
        %v2153 = vsub.f32 %v1666, %v1995
        %v2154 = vsub.f32 %v1668, %v1995
        %v2155 = vsub.f32 %v1670, %v1998
        %v2156 = vsub.f32 %v1672, %v1998
        %v2157 = vsub.f32 %v1676, %v2001
        %v2158 = vsub.f32 %v1678, %v2001
        %v2159 = vsub.f32 %v1680, %v2004
        %v2160 = vsub.f32 %v1682, %v2004
        %v2161 = vsub.f32 %v1686, %v2007
        %v2162 = vsub.f32 %v1688, %v2007
        %v2163 = vsub.f32 %v1690, %v2010
        %v2164 = vsub.f32 %v1692, %v2010
        %v2165 = vsub.f32 %v1696, %v2013
        %v2166 = vsub.f32 %v1698, %v2013
        %v2167 = vsub.f32 %v1700, %v2016
        %v2168 = vsub.f32 %v1702, %v2016
        %v2169 = vsub.f32 %v1706, %v2019
        %v2170 = vsub.f32 %v1708, %v2019
        %v2171 = vsub.f32 %v1710, %v2022
        %v2172 = vsub.f32 %v1712, %v2022
        %v2173 = vsub.f32 %v1716, %v2025
        %v2174 = vsub.f32 %v1718, %v2025
        %v2175 = vsub.f32 %v1720, %v2028
        %v2176 = vsub.f32 %v1722, %v2028
        %v2177 = vsub.f32 %v1726, %v2031
        %v2178 = vsub.f32 %v1728, %v2031
        %v2179 = vsub.f32 %v1730, %v2034
        %v2180 = vsub.f32 %v1732, %v2034
        %v2181 = vsub.f32 %v1736, %v2037
        %v2182 = vsub.f32 %v1738, %v2037
        %v2183 = vsub.f32 %v1740, %v2040
        %v2184 = vsub.f32 %v1742, %v2040
        %v2185 = vsub.f32 %v1819, %v2043
        %v2186 = vsub.f32 %v1821, %v2043
        %v2187 = vsub.f32 %v1823, %v2046
        %v2188 = vsub.f32 %v1825, %v2046
        %v2189 = vsub.f32 %v1829, %v2049
        %v2190 = vsub.f32 %v1831, %v2049
        %v2191 = vsub.f32 %v1833, %v2052
        %v2192 = vsub.f32 %v1835, %v2052
        %v2193 = vsub.f32 %v1839, %v2055
        %v2194 = vsub.f32 %v1841, %v2055
        %v2195 = vsub.f32 %v1843, %v2058
        %v2196 = vsub.f32 %v1845, %v2058
        %v2197 = vsub.f32 %v1849, %v2061
        %v2198 = vsub.f32 %v1851, %v2061
        %v2199 = vsub.f32 %v1853, %v2064
        %v2200 = vsub.f32 %v1855, %v2064
        %v2201 = vsub.f32 %v1859, %v2067
        %v2202 = vsub.f32 %v1861, %v2067
        %v2203 = vsub.f32 %v1863, %v2070
        %v2204 = vsub.f32 %v1865, %v2070
        %v2205 = vsub.f32 %v1869, %v2073
        %v2206 = vsub.f32 %v1871, %v2073
        %v2207 = vsub.f32 %v1873, %v2076
        %v2208 = vsub.f32 %v1875, %v2076
        %v2209 = vsub.f32 %v1879, %v2079
        %v2210 = vsub.f32 %v1881, %v2079
        %v2211 = vsub.f32 %v1883, %v2082
        %v2212 = vsub.f32 %v1885, %v2082
        %v2213 = vsub.f32 %v1889, %v2085
        %v2214 = vsub.f32 %v1891, %v2085
        %v2215 = vsub.f32 %v1893, %v2088
        %v2216 = vsub.f32 %v1895, %v2088
        %v2217 = vmul.f32 %v2089, 1.442695
        %v2218 = vpow.pop %v2217
        %v2219 = vmul.f32 %v2090, 1.442695
        %v2220 = vpow.pop %v2219
        %v2221 = vmul.f32 %v2091, 1.442695
        %v2222 = vpow.pop %v2221
        %v2223 = vmul.f32 %v2092, 1.442695
        %v2224 = vpow.pop %v2223
        %v2225 = vmul.f32 %v2093, 1.442695
        %v2226 = vpow.pop %v2225
        %v2227 = vmul.f32 %v2094, 1.442695
        %v2228 = vpow.pop %v2227
        %v2229 = vmul.f32 %v2095, 1.442695
        %v2230 = vpow.pop %v2229
        %v2231 = vmul.f32 %v2096, 1.442695
        %v2232 = vpow.pop %v2231
        %v2233 = vmul.f32 %v2097, 1.442695
        %v2234 = vpow.pop %v2233
        %v2235 = vmul.f32 %v2098, 1.442695
        %v2236 = vpow.pop %v2235
        %v2237 = vmul.f32 %v2099, 1.442695
        %v2238 = vpow.pop %v2237
        %v2239 = vmul.f32 %v2100, 1.442695
        %v2240 = vpow.pop %v2239
        %v2241 = vmul.f32 %v2101, 1.442695
        %v2242 = vpow.pop %v2241
        %v2243 = vmul.f32 %v2102, 1.442695
        %v2244 = vpow.pop %v2243
        %v2245 = vmul.f32 %v2103, 1.442695
        %v2246 = vpow.pop %v2245
        %v2247 = vmul.f32 %v2104, 1.442695
        %v2248 = vpow.pop %v2247
        %v2249 = vmul.f32 %v2105, 1.442695
        %v2250 = vpow.pop %v2249
        %v2251 = vmul.f32 %v2106, 1.442695
        %v2252 = vpow.pop %v2251
        %v2253 = vmul.f32 %v2107, 1.442695
        %v2254 = vpow.pop %v2253
        %v2255 = vmul.f32 %v2108, 1.442695
        %v2256 = vpow.pop %v2255
        %v2257 = vmul.f32 %v2109, 1.442695
        %v2258 = vpow.pop %v2257
        %v2259 = vmul.f32 %v2110, 1.442695
        %v2260 = vpow.pop %v2259
        %v2261 = vmul.f32 %v2111, 1.442695
        %v2262 = vpow.pop %v2261
        %v2263 = vmul.f32 %v2112, 1.442695
        %v2264 = vpow.pop %v2263
        %v2265 = vmul.f32 %v2113, 1.442695
        %v2266 = vpow.pop %v2265
        %v2267 = vmul.f32 %v2114, 1.442695
        %v2268 = vpow.pop %v2267
        %v2269 = vmul.f32 %v2115, 1.442695
        %v2270 = vpow.pop %v2269
        %v2271 = vmul.f32 %v2116, 1.442695
        %v2272 = vpow.pop %v2271
        %v2273 = vmul.f32 %v2117, 1.442695
        %v2274 = vpow.pop %v2273
        %v2275 = vmul.f32 %v2118, 1.442695
        %v2276 = vpow.pop %v2275
        %v2277 = vmul.f32 %v2119, 1.442695
        %v2278 = vpow.pop %v2277
        %v2279 = vmul.f32 %v2120, 1.442695
        %v2280 = vpow.pop %v2279
        %v2281 = vmul.f32 %v2121, 1.442695
        %v2282 = vpow.pop %v2281
        %v2283 = vmul.f32 %v2122, 1.442695
        %v2284 = vpow.pop %v2283
        %v2285 = vmul.f32 %v2123, 1.442695
        %v2286 = vpow.pop %v2285
        %v2287 = vmul.f32 %v2124, 1.442695
        %v2288 = vpow.pop %v2287
        %v2289 = vmul.f32 %v2125, 1.442695
        %v2290 = vpow.pop %v2289
        %v2291 = vmul.f32 %v2126, 1.442695
        %v2292 = vpow.pop %v2291
        %v2293 = vmul.f32 %v2127, 1.442695
        %v2294 = vpow.pop %v2293
        %v2295 = vmul.f32 %v2128, 1.442695
        %v2296 = vpow.pop %v2295
        %v2297 = vmul.f32 %v2129, 1.442695
        %v2298 = vpow.pop %v2297
        %v2299 = vmul.f32 %v2130, 1.442695
        %v2300 = vpow.pop %v2299
        %v2301 = vmul.f32 %v2131, 1.442695
        %v2302 = vpow.pop %v2301
        %v2303 = vmul.f32 %v2132, 1.442695
        %v2304 = vpow.pop %v2303
        %v2305 = vmul.f32 %v2133, 1.442695
        %v2306 = vpow.pop %v2305
        %v2307 = vmul.f32 %v2134, 1.442695
        %v2308 = vpow.pop %v2307
        %v2309 = vmul.f32 %v2135, 1.442695
        %v2310 = vpow.pop %v2309
        %v2311 = vmul.f32 %v2136, 1.442695
        %v2312 = vpow.pop %v2311
        %v2313 = vmul.f32 %v2137, 1.442695
        %v2314 = vpow.pop %v2313
        %v2315 = vmul.f32 %v2138, 1.442695
        %v2316 = vpow.pop %v2315
        %v2317 = vmul.f32 %v2139, 1.442695
        %v2318 = vpow.pop %v2317
        %v2319 = vmul.f32 %v2140, 1.442695
        %v2320 = vpow.pop %v2319
        %v2321 = vmul.f32 %v2141, 1.442695
        %v2322 = vpow.pop %v2321
        %v2323 = vmul.f32 %v2142, 1.442695
        %v2324 = vpow.pop %v2323
        %v2325 = vmul.f32 %v2143, 1.442695
        %v2326 = vpow.pop %v2325
        %v2327 = vmul.f32 %v2144, 1.442695
        %v2328 = vpow.pop %v2327
        %v2329 = vmul.f32 %v2145, 1.442695
        %v2330 = vpow.pop %v2329
        %v2331 = vmul.f32 %v2146, 1.442695
        %v2332 = vpow.pop %v2331
        %v2333 = vmul.f32 %v2147, 1.442695
        %v2334 = vpow.pop %v2333
        %v2335 = vmul.f32 %v2148, 1.442695
        %v2336 = vpow.pop %v2335
        %v2337 = vmul.f32 %v2149, 1.442695
        %v2338 = vpow.pop %v2337
        %v2339 = vmul.f32 %v2150, 1.442695
        %v2340 = vpow.pop %v2339
        %v2341 = vmul.f32 %v2151, 1.442695
        %v2342 = vpow.pop %v2341
        %v2343 = vmul.f32 %v2152, 1.442695
        %v2344 = vpow.pop %v2343
        %v2345 = vmul.f32 %v2153, 1.442695
        %v2346 = vpow.pop %v2345
        %v2347 = vmul.f32 %v2154, 1.442695
        %v2348 = vpow.pop %v2347
        %v2349 = vmul.f32 %v2155, 1.442695
        %v2350 = vpow.pop %v2349
        %v2351 = vmul.f32 %v2156, 1.442695
        %v2352 = vpow.pop %v2351
        %v2353 = vmul.f32 %v2157, 1.442695
        %v2354 = vpow.pop %v2353
        %v2355 = vmul.f32 %v2158, 1.442695
        %v2356 = vpow.pop %v2355
        %v2357 = vmul.f32 %v2159, 1.442695
        %v2358 = vpow.pop %v2357
        %v2359 = vmul.f32 %v2160, 1.442695
        %v2360 = vpow.pop %v2359
        %v2361 = vmul.f32 %v2161, 1.442695
        %v2362 = vpow.pop %v2361
        %v2363 = vmul.f32 %v2162, 1.442695
        %v2364 = vpow.pop %v2363
        %v2365 = vmul.f32 %v2163, 1.442695
        %v2366 = vpow.pop %v2365
        %v2367 = vmul.f32 %v2164, 1.442695
        %v2368 = vpow.pop %v2367
        %v2369 = vmul.f32 %v2165, 1.442695
        %v2370 = vpow.pop %v2369
        %v2371 = vmul.f32 %v2166, 1.442695
        %v2372 = vpow.pop %v2371
        %v2373 = vmul.f32 %v2167, 1.442695
        %v2374 = vpow.pop %v2373
        %v2375 = vmul.f32 %v2168, 1.442695
        %v2376 = vpow.pop %v2375
        %v2377 = vmul.f32 %v2169, 1.442695
        %v2378 = vpow.pop %v2377
        %v2379 = vmul.f32 %v2170, 1.442695
        %v2380 = vpow.pop %v2379
        %v2381 = vmul.f32 %v2171, 1.442695
        %v2382 = vpow.pop %v2381
        %v2383 = vmul.f32 %v2172, 1.442695
        %v2384 = vpow.pop %v2383
        %v2385 = vmul.f32 %v2173, 1.442695
        %v2386 = vpow.pop %v2385
        %v2387 = vmul.f32 %v2174, 1.442695
        %v2388 = vpow.pop %v2387
        %v2389 = vmul.f32 %v2175, 1.442695
        %v2390 = vpow.pop %v2389
        %v2391 = vmul.f32 %v2176, 1.442695
        %v2392 = vpow.pop %v2391
        %v2393 = vmul.f32 %v2177, 1.442695
        %v2394 = vpow.pop %v2393
        %v2395 = vmul.f32 %v2178, 1.442695
        %v2396 = vpow.pop %v2395
        %v2397 = vmul.f32 %v2179, 1.442695
        %v2398 = vpow.pop %v2397
        %v2399 = vmul.f32 %v2180, 1.442695
        %v2400 = vpow.pop %v2399
        %v2401 = vmul.f32 %v2181, 1.442695
        %v2402 = vpow.pop %v2401
        %v2403 = vmul.f32 %v2182, 1.442695
        %v2404 = vpow.pop %v2403
        %v2405 = vmul.f32 %v2183, 1.442695
        %v2406 = vpow.pop %v2405
        %v2407 = vmul.f32 %v2184, 1.442695
        %v2408 = vpow.pop %v2407
        %v2409 = vmul.f32 %v2185, 1.442695
        %v2410 = vpow.pop %v2409
        %v2411 = vmul.f32 %v2186, 1.442695
        %v2412 = vpow.pop %v2411
        %v2413 = vmul.f32 %v2187, 1.442695
        %v2414 = vpow.pop %v2413
        %v2415 = vmul.f32 %v2188, 1.442695
        %v2416 = vpow.pop %v2415
        %v2417 = vmul.f32 %v2189, 1.442695
        %v2418 = vpow.pop %v2417
        %v2419 = vmul.f32 %v2190, 1.442695
        %v2420 = vpow.pop %v2419
        %v2421 = vmul.f32 %v2191, 1.442695
        %v2422 = vpow.pop %v2421
        %v2423 = vmul.f32 %v2192, 1.442695
        %v2424 = vpow.pop %v2423
        %v2425 = vmul.f32 %v2193, 1.442695
        %v2426 = vpow.pop %v2425
        %v2427 = vmul.f32 %v2194, 1.442695
        %v2428 = vpow.pop %v2427
        %v2429 = vmul.f32 %v2195, 1.442695
        %v2430 = vpow.pop %v2429
        %v2431 = vmul.f32 %v2196, 1.442695
        %v2432 = vpow.pop %v2431
        %v2433 = vmul.f32 %v2197, 1.442695
        %v2434 = vpow.pop %v2433
        %v2435 = vmul.f32 %v2198, 1.442695
        %v2436 = vpow.pop %v2435
        %v2437 = vmul.f32 %v2199, 1.442695
        %v2438 = vpow.pop %v2437
        %v2439 = vmul.f32 %v2200, 1.442695
        %v2440 = vpow.pop %v2439
        %v2441 = vmul.f32 %v2201, 1.442695
        %v2442 = vpow.pop %v2441
        %v2443 = vmul.f32 %v2202, 1.442695
        %v2444 = vpow.pop %v2443
        %v2445 = vmul.f32 %v2203, 1.442695
        %v2446 = vpow.pop %v2445
        %v2447 = vmul.f32 %v2204, 1.442695
        %v2448 = vpow.pop %v2447
        %v2449 = vmul.f32 %v2205, 1.442695
        %v2450 = vpow.pop %v2449
        %v2451 = vmul.f32 %v2206, 1.442695
        %v2452 = vpow.pop %v2451
        %v2453 = vmul.f32 %v2207, 1.442695
        %v2454 = vpow.pop %v2453
        %v2455 = vmul.f32 %v2208, 1.442695
        %v2456 = vpow.pop %v2455
        %v2457 = vmul.f32 %v2209, 1.442695
        %v2458 = vpow.pop %v2457
        %v2459 = vmul.f32 %v2210, 1.442695
        %v2460 = vpow.pop %v2459
        %v2461 = vmul.f32 %v2211, 1.442695
        %v2462 = vpow.pop %v2461
        %v2463 = vmul.f32 %v2212, 1.442695
        %v2464 = vpow.pop %v2463
        %v2465 = vmul.f32 %v2213, 1.442695
        %v2466 = vpow.pop %v2465
        %v2467 = vmul.f32 %v2214, 1.442695
        %v2468 = vpow.pop %v2467
        %v2469 = vmul.f32 %v2215, 1.442695
        %v2470 = vpow.pop %v2469
        %v2471 = vmul.f32 %v2216, 1.442695
        %v2472 = vpow.pop %v2471
        %v2473 = vadd.f32 %v2218, %v2220
        %2474 = vadd.xlane.f32.xlu0 %v2473
        %v2475 = vpop.xlane.xlu0 %2474
        %v2476 = vadd.f32 %v2222, %v2224
        %2477 = vadd.xlane.f32.xlu0 %v2476
        %v2478 = vpop.xlane.xlu0 %2477
        %v2479 = vadd.f32 %v2226, %v2228
        %2480 = vadd.xlane.f32.xlu0 %v2479
        %v2481 = vpop.xlane.xlu0 %2480
        %v2482 = vadd.f32 %v2230, %v2232
        %2483 = vadd.xlane.f32.xlu0 %v2482
        %v2484 = vpop.xlane.xlu0 %2483
        %v2485 = vadd.f32 %v2234, %v2236
        %2486 = vadd.xlane.f32.xlu0 %v2485
        %v2487 = vpop.xlane.xlu0 %2486
        %v2488 = vadd.f32 %v2238, %v2240
        %2489 = vadd.xlane.f32.xlu0 %v2488
        %v2490 = vpop.xlane.xlu0 %2489
        %v2491 = vadd.f32 %v2242, %v2244
        %2492 = vadd.xlane.f32.xlu0 %v2491
        %v2493 = vpop.xlane.xlu0 %2492
        %v2494 = vadd.f32 %v2246, %v2248
        %2495 = vadd.xlane.f32.xlu0 %v2494
        %v2496 = vpop.xlane.xlu0 %2495
        %v2497 = vadd.f32 %v2250, %v2252
        %2498 = vadd.xlane.f32.xlu0 %v2497
        %v2499 = vpop.xlane.xlu0 %2498
        %v2500 = vadd.f32 %v2254, %v2256
        %2501 = vadd.xlane.f32.xlu0 %v2500
        %v2502 = vpop.xlane.xlu0 %2501
        %v2503 = vadd.f32 %v2258, %v2260
        %2504 = vadd.xlane.f32.xlu0 %v2503
        %v2505 = vpop.xlane.xlu0 %2504
        %v2506 = vadd.f32 %v2262, %v2264
        %2507 = vadd.xlane.f32.xlu0 %v2506
        %v2508 = vpop.xlane.xlu0 %2507
        %v2509 = vadd.f32 %v2266, %v2268
        %2510 = vadd.xlane.f32.xlu0 %v2509
        %v2511 = vpop.xlane.xlu0 %2510
        %v2512 = vadd.f32 %v2270, %v2272
        %2513 = vadd.xlane.f32.xlu0 %v2512
        %v2514 = vpop.xlane.xlu0 %2513
        %v2515 = vadd.f32 %v2274, %v2276
        %2516 = vadd.xlane.f32.xlu0 %v2515
        %v2517 = vpop.xlane.xlu0 %2516
        %v2518 = vadd.f32 %v2278, %v2280
        %2519 = vadd.xlane.f32.xlu0 %v2518
        %v2520 = vpop.xlane.xlu0 %2519
        %v2521 = vadd.f32 %v2282, %v2284
        %2522 = vadd.xlane.f32.xlu0 %v2521
        %v2523 = vpop.xlane.xlu0 %2522
        %v2524 = vadd.f32 %v2286, %v2288
        %2525 = vadd.xlane.f32.xlu0 %v2524
        %v2526 = vpop.xlane.xlu0 %2525
        %v2527 = vadd.f32 %v2290, %v2292
        %2528 = vadd.xlane.f32.xlu0 %v2527
        %v2529 = vpop.xlane.xlu0 %2528
        %v2530 = vadd.f32 %v2294, %v2296
        %2531 = vadd.xlane.f32.xlu0 %v2530
        %v2532 = vpop.xlane.xlu0 %2531
        %v2533 = vadd.f32 %v2298, %v2300
        %2534 = vadd.xlane.f32.xlu0 %v2533
        %v2535 = vpop.xlane.xlu0 %2534
        %v2536 = vadd.f32 %v2302, %v2304
        %2537 = vadd.xlane.f32.xlu0 %v2536
        %v2538 = vpop.xlane.xlu0 %2537
        %v2539 = vadd.f32 %v2306, %v2308
        %2540 = vadd.xlane.f32.xlu0 %v2539
        %v2541 = vpop.xlane.xlu0 %2540
        %v2542 = vadd.f32 %v2310, %v2312
        %2543 = vadd.xlane.f32.xlu0 %v2542
        %v2544 = vpop.xlane.xlu0 %2543
        %v2545 = vadd.f32 %v2314, %v2316
        %2546 = vadd.xlane.f32.xlu0 %v2545
        %v2547 = vpop.xlane.xlu0 %2546
        %v2548 = vadd.f32 %v2318, %v2320
        %2549 = vadd.xlane.f32.xlu0 %v2548
        %v2550 = vpop.xlane.xlu0 %2549
        %v2551 = vadd.f32 %v2322, %v2324
        %2552 = vadd.xlane.f32.xlu0 %v2551
        %v2553 = vpop.xlane.xlu0 %2552
        %v2554 = vadd.f32 %v2326, %v2328
        %2555 = vadd.xlane.f32.xlu0 %v2554
        %v2556 = vpop.xlane.xlu0 %2555
        %v2557 = vadd.f32 %v2330, %v2332
        %2558 = vadd.xlane.f32.xlu0 %v2557
        %v2559 = vpop.xlane.xlu0 %2558
        %v2560 = vadd.f32 %v2334, %v2336
        %2561 = vadd.xlane.f32.xlu0 %v2560
        %v2562 = vpop.xlane.xlu0 %2561
        %v2563 = vadd.f32 %v2338, %v2340
        %2564 = vadd.xlane.f32.xlu0 %v2563
        %v2565 = vpop.xlane.xlu0 %2564
        %v2566 = vadd.f32 %v2342, %v2344
        %2567 = vadd.xlane.f32.xlu0 %v2566
        %v2568 = vpop.xlane.xlu0 %2567
        %v2569 = vadd.f32 %v2346, %v2348
        %2570 = vadd.xlane.f32.xlu0 %v2569
        %v2571 = vpop.xlane.xlu0 %2570
        %v2572 = vadd.f32 %v2350, %v2352
        %2573 = vadd.xlane.f32.xlu0 %v2572
        %v2574 = vpop.xlane.xlu0 %2573
        %v2575 = vadd.f32 %v2354, %v2356
        %2576 = vadd.xlane.f32.xlu0 %v2575
        %v2577 = vpop.xlane.xlu0 %2576
        %v2578 = vadd.f32 %v2358, %v2360
        %2579 = vadd.xlane.f32.xlu0 %v2578
        %v2580 = vpop.xlane.xlu0 %2579
        %v2581 = vadd.f32 %v2362, %v2364
        %2582 = vadd.xlane.f32.xlu0 %v2581
        %v2583 = vpop.xlane.xlu0 %2582
        %v2584 = vadd.f32 %v2366, %v2368
        %2585 = vadd.xlane.f32.xlu0 %v2584
        %v2586 = vpop.xlane.xlu0 %2585
        %v2587 = vadd.f32 %v2370, %v2372
        %2588 = vadd.xlane.f32.xlu0 %v2587
        %v2589 = vpop.xlane.xlu0 %2588
        %v2590 = vadd.f32 %v2374, %v2376
        %2591 = vadd.xlane.f32.xlu0 %v2590
        %v2592 = vpop.xlane.xlu0 %2591
        %v2593 = vadd.f32 %v2378, %v2380
        %2594 = vadd.xlane.f32.xlu0 %v2593
        %v2595 = vpop.xlane.xlu0 %2594
        %v2596 = vadd.f32 %v2382, %v2384
        %2597 = vadd.xlane.f32.xlu0 %v2596
        %v2598 = vpop.xlane.xlu0 %2597
        %v2599 = vadd.f32 %v2386, %v2388
        %2600 = vadd.xlane.f32.xlu0 %v2599
        %v2601 = vpop.xlane.xlu0 %2600
        %v2602 = vadd.f32 %v2390, %v2392
        %2603 = vadd.xlane.f32.xlu0 %v2602
        %v2604 = vpop.xlane.xlu0 %2603
        %v2605 = vadd.f32 %v2394, %v2396
        %2606 = vadd.xlane.f32.xlu0 %v2605
        %v2607 = vpop.xlane.xlu0 %2606
        %v2608 = vadd.f32 %v2398, %v2400
        %2609 = vadd.xlane.f32.xlu0 %v2608
        %v2610 = vpop.xlane.xlu0 %2609
        %v2611 = vadd.f32 %v2402, %v2404
        %2612 = vadd.xlane.f32.xlu0 %v2611
        %v2613 = vpop.xlane.xlu0 %2612
        %v2614 = vadd.f32 %v2406, %v2408
        %2615 = vadd.xlane.f32.xlu0 %v2614
        %v2616 = vpop.xlane.xlu0 %2615
        %v2617 = vadd.f32 %v2410, %v2412
        %2618 = vadd.xlane.f32.xlu0 %v2617
        %v2619 = vpop.xlane.xlu0 %2618
        %v2620 = vadd.f32 %v2414, %v2416
        %2621 = vadd.xlane.f32.xlu0 %v2620
        %v2622 = vpop.xlane.xlu0 %2621
        %v2623 = vadd.f32 %v2418, %v2420
        %2624 = vadd.xlane.f32.xlu0 %v2623
        %v2625 = vpop.xlane.xlu0 %2624
        %v2626 = vadd.f32 %v2422, %v2424
        %2627 = vadd.xlane.f32.xlu0 %v2626
        %v2628 = vpop.xlane.xlu0 %2627
        %v2629 = vadd.f32 %v2426, %v2428
        %2630 = vadd.xlane.f32.xlu0 %v2629
        %v2631 = vpop.xlane.xlu0 %2630
        %v2632 = vadd.f32 %v2430, %v2432
        %2633 = vadd.xlane.f32.xlu0 %v2632
        %v2634 = vpop.xlane.xlu0 %2633
        %v2635 = vadd.f32 %v2434, %v2436
        %2636 = vadd.xlane.f32.xlu0 %v2635
        %v2637 = vpop.xlane.xlu0 %2636
        %v2638 = vadd.f32 %v2438, %v2440
        %2639 = vadd.xlane.f32.xlu0 %v2638
        %v2640 = vpop.xlane.xlu0 %2639
        %v2641 = vadd.f32 %v2442, %v2444
        %2642 = vadd.xlane.f32.xlu0 %v2641
        %v2643 = vpop.xlane.xlu0 %2642
        %v2644 = vadd.f32 %v2446, %v2448
        %2645 = vadd.xlane.f32.xlu0 %v2644
        %v2646 = vpop.xlane.xlu0 %2645
        %v2647 = vadd.f32 %v2450, %v2452
        %2648 = vadd.xlane.f32.xlu0 %v2647
        %v2649 = vpop.xlane.xlu0 %2648
        %v2650 = vadd.f32 %v2454, %v2456
        %2651 = vadd.xlane.f32.xlu0 %v2650
        %v2652 = vpop.xlane.xlu0 %2651
        %v2653 = vadd.f32 %v2458, %v2460
        %2654 = vadd.xlane.f32.xlu0 %v2653
        %v2655 = vpop.xlane.xlu0 %2654
        %v2656 = vadd.f32 %v2462, %v2464
        %2657 = vadd.xlane.f32.xlu0 %v2656
        %v2658 = vpop.xlane.xlu0 %2657
        %v2659 = vadd.f32 %v2466, %v2468
        %2660 = vadd.xlane.f32.xlu0 %v2659
        %v2661 = vpop.xlane.xlu0 %2660
        %v2662 = vadd.f32 %v2470, %v2472
        %2663 = vadd.xlane.f32.xlu0 %v2662
        %v2664 = vpop.xlane.xlu0 %2663
        %v2665 = vrcp.pop %v2475
        %v2666 = vrcp.pop %v2478
        %v2667 = vrcp.pop %v2481
        %v2668 = vrcp.pop %v2484
        %v2669 = vrcp.pop %v2487
        %v2670 = vrcp.pop %v2490
        %v2671 = vrcp.pop %v2493
        %v2672 = vrcp.pop %v2496
        %v2673 = vrcp.pop %v2499
        %v2674 = vrcp.pop %v2502
        %v2675 = vrcp.pop %v2505
        %v2676 = vrcp.pop %v2508
        %v2677 = vrcp.pop %v2511
        %v2678 = vrcp.pop %v2514
        %v2679 = vrcp.pop %v2517
        %v2680 = vrcp.pop %v2520
        %v2681 = vrcp.pop %v2523
        %v2682 = vrcp.pop %v2526
        %v2683 = vrcp.pop %v2529
        %v2684 = vrcp.pop %v2532
        %v2685 = vrcp.pop %v2535
        %v2686 = vrcp.pop %v2538
        %v2687 = vrcp.pop %v2541
        %v2688 = vrcp.pop %v2544
        %v2689 = vrcp.pop %v2547
        %v2690 = vrcp.pop %v2550
        %v2691 = vrcp.pop %v2553
        %v2692 = vrcp.pop %v2556
        %v2693 = vrcp.pop %v2559
        %v2694 = vrcp.pop %v2562
        %v2695 = vrcp.pop %v2565
        %v2696 = vrcp.pop %v2568
        %v2697 = vrcp.pop %v2571
        %v2698 = vrcp.pop %v2574
        %v2699 = vrcp.pop %v2577
        %v2700 = vrcp.pop %v2580
        %v2701 = vrcp.pop %v2583
        %v2702 = vrcp.pop %v2586
        %v2703 = vrcp.pop %v2589
        %v2704 = vrcp.pop %v2592
        %v2705 = vrcp.pop %v2595
        %v2706 = vrcp.pop %v2598
        %v2707 = vrcp.pop %v2601
        %v2708 = vrcp.pop %v2604
        %v2709 = vrcp.pop %v2607
        %v2710 = vrcp.pop %v2610
        %v2711 = vrcp.pop %v2613
        %v2712 = vrcp.pop %v2616
        %v2713 = vrcp.pop %v2619
        %v2714 = vrcp.pop %v2622
        %v2715 = vrcp.pop %v2625
        %v2716 = vrcp.pop %v2628
        %v2717 = vrcp.pop %v2631
        %v2718 = vrcp.pop %v2634
        %v2719 = vrcp.pop %v2637
        %v2720 = vrcp.pop %v2640
        %v2721 = vrcp.pop %v2643
        %v2722 = vrcp.pop %v2646
        %v2723 = vrcp.pop %v2649
        %v2724 = vrcp.pop %v2652
        %v2725 = vrcp.pop %v2655
        %v2726 = vrcp.pop %v2658
        %v2727 = vrcp.pop %v2661
        %v2728 = vrcp.pop %v2664
        %v2729 = vmul.f32 %v2218, %v2665
        %v2730 = vmul.f32 %v2220, %v2665
        %v2731 = vmul.f32 %v2222, %v2666
        %v2732 = vmul.f32 %v2224, %v2666
        %v2733 = vmul.f32 %v2226, %v2667
        %v2734 = vmul.f32 %v2228, %v2667
        %v2735 = vmul.f32 %v2230, %v2668
        %v2736 = vmul.f32 %v2232, %v2668
        %v2737 = vmul.f32 %v2234, %v2669
        %v2738 = vmul.f32 %v2236, %v2669
        %v2739 = vmul.f32 %v2238, %v2670
        %v2740 = vmul.f32 %v2240, %v2670
        %v2741 = vmul.f32 %v2242, %v2671
        %v2742 = vmul.f32 %v2244, %v2671
        %v2743 = vmul.f32 %v2246, %v2672
        %v2744 = vmul.f32 %v2248, %v2672
        %v2745 = vmul.f32 %v2250, %v2673
        %v2746 = vmul.f32 %v2252, %v2673
        %v2747 = vmul.f32 %v2254, %v2674
        %v2748 = vmul.f32 %v2256, %v2674
        %v2749 = vmul.f32 %v2258, %v2675
        %v2750 = vmul.f32 %v2260, %v2675
        %v2751 = vmul.f32 %v2262, %v2676
        %v2752 = vmul.f32 %v2264, %v2676
        %v2753 = vmul.f32 %v2266, %v2677
        %v2754 = vmul.f32 %v2268, %v2677
        %v2755 = vmul.f32 %v2270, %v2678
        %v2756 = vmul.f32 %v2272, %v2678
        %v2757 = vmul.f32 %v2274, %v2679
        %v2758 = vmul.f32 %v2276, %v2679
        %v2759 = vmul.f32 %v2278, %v2680
        %v2760 = vmul.f32 %v2280, %v2680
        %v2761 = vmul.f32 %v2282, %v2681
        %v2762 = vmul.f32 %v2284, %v2681
        %v2763 = vmul.f32 %v2286, %v2682
        %v2764 = vmul.f32 %v2288, %v2682
        %v2765 = vmul.f32 %v2290, %v2683
        %v2766 = vmul.f32 %v2292, %v2683
        %v2767 = vmul.f32 %v2294, %v2684
        %v2768 = vmul.f32 %v2296, %v2684
        %v2769 = vmul.f32 %v2298, %v2685
        %v2770 = vmul.f32 %v2300, %v2685
        %v2771 = vmul.f32 %v2302, %v2686
        %v2772 = vmul.f32 %v2304, %v2686
        %v2773 = vmul.f32 %v2306, %v2687
        %v2774 = vmul.f32 %v2308, %v2687
        %v2775 = vmul.f32 %v2310, %v2688
        %v2776 = vmul.f32 %v2312, %v2688
        %v2777 = vmul.f32 %v2314, %v2689
        %v2778 = vmul.f32 %v2316, %v2689
        %v2779 = vmul.f32 %v2318, %v2690
        %v2780 = vmul.f32 %v2320, %v2690
        %v2781 = vmul.f32 %v2322, %v2691
        %v2782 = vmul.f32 %v2324, %v2691
        %v2783 = vmul.f32 %v2326, %v2692
        %v2784 = vmul.f32 %v2328, %v2692
        %v2785 = vmul.f32 %v2330, %v2693
        %v2786 = vmul.f32 %v2332, %v2693
        %v2787 = vmul.f32 %v2334, %v2694
        %v2788 = vmul.f32 %v2336, %v2694
        %v2789 = vmul.f32 %v2338, %v2695
        %v2790 = vmul.f32 %v2340, %v2695
        %v2791 = vmul.f32 %v2342, %v2696
        %v2792 = vmul.f32 %v2344, %v2696
        %v2793 = vmul.f32 %v2346, %v2697
        %v2794 = vmul.f32 %v2348, %v2697
        %v2795 = vmul.f32 %v2350, %v2698
        %v2796 = vmul.f32 %v2352, %v2698
        %v2797 = vmul.f32 %v2354, %v2699
        %v2798 = vmul.f32 %v2356, %v2699
        %v2799 = vmul.f32 %v2358, %v2700
        %v2800 = vmul.f32 %v2360, %v2700
        %v2801 = vmul.f32 %v2362, %v2701
        %v2802 = vmul.f32 %v2364, %v2701
        %v2803 = vmul.f32 %v2366, %v2702
        %v2804 = vmul.f32 %v2368, %v2702
        %v2805 = vmul.f32 %v2370, %v2703
        %v2806 = vmul.f32 %v2372, %v2703
        %v2807 = vmul.f32 %v2374, %v2704
        %v2808 = vmul.f32 %v2376, %v2704
        %v2809 = vmul.f32 %v2378, %v2705
        %v2810 = vmul.f32 %v2380, %v2705
        %v2811 = vmul.f32 %v2382, %v2706
        %v2812 = vmul.f32 %v2384, %v2706
        %v2813 = vmul.f32 %v2386, %v2707
        %v2814 = vmul.f32 %v2388, %v2707
        %v2815 = vmul.f32 %v2390, %v2708
        %v2816 = vmul.f32 %v2392, %v2708
        %v2817 = vmul.f32 %v2394, %v2709
        %v2818 = vmul.f32 %v2396, %v2709
        %v2819 = vmul.f32 %v2398, %v2710
        %v2820 = vmul.f32 %v2400, %v2710
        %v2821 = vmul.f32 %v2402, %v2711
        %v2822 = vmul.f32 %v2404, %v2711
        %v2823 = vmul.f32 %v2406, %v2712
        %v2824 = vmul.f32 %v2408, %v2712
        %v2825 = vmul.f32 %v2410, %v2713
        %v2826 = vmul.f32 %v2412, %v2713
        %v2827 = vmul.f32 %v2414, %v2714
        %v2828 = vmul.f32 %v2416, %v2714
        %v2829 = vmul.f32 %v2418, %v2715
        %v2830 = vmul.f32 %v2420, %v2715
        %v2831 = vmul.f32 %v2422, %v2716
        %v2832 = vmul.f32 %v2424, %v2716
        %v2833 = vmul.f32 %v2426, %v2717
        %v2834 = vmul.f32 %v2428, %v2717
        %v2835 = vmul.f32 %v2430, %v2718
        %v2836 = vmul.f32 %v2432, %v2718
        %v2837 = vmul.f32 %v2434, %v2719
        %v2838 = vmul.f32 %v2436, %v2719
        %v2839 = vmul.f32 %v2438, %v2720
        %v2840 = vmul.f32 %v2440, %v2720
        %v2841 = vmul.f32 %v2442, %v2721
        %v2842 = vmul.f32 %v2444, %v2721
        %v2843 = vmul.f32 %v2446, %v2722
        %v2844 = vmul.f32 %v2448, %v2722
        %v2845 = vmul.f32 %v2450, %v2723
        %v2846 = vmul.f32 %v2452, %v2723
        %v2847 = vmul.f32 %v2454, %v2724
        %v2848 = vmul.f32 %v2456, %v2724
        %v2849 = vmul.f32 %v2458, %v2725
        %v2850 = vmul.f32 %v2460, %v2725
        %v2851 = vmul.f32 %v2462, %v2726
        %v2852 = vmul.f32 %v2464, %v2726
        %v2853 = vmul.f32 %v2466, %v2727
        %v2854 = vmul.f32 %v2468, %v2727
        %v2855 = vmul.f32 %v2470, %v2728
        %v2856 = vmul.f32 %v2472, %v2728
        %v2857 = vpack.c.bf16 %v2731, %v2729
        %v2858 = vpack.c.bf16 %v2732, %v2730
        %v2859 = vpack.c.bf16 %v2735, %v2733
        %v2860 = vpack.c.bf16 %v2736, %v2734
        %v2861 = vpack.c.bf16 %v2739, %v2737
        %v2862 = vpack.c.bf16 %v2740, %v2738
        %v2863 = vpack.c.bf16 %v2743, %v2741
        %v2864 = vpack.c.bf16 %v2744, %v2742
        %v2865 = vpack.c.bf16 %v2747, %v2745
        %v2866 = vpack.c.bf16 %v2748, %v2746
        %v2867 = vpack.c.bf16 %v2751, %v2749
        %v2868 = vpack.c.bf16 %v2752, %v2750
        %v2869 = vpack.c.bf16 %v2755, %v2753
        %v2870 = vpack.c.bf16 %v2756, %v2754
        %v2871 = vpack.c.bf16 %v2759, %v2757
        %v2872 = vpack.c.bf16 %v2760, %v2758
        %v2873 = vpack.c.bf16 %v2763, %v2761
        %v2874 = vpack.c.bf16 %v2764, %v2762
        %v2875 = vpack.c.bf16 %v2767, %v2765
        %v2876 = vpack.c.bf16 %v2768, %v2766
        %v2877 = vpack.c.bf16 %v2771, %v2769
        %v2878 = vpack.c.bf16 %v2772, %v2770
        %v2879 = vpack.c.bf16 %v2775, %v2773
        %v2880 = vpack.c.bf16 %v2776, %v2774
        %v2881 = vpack.c.bf16 %v2779, %v2777
        %v2882 = vpack.c.bf16 %v2780, %v2778
        %v2883 = vpack.c.bf16 %v2783, %v2781
        %v2884 = vpack.c.bf16 %v2784, %v2782
        %v2885 = vpack.c.bf16 %v2787, %v2785
        %v2886 = vpack.c.bf16 %v2788, %v2786
        %v2887 = vpack.c.bf16 %v2791, %v2789
        %v2888 = vpack.c.bf16 %v2792, %v2790
        %v2889 = vpack.c.bf16 %v2795, %v2793
        %v2890 = vpack.c.bf16 %v2796, %v2794
        %v2891 = vpack.c.bf16 %v2799, %v2797
        %v2892 = vpack.c.bf16 %v2800, %v2798
        %v2893 = vpack.c.bf16 %v2803, %v2801
        %v2894 = vpack.c.bf16 %v2804, %v2802
        %v2895 = vpack.c.bf16 %v2807, %v2805
        %v2896 = vpack.c.bf16 %v2808, %v2806
        %v2897 = vpack.c.bf16 %v2811, %v2809
        %v2898 = vpack.c.bf16 %v2812, %v2810
        %v2899 = vpack.c.bf16 %v2815, %v2813
        %v2900 = vpack.c.bf16 %v2816, %v2814
        %v2901 = vpack.c.bf16 %v2819, %v2817
        %v2902 = vpack.c.bf16 %v2820, %v2818
        %v2903 = vpack.c.bf16 %v2823, %v2821
        %v2904 = vpack.c.bf16 %v2824, %v2822
        %v2905 = vpack.c.bf16 %v2827, %v2825
        %v2906 = vpack.c.bf16 %v2828, %v2826
        %v2907 = vpack.c.bf16 %v2831, %v2829
        %v2908 = vpack.c.bf16 %v2832, %v2830
        %v2909 = vpack.c.bf16 %v2835, %v2833
        %v2910 = vpack.c.bf16 %v2836, %v2834
        %v2911 = vpack.c.bf16 %v2839, %v2837
        %v2912 = vpack.c.bf16 %v2840, %v2838
        %v2913 = vpack.c.bf16 %v2843, %v2841
        %v2914 = vpack.c.bf16 %v2844, %v2842
        %v2915 = vpack.c.bf16 %v2847, %v2845
        %v2916 = vpack.c.bf16 %v2848, %v2846
        %v2917 = vpack.c.bf16 %v2851, %v2849
        %v2918 = vpack.c.bf16 %v2852, %v2850
        %v2919 = vpack.c.bf16 %v2855, %v2853
        %v2920 = vpack.c.bf16 %v2856, %v2854
        %v2921 = vpack.c.bf16 %v735, %v729
        %v2922 = vpack.c.bf16 %v737, %v731
        %v2923 = vpack.c.bf16 %v747, %v741
        %v2924 = vpack.c.bf16 %v749, %v743
        %v2925 = vpack.c.bf16 %v759, %v753
        %v2926 = vpack.c.bf16 %v761, %v755
        %v2927 = vpack.c.bf16 %v771, %v765
        %v2928 = vpack.c.bf16 %v773, %v767
        %v2929 = vpack.c.bf16 %v783, %v777
        %v2930 = vpack.c.bf16 %v785, %v779
        %v2931 = vpack.c.bf16 %v795, %v789
        %v2932 = vpack.c.bf16 %v797, %v791
        %v2933 = vpack.c.bf16 %v807, %v801
        %v2934 = vpack.c.bf16 %v809, %v803
        %v2935 = vpack.c.bf16 %v819, %v813
        %v2936 = vpack.c.bf16 %v821, %v815
        %2937 = vmatprep.subr.bf16.mxu0 %v2858
        %2938 = vmatpush1.bf16.xpose.msra.mxu0 %v2857
        %2939 = vmatprep.subr.bf16.mxu0 %v2860
        %2940 = vmatpush1.bf16.xpose.msra.mxu0 %v2859
        %2941 = vmatprep.subr.bf16.mxu0 %v2862
        %2942 = vmatpush1.bf16.xpose.msra.mxu0 %v2861
        %2943 = vmatprep.subr.bf16.mxu0 %v2864
        %2944 = vmatpush1.bf16.xpose.msra.mxu0 %v2863
        %2945 = vmatprep.subr.bf16.mxu0 %v2866
        %2946 = vmatpush1.bf16.xpose.msra.mxu0 %v2865
        %2947 = vmatprep.subr.bf16.mxu0 %v2868
        %2948 = vmatpush1.bf16.xpose.msra.mxu0 %v2867
        %2949 = vmatprep.subr.bf16.mxu0 %v2870
        %2950 = vmatpush1.bf16.xpose.msra.mxu0 %v2869
        %2951 = vmatprep.subr.bf16.mxu0 %v2872
        %2952 = vmatpush1.bf16.xpose.msra.mxu0 %v2871
        %2953 = vmatprep.subr.bf16.mxu0 0
        %2954 = vmatpush1.bf16.xpose.msra.mxu0 0
        %2955 = vmatprep.subr.bf16.mxu0 0
        %2956 = vmatpush1.bf16.xpose.msra.mxu0 0
        %2957 = vmatprep.subr.bf16.mxu0 0
        %2958 = vmatpush1.bf16.xpose.msra.mxu0 0
        %2959 = vmatprep.subr.bf16.mxu0 0
        %2960 = vmatpush1.bf16.xpose.msra.mxu0 0
        %2961 = vmatprep.subr.bf16.mxu0 0
        %2962 = vmatpush1.bf16.xpose.msra.mxu0 0
        %2963 = vmatprep.subr.bf16.mxu0 0
        %2964 = vmatpush1.bf16.xpose.msra.mxu0 0
        %2965 = vmatprep.subr.bf16.mxu0 0
        %2966 = vmatpush1.bf16.xpose.msra.mxu0 0
        %2967 = vmatprep.subr.bf16.mxu0 0
        %2968 = vmatpush1.bf16.xpose.msra.mxu0 0
        %2969 = vmatprep.mubr.bf16.mxu0 %v2922
        %2970 = vmatmul.mubr.bf16.gmra.mrb[0].mxu0 %v2921
        %v2971 = vpop.f32.mrb[0].mxu0
        %v2972 = vadd.f32 0.0, %v2971
        %v2973 = vpop.f32.mrb[0].mxu0
        %v2974 = vpop.f32.mrb[0].mxu0
        %v2975 = vadd.f32 0.0, %v2974
        %v2976 = vpop.f32.mrb[0].mxu0
        %2977 = vmatprep.mubr.bf16.mxu0 %v2924
        %2978 = vmatmul.mubr.bf16.gmra.mrb[0].mxu0 %v2923
        %v2979 = vpop.f32.mrb[0].mxu0
        %v2980 = vadd.f32 0.0, %v2979
        %v2981 = vpop.f32.mrb[0].mxu0
        %v2982 = vpop.f32.mrb[0].mxu0
        %v2983 = vadd.f32 0.0, %v2982
        %v2984 = vpop.f32.mrb[0].mxu0
        %2985 = vdwg.mxu0
        %2986 = vmatprep.subr.bf16.mxu0 %v2874
        %2987 = vmatpush1.bf16.xpose.msra.mxu0 %v2873
        %2988 = vmatprep.subr.bf16.mxu0 %v2876
        %2989 = vmatpush1.bf16.xpose.msra.mxu0 %v2875
        %2990 = vmatprep.subr.bf16.mxu0 %v2878
        %2991 = vmatpush1.bf16.xpose.msra.mxu0 %v2877
        %2992 = vmatprep.subr.bf16.mxu0 %v2880
        %2993 = vmatpush1.bf16.xpose.msra.mxu0 %v2879
        %2994 = vmatprep.subr.bf16.mxu0 %v2882
        %2995 = vmatpush1.bf16.xpose.msra.mxu0 %v2881
        %2996 = vmatprep.subr.bf16.mxu0 %v2884
        %2997 = vmatpush1.bf16.xpose.msra.mxu0 %v2883
        %2998 = vmatprep.subr.bf16.mxu0 %v2886
        %2999 = vmatpush1.bf16.xpose.msra.mxu0 %v2885
        %3000 = vmatprep.subr.bf16.mxu0 %v2888
        %3001 = vmatpush1.bf16.xpose.msra.mxu0 %v2887
        %3002 = vmatprep.subr.bf16.mxu0 0
        %3003 = vmatpush1.bf16.xpose.msra.mxu0 0
        %3004 = vmatprep.subr.bf16.mxu0 0
        %3005 = vmatpush1.bf16.xpose.msra.mxu0 0
        %3006 = vmatprep.subr.bf16.mxu0 0
        %3007 = vmatpush1.bf16.xpose.msra.mxu0 0
        %3008 = vmatprep.subr.bf16.mxu0 0
        %3009 = vmatpush1.bf16.xpose.msra.mxu0 0
        %3010 = vmatprep.subr.bf16.mxu0 0
        %3011 = vmatpush1.bf16.xpose.msra.mxu0 0
        %3012 = vmatprep.subr.bf16.mxu0 0
        %3013 = vmatpush1.bf16.xpose.msra.mxu0 0
        %3014 = vmatprep.subr.bf16.mxu0 0
        %3015 = vmatpush1.bf16.xpose.msra.mxu0 0
        %3016 = vmatprep.subr.bf16.mxu0 0
        %3017 = vmatpush1.bf16.xpose.msra.mxu0 0
        %3018 = vmatprep.mubr.bf16.mxu0 %v2926
        %3019 = vmatmul.mubr.bf16.gmra.mrb[0].mxu0 %v2925
        %v3020 = vpop.f32.mrb[0].mxu0
        %v3021 = vadd.f32 0.0, %v3020
        %v3022 = vpop.f32.mrb[0].mxu0
        %v3023 = vpop.f32.mrb[0].mxu0
        %v3024 = vadd.f32 0.0, %v3023
        %v3025 = vpop.f32.mrb[0].mxu0
        %3026 = vmatprep.mubr.bf16.mxu0 %v2928
        %3027 = vmatmul.mubr.bf16.gmra.mrb[0].mxu0 %v2927
        %v3028 = vpop.f32.mrb[0].mxu0
        %v3029 = vadd.f32 0.0, %v3028
        %v3030 = vpop.f32.mrb[0].mxu0
        %v3031 = vpop.f32.mrb[0].mxu0
        %v3032 = vadd.f32 0.0, %v3031
        %v3033 = vpop.f32.mrb[0].mxu0
        %3034 = vdwg.mxu0
        %3035 = vmatprep.subr.bf16.mxu0 %v2890
        %3036 = vmatpush1.bf16.xpose.msra.mxu0 %v2889
        %3037 = vmatprep.subr.bf16.mxu0 %v2892
        %3038 = vmatpush1.bf16.xpose.msra.mxu0 %v2891
        %3039 = vmatprep.subr.bf16.mxu0 %v2894
        %3040 = vmatpush1.bf16.xpose.msra.mxu0 %v2893
        %3041 = vmatprep.subr.bf16.mxu0 %v2896
        %3042 = vmatpush1.bf16.xpose.msra.mxu0 %v2895
        %3043 = vmatprep.subr.bf16.mxu0 %v2898
        %3044 = vmatpush1.bf16.xpose.msra.mxu0 %v2897
        %3045 = vmatprep.subr.bf16.mxu0 %v2900
        %3046 = vmatpush1.bf16.xpose.msra.mxu0 %v2899
        %3047 = vmatprep.subr.bf16.mxu0 %v2902
        %3048 = vmatpush1.bf16.xpose.msra.mxu0 %v2901
        %3049 = vmatprep.subr.bf16.mxu0 %v2904
        %3050 = vmatpush1.bf16.xpose.msra.mxu0 %v2903
        %3051 = vmatprep.subr.bf16.mxu0 0
        %3052 = vmatpush1.bf16.xpose.msra.mxu0 0
        %3053 = vmatprep.subr.bf16.mxu0 0
        %3054 = vmatpush1.bf16.xpose.msra.mxu0 0
        %3055 = vmatprep.subr.bf16.mxu0 0
        %3056 = vmatpush1.bf16.xpose.msra.mxu0 0
        %3057 = vmatprep.subr.bf16.mxu0 0
        %3058 = vmatpush1.bf16.xpose.msra.mxu0 0
        %3059 = vmatprep.subr.bf16.mxu0 0
        %3060 = vmatpush1.bf16.xpose.msra.mxu0 0
        %3061 = vmatprep.subr.bf16.mxu0 0
        %3062 = vmatpush1.bf16.xpose.msra.mxu0 0
        %3063 = vmatprep.subr.bf16.mxu0 0
        %3064 = vmatpush1.bf16.xpose.msra.mxu0 0
        %3065 = vmatprep.subr.bf16.mxu0 0
        %3066 = vmatpush1.bf16.xpose.msra.mxu0 0
        %3067 = vmatprep.mubr.bf16.mxu0 %v2930
        %3068 = vmatmul.mubr.bf16.gmra.mrb[0].mxu0 %v2929
        %v3069 = vpop.f32.mrb[0].mxu0
        %v3070 = vadd.f32 0.0, %v3069
        %v3071 = vpop.f32.mrb[0].mxu0
        %v3072 = vpop.f32.mrb[0].mxu0
        %v3073 = vadd.f32 0.0, %v3072
        %v3074 = vpop.f32.mrb[0].mxu0
        %3075 = vmatprep.mubr.bf16.mxu0 %v2932
        %3076 = vmatmul.mubr.bf16.gmra.mrb[0].mxu0 %v2931
        %v3077 = vpop.f32.mrb[0].mxu0
        %v3078 = vadd.f32 0.0, %v3077
        %v3079 = vpop.f32.mrb[0].mxu0
        %v3080 = vpop.f32.mrb[0].mxu0
        %v3081 = vadd.f32 0.0, %v3080
        %v3082 = vpop.f32.mrb[0].mxu0
        %3083 = vdwg.mxu0
        %3084 = vmatprep.subr.bf16.mxu0 %v2906
        %3085 = vmatpush1.bf16.xpose.msra.mxu0 %v2905
        %3086 = vmatprep.subr.bf16.mxu0 %v2908
        %3087 = vmatpush1.bf16.xpose.msra.mxu0 %v2907
        %3088 = vmatprep.subr.bf16.mxu0 %v2910
        %3089 = vmatpush1.bf16.xpose.msra.mxu0 %v2909
        %3090 = vmatprep.subr.bf16.mxu0 %v2912
        %3091 = vmatpush1.bf16.xpose.msra.mxu0 %v2911
        %3092 = vmatprep.subr.bf16.mxu0 %v2914
        %3093 = vmatpush1.bf16.xpose.msra.mxu0 %v2913
        %3094 = vmatprep.subr.bf16.mxu0 %v2916
        %3095 = vmatpush1.bf16.xpose.msra.mxu0 %v2915
        %3096 = vmatprep.subr.bf16.mxu0 %v2918
        %3097 = vmatpush1.bf16.xpose.msra.mxu0 %v2917
        %3098 = vmatprep.subr.bf16.mxu0 %v2920
        %3099 = vmatpush1.bf16.xpose.msra.mxu0 %v2919
        %3100 = vmatprep.subr.bf16.mxu0 0
        %3101 = vmatpush1.bf16.xpose.msra.mxu0 0
        %3102 = vmatprep.subr.bf16.mxu0 0
        %3103 = vmatpush1.bf16.xpose.msra.mxu0 0
        %3104 = vmatprep.subr.bf16.mxu0 0
        %3105 = vmatpush1.bf16.xpose.msra.mxu0 0
        %3106 = vmatprep.subr.bf16.mxu0 0
        %3107 = vmatpush1.bf16.xpose.msra.mxu0 0
        %3108 = vmatprep.subr.bf16.mxu0 0
        %3109 = vmatpush1.bf16.xpose.msra.mxu0 0
        %3110 = vmatprep.subr.bf16.mxu0 0
        %3111 = vmatpush1.bf16.xpose.msra.mxu0 0
        %3112 = vmatprep.subr.bf16.mxu0 0
        %3113 = vmatpush1.bf16.xpose.msra.mxu0 0
        %3114 = vmatprep.subr.bf16.mxu0 0
        %3115 = vmatpush1.bf16.xpose.msra.mxu0 0
        %3116 = vmatprep.mubr.bf16.mxu0 %v2934
        %3117 = vmatmul.mubr.bf16.gmra.mrb[0].mxu0 %v2933
        %v3118 = vpop.f32.mrb[0].mxu0
        %v3119 = vadd.f32 0.0, %v3118
        %v3120 = vpop.f32.mrb[0].mxu0
        %v3121 = vpop.f32.mrb[0].mxu0
        %v3122 = vadd.f32 0.0, %v3121
        %v3123 = vpop.f32.mrb[0].mxu0
        %3124 = vmatprep.mubr.bf16.mxu0 %v2936
        %3125 = vmatmul.mubr.bf16.gmra.mrb[0].mxu0 %v2935
        %v3126 = vpop.f32.mrb[0].mxu0
        %v3127 = vadd.f32 0.0, %v3126
        %v3128 = vpop.f32.mrb[0].mxu0
        %v3129 = vpop.f32.mrb[0].mxu0
        %v3130 = vadd.f32 0.0, %v3129
        %v3131 = vpop.f32.mrb[0].mxu0
        %3132 = vdwg.mxu0
        %v3133 = vld [vmem:[%s3] sm:$0xf]
        %v3134 = vld [vmem:[%s4] sm:$0xf]
        %3136 = vset.pattern.permute.xlu0 0
        %3137 = vperm.xlu0 %3136, %v3134
        %v3138 = vpop.permute.xlu0 %3137
        %3140 = vmatprep.subr.mxu0 0.0
        %3141 = vmatpush1.msra.mxu0 %v2972
        %3142 = vmatprep.subr.mxu0 0.0
        %3143 = vmatpush1.msra.mxu0 %v2975
        %3144 = vmatprep.subr.mxu0 0.0
        %3145 = vmatpush1.msra.mxu0 %v2980
        %3146 = vmatprep.subr.mxu0 0.0
        %3147 = vmatpush1.msra.mxu0 %v2983
        %3148 = vmatprep.subr.mxu0 0.0
        %3149 = vmatpush1.msra.mxu0 %v3021
        %3150 = vmatprep.subr.mxu0 0.0
        %3151 = vmatpush1.msra.mxu0 %v3024
        %3152 = vmatprep.subr.mxu0 0.0
        %3153 = vmatpush1.msra.mxu0 %v3029
        %3154 = vmatprep.subr.mxu0 0.0
        %3155 = vmatpush1.msra.mxu0 %v3032
        %3156 = vmatprep.subr.mxu0 0.0
        %3157 = vmatpush1.msra.mxu0 %v3070
        %3158 = vmatprep.subr.mxu0 0.0
        %3159 = vmatpush1.msra.mxu0 %v3073
        %3160 = vmatprep.subr.mxu0 0.0
        %3161 = vmatpush1.msra.mxu0 %v3078
        %3162 = vmatprep.subr.mxu0 0.0
        %3163 = vmatpush1.msra.mxu0 %v3081
        %3164 = vmatprep.subr.mxu0 0.0
        %3165 = vmatpush1.msra.mxu0 %v3119
        %3166 = vmatprep.subr.mxu0 0.0
        %3167 = vmatpush1.msra.mxu0 %v3122
        %3168 = vmatprep.subr.mxu0 0.0
        %3169 = vmatpush1.msra.mxu0 %v3127
        %3170 = vmatprep.subr.mxu0 0.0
        %3171 = vmatpush1.msra.mxu0 %v3130
        %3172 = vmatprep.subr.mxu0 0.0
        %3173 = vmatpush1.msra.mxu0 0.0
        %3174 = vmatprep.subr.mxu0 0.0
        %3175 = vmatpush1.msra.mxu0 0.0
        %3176 = vmatprep.subr.mxu0 0.0
        %3177 = vmatpush1.msra.mxu0 0.0
        %3178 = vmatprep.subr.mxu0 0.0
        %3179 = vmatpush1.msra.mxu0 0.0
        %3180 = vmatprep.subr.mxu0 0.0
        %3181 = vmatpush1.msra.mxu0 0.0
        %3182 = vmatprep.subr.mxu0 0.0
        %3183 = vmatpush1.msra.mxu0 0.0
        %3184 = vmatprep.subr.mxu0 0.0
        %3185 = vmatpush1.msra.mxu0 0.0
        %3186 = vmatprep.subr.mxu0 0.0
        %3187 = vmatpush1.msra.mxu0 0.0
        %3188 = vmatprep.subr.mxu0 0.0
        %3189 = vmatpush1.msra.mxu0 0.0
        %3190 = vmatprep.subr.mxu0 0.0
        %3191 = vmatpush1.msra.mxu0 0.0
        %3192 = vmatprep.subr.mxu0 0.0
        %3193 = vmatpush1.msra.mxu0 0.0
        %3194 = vmatprep.subr.mxu0 0.0
        %3195 = vmatpush1.msra.mxu0 0.0
        %3196 = vmatprep.subr.mxu0 0.0
        %3197 = vmatpush1.msra.mxu0 0.0
        %3198 = vmatprep.subr.mxu0 0.0
        %3199 = vmatpush1.msra.mxu0 0.0
        %3200 = vmatprep.subr.mxu0 0.0
        %3201 = vmatpush1.msra.mxu0 0.0
        %3202 = vmatprep.subr.mxu0 0.0
        %3203 = vmatpush1.msra.mxu0 0.0
        %3204 = vmatprep.mubr.f32.mxu0 0.0
        %3205 = vmatmul.mubr.f32.gmra.mrb[0].mxu0 %v3133
        %v3206 = vpop.f32.mrb[0].mxu0
        %v3207 = vadd.f32 %v3138, %v3206
        %v3208 = vpop.f32.mrb[0].mxu0
        %3209 = vdwg.mxu0
        %3210 = vst [vmem:[%s254] sm:$0xf] %v3207
        %s3211 = sand.u32 %s158, 1
        %s3212 = scalar_lea.sflag [#allocation3], %s3211
        %s3213 = sand.u32 %s158, 1
        %s3214 = smul.addr %s3213, 4
        %s3215 = scalar_lea.vmem [#allocation2], %s3214
        // Predicated region
        $region41: #{tpu_custom_call.1} parent=39 // pred_check
          %p3216 = pneg %p168
        $region42: #{tpu_custom_call.1} parent=39 // pred_check_branch
          %3218 = sbr.rel (%p3216) target = $region44
        $region43: #{tpu_custom_call.1} parent=39 // pred_region
          %s3220 = ssub.s32 64, 64
          %3221 = vsyncadd %s3212, %s3220
          %s3222 = smul.addr %s23, 2
          %s3223 = sadd.s32 %s24, %s3222
          %s3224 = smul.addr %s3223, 64
          %s3225 = scalar_lea.hbm %s5, %s3224
          %s3227 = sshll.u32 %s3215, 4
          %s3228 = int_to_ptr.vmem [resolvable:$true] %s3227
          %3230 = dma.vmem_to_hbm [thread:$0]  %s3228, 64, %s3225, %s3212
        $region44: #{tpu_custom_call.1} parent=39 // pred_fallthru
          _
      $region40: #{tpu_custom_call.1} parent=5 // pred_fallthru
        _
      %p3231 = scmp.le.s32.totalorder 2, %s14
      // Predicated region
      $region45: #{tpu_custom_call.1} parent=5 // pred_check
        %p3232 = pneg %p3231
      $region46: #{tpu_custom_call.1} parent=5 // pred_check_branch
        %3234 = sbr.rel (%p3232) target = $region48
      $region47: #{tpu_custom_call.1} parent=5 // pred_region
        %s3235 = ssub.s32 %s14, 2
        // Predicated region
        $region49: #{tpu_custom_call.1} parent=47 // pred_check
          %p3236 = pneg %p174
        $region50: #{tpu_custom_call.1} parent=47 // pred_check_branch
          %3238 = sbr.rel (%p3236) target = $region52
        $region51: #{tpu_custom_call.1} parent=47 // pred_region
          %s3239 = sand.u32 %s159, 1
          %s3240 = scalar_lea.sflag [#allocation3], %s3239
          %s3241 = sand.u32 %s159, 1
          %s3242 = smul.addr %s3241, 4
          %s3243 = scalar_lea.vmem [#allocation2], %s3242
          %3244 = dma.done %s3240, 64
        $region52: #{tpu_custom_call.1} parent=47 // pred_fallthru
          _
      $region48: #{tpu_custom_call.1} parent=5 // pred_fallthru
        _
    $region6: #{tpu_custom_call.1} parent=1 // loop_footer
      %s18 = sadd.s32 1, %s14
    $region7: #{tpu_custom_call.1} parent=1 // loop_footer_branch
      %13 = sbr.rel target = $region3
    $region8: #{tpu_custom_call.1} parent=1 // loop_exit
      _
    %3245 = vsyncpa [#allocation3], 1
    %s3246 = scalar_lea.sflag [#allocation3], 1
    %3247 = vsyncpa %s3246, 1

</llo_original>
